<compile_context>
chip_gen: v7x
topology: tpu7x:2x2x1
jax: 0.10.0
libtpu: 0.0.40
codegen_flags: <defaults>
</compile_context>

<pallas_src>
import functools
import math

import jax
import jax.numpy as jnp
from jax.experimental import pallas as pl
from jax.experimental.pallas import tpu as pltpu

_SUBLANE = 8        # f32 sublane count; task rows padded to a multiple of this
_MAX_BLOCK_ROWS = 256  # MXU-native row tile cap (multiple of 128 and 256)


def _round_up(x, m):
    return ((x + m - 1) // m) * m


# --------------------------------------------------------------------------- #
# Portable in-kernel integer hash (no pltpu.prng_* -- works on Mosaic AND the
# CPU interpreter).  All arithmetic is int32 with explicit logical shifts.
# --------------------------------------------------------------------------- #
def _lsr(x, n):
    """Logical right shift for int32 (jnp.right_shift is arithmetic)."""
    return jnp.bitwise_and(jnp.right_shift(x, n),
                           jnp.int32((1 << (32 - n)) - 1))


def _mix32(x):
    """lowbias32-style mixer; bijective on 32 bits (distinct in -> distinct out)."""
    x = jnp.bitwise_xor(x, _lsr(x, 16))
    x = x * jnp.int32(0x7FEB352D)
    x = jnp.bitwise_xor(x, _lsr(x, 15))
    x = x * jnp.int32(0x846CA68B - (1 << 32))
    x = jnp.bitwise_xor(x, _lsr(x, 16))
    return x


# --------------------------------------------------------------------------- #
# Fused kernel: MLP -> Gumbel perturbation -> per-layer k-th threshold -> mask
# --------------------------------------------------------------------------- #
def _mask_forward_kernel(seed_ref, emb_ref, w1_ref, b1_ref, w2_ref, b2_ref,
                         out_ref, *, layer_starts, layer_widths, layer_k):
    # ---- generator_body MLP: Linear -> ReLU -> Linear (MXU, f32 acc) ---- #
    h = jnp.dot(emb_ref[...], w1_ref[...], preferred_element_type=jnp.float32)
    h = jnp.maximum(h + b1_ref[...], 0.0)
    logits = jnp.dot(h, w2_ref[...], preferred_element_type=jnp.float32)
    logits = logits + b2_ref[...]

    tm, total = logits.shape

    # ---- Gumbel(0,1) noise from a counter-based hash ---- #
    # Depends only on (global row, column, seed) => reproducible across tilings.
    row = (jax.lax.broadcasted_iota(jnp.int32, logits.shape, 0)
           + pl.program_id(0) * tm)
    col = jax.lax.broadcasted_iota(jnp.int32, logits.shape, 1)
    seed = seed_ref[0]
    x = row * jnp.int32(total) + col + seed * jnp.int32(0x632BE5AB)
    x = _mix32(x)
    mant = _lsr(x, 9)                                      # 23 uniform bits
    u = (mant.astype(jnp.float32) + 0.5) * jnp.float32(1.0 / 8388608.0)  # (0,1)
    gumbel = -jnp.log(-jnp.log(u))                         # standard Gumbel(0,1)

    # tau / softmax dropped: top-k thresholding is invariant to the positive
    # 1/tau scale and the monotone softmax; straight-through forward value is
    # numerically y_hard.
    # TODO(synk): add a jax.custom_vjp (softmax backward) if gradients through
    # the mask are ever needed -- pallas_call is not auto-differentiable.
    pert = logits + gumbel

    # ---- order-preserving float32 -> int32 key ---- #
    bits = jax.lax.bitcast_convert_type(pert, jnp.int32)
    keys = jnp.where(bits < 0,
                     jnp.bitwise_xor(bits, jnp.int32(0x7FFFFFFF)), bits)

    # ---- per-row, per-layer k-th largest key: 32-step radix bisection ---- #
    col1 = jax.lax.broadcasted_iota(jnp.int32, (1, total), 1)
    seg_masks = [jnp.logical_and(col1 >= s, col1 < s + w)
                 for s, w in zip(layer_starts, layer_widths)]

    def count_ge(thr, seg):
        # thr: (tm,1) int32; seg: (1,total) bool -> float count per row (tm,1)
        hit = jnp.logical_and(keys >= thr, seg)
        return jnp.sum(jnp.where(hit, 1.0, 0.0), axis=1, keepdims=True)

    zero_col = jnp.zeros((tm, 1), jnp.int32)
    int_min_col = jnp.full((tm, 1), jnp.int32(-(2 ** 31)), jnp.int32)

    # Bit 31 (sign in key space): is the k-th largest perturbed logit >= 0 ?
    prefixes = [jnp.where(count_ge(zero_col, seg) >= jnp.float32(k),
                          zero_col, int_min_col)
                for seg, k in zip(seg_masks, layer_k)]
    # Bits 30..0: standard "count >= trial" radix select; exact k-th value.
    for bit in range(30, -1, -1):
        bit_val = jnp.int32(1 << bit)
        new_prefixes = []
        for p, seg, k in zip(prefixes, seg_masks, layer_k):
            trial = jnp.bitwise_or(p, bit_val)
            take = count_ge(trial, seg) >= jnp.float32(k)
            new_prefixes.append(jnp.where(take, trial, p))
        prefixes = new_prefixes

    # ---- hard mask: key >= per-layer threshold (implicit broadcasts only) ---- #
    thr = prefixes[0]
    for li in range(1, len(prefixes)):
        thr = jnp.where(col1 >= layer_starts[li], prefixes[li], thr)
    out_ref[...] = jnp.where(keys >= thr, 1.0, 0.0).astype(jnp.float32)


def mask_forward_pallas(seed, emb, w1, b1, w2, b2, *,
                        layer_starts, layer_widths, layer_k, block_rows):
    """Fused forward: (Tpad, in) -> binary mask slab (Tpad, total)."""
    t_pad, in_dim = emb.shape
    hid = w1.shape[1]
    total = w2.shape[1]
    tm = block_rows
    kernel = functools.partial(
        _mask_forward_kernel,
        layer_starts=tuple(int(s) for s in layer_starts),
        layer_widths=tuple(int(w) for w in layer_widths),
        layer_k=tuple(int(k) for k in layer_k))
    # Weights use constant index maps (resident across grid steps).
    # TODO(synk): pipeline_mode=pl.Buffered(1) would single-buffer them; skipped
    # for maximum compatibility (they are only ~80 KiB here).
    return pl.pallas_call(
        kernel,
        out_shape=jax.ShapeDtypeStruct((t_pad, total), jnp.float32),
        grid_spec=pltpu.PrefetchScalarGridSpec(
            num_scalar_prefetch=1,                 # seed lands in SMEM
            grid=(t_pad // tm,),
            in_specs=[
                pl.BlockSpec((tm, in_dim), lambda i, s: (i, 0)),
                pl.BlockSpec((in_dim, hid), lambda i, s: (0, 0)),
                pl.BlockSpec((1, hid), lambda i, s: (0, 0)),
                pl.BlockSpec((hid, total), lambda i, s: (0, 0)),
                pl.BlockSpec((1, total), lambda i, s: (0, 0)),
            ],
            out_specs=pl.BlockSpec((tm, total), lambda i, s: (i, 0)),
        ),
        compiler_params=pltpu.CompilerParams(
            dimension_semantics=("parallel",)),
    )(seed, emb, w1, b1.reshape(1, -1), w2, b2.reshape(1, -1))


# --------------------------------------------------------------------------- #
# MaskGeneratorNet (JAX)
# --------------------------------------------------------------------------- #
class MaskGeneratorNet:
    """JAX/Pallas port of torchrl MaskGeneratorNet (use_trajectory_info=False)."""

    def __init__(self, em_input_shape, hidden_shapes, info_dim, pruning_ratio,
                 use_trajectory_info, main_input_dim, main_out_dim, task_amount,
                 generator_mlp_hidden, key, tau=1.0):
        self.pruning_ratio = pruning_ratio
        self.encode_dimension = info_dim
        self.task_amount = task_amount
        self.layer_neurons = list(hidden_shapes)
        self.use_trajectory_info = use_trajectory_info
        self.main_input_dim = main_input_dim
        self.main_out_dim = main_out_dim
        self.tau = float(tau)   # kept for API parity; hard mask is tau-invariant

        # Static per-layer mask geometry (mirrors the torch forward() loop).
        self.layer_shapes = self._compute_layer_shapes()
        self.layer_widths = tuple(o * i for o, i in self.layer_shapes)
        self.layer_starts = tuple(
            sum(self.layer_widths[:i]) for i in range(len(self.layer_widths)))
        self.layer_k = tuple(self.preserve_amount(w) for w in self.layer_widths)
        total = sum(self.layer_widths)
        assert total == self.sum_up_dim(self.layer_neurons,
                                        main_input_dim, main_out_dim)

        in_dim = (info_dim + em_input_shape) if use_trajectory_info \
            else em_input_shape

        # Parameter init mimicking torch.nn.Linear defaults.
        k1, k2, k3, k4 = jax.random.split(key, 4)
        bd1 = 1.0 / math.sqrt(in_dim)
        self.w1 = jax.random.uniform(k1, (in_dim, generator_mlp_hidden),
                                     minval=-bd1, maxval=bd1, dtype=jnp.float32)
        self.b1 = jax.random.uniform(k2, (generator_mlp_hidden,),
                                     minval=-bd1, maxval=bd1, dtype=jnp.float32)
        bd2 = 1.0 / math.sqrt(generator_mlp_hidden)
        self.w2 = jax.random.uniform(k3, (generator_mlp_hidden, total),
                                     minval=-bd2, maxval=bd2, dtype=jnp.float32)
        self.b2 = jax.random.uniform(k4, (total,),
                                     minval=-bd2, maxval=bd2, dtype=jnp.float32)

        self._forward_impl = jax.jit(self._build_forward_impl())

    # ---------------- static helpers ---------------- #
    @staticmethod
    def sum_up_dim(layer_neurons, main_input, main_output):
        tmp = [main_input] + list(layer_neurons) + [main_output]
        return sum(tmp[i] * tmp[i + 1] for i in range(len(tmp) - 1))

    def preserve_amount(self, element_amount):
        return int(element_amount - element_amount * self.pruning_ratio)

    def _compute_layer_shapes(self):
        shapes = []
        out_dim = self.layer_neurons[0]
        in_dim = self.main_input_dim
        for layer_idx in range(len(self.layer_neurons) + 1):
            shapes.append((out_dim, in_dim))
            if layer_idx != len(self.layer_neurons):
                in_dim = self.layer_neurons[layer_idx]
                if layer_idx != len(self.layer_neurons) - 1:
                    out_dim = self.layer_neurons[layer_idx + 1]
                else:
                    out_dim = self.main_out_dim
        return tuple(shapes)

    # ---------------- jitted numeric forward ---------------- #
    def _build_forward_impl(self):
        layer_shapes = self.layer_shapes
        widths = self.layer_widths
        starts = self.layer_starts
        k_list = self.layer_k

        def _impl(emb, w1, b1, w2, b2, rng_key):
            t = emb.shape[0]
            # Single grid step at small T; 256-row blocks (multiple of both the
            # v5e 128 and v6e/v7x 256 MXU tile) at large T.  VMEM per block stays
            # a few MiB, under every generation's scoped default (incl. v7x).
            if t <= _MAX_BLOCK_ROWS:
                t_pad = _round_up(max(t, _SUBLANE), _SUBLANE)
                block_rows = t_pad
            else:
                block_rows = _MAX_BLOCK_ROWS
                t_pad = _round_up(t, _MAX_BLOCK_ROWS)
            emb_p = jnp.pad(emb, ((0, t_pad - t), (0, 0)))

            # Seed straight from the key bits (no threefry launch on hot path).
            if jnp.issubdtype(rng_key.dtype, jax.dtypes.prng_key):
                kd = jax.random.key_data(rng_key)
            else:
                kd = rng_key
            seed = jax.lax.bitcast_convert_type(
                jnp.asarray(kd).reshape(-1)[-1:], jnp.int32)
            seed = jnp.bitwise_and(seed, jnp.int32(0x7FFFFFFF))

            mask = mask_forward_pallas(
                seed, emb_p, w1, b1, w2, b2,
                layer_starts=starts, layer_widths=widths, layer_k=k_list,
                block_rows=block_rows)[:t]

            return tuple(
                mask[:, s:s + w].reshape(t, od, idim)
                for (od, idim), s, w in zip(layer_shapes, starts, widths))

        return _impl

    # ---------------- public forward ---------------- #
    def forward(self, x, embedding_input, key):
        if self.use_trajectory_info:
            # TODO(synk): external trajectory_encoder.encode_lstm is not part of
            # this module; only the use_trajectory_info=False path is ported.
            raise NotImplementedError("trajectory encoder path not available")

        emb = embedding_input
        # torch: embedding_input.squeeze(1); the subsequent unsqueeze(0) branch
        # restores the batch dim, equivalent to a single-row batch here.
        if emb.ndim > 1 and emb.shape[1] == 1:
            emb = jnp.squeeze(emb, axis=1)
        if emb.ndim == 1:
            emb = emb[None, :]

        layer_masks = self._forward_impl(emb, self.w1, self.b1,
                                         self.w2, self.b2, key)

        task_binary_masks = list(layer_masks)
        converted_list = [
            [m[task] for m in task_binary_masks]
            for task in range(task_binary_masks[0].shape[0])
        ]
        return task_binary_masks, converted_list


# --------------------------------------------------------------------------- #
if __name__ == "__main__":
    key = jax.random.PRNGKey(0)
    pkey, ekey, nkey = jax.random.split(key, 3)

    em_input_shape = 8
    hidden_shapes = [16, 16]
    main_input_dim = 12
    main_out_dim = 4
    task_amount = 3
    generator_mlp_hidden = 32
    pruning_ratio = 0.5

    net = MaskGeneratorNet(
        em_input_shape=em_input_shape, hidden_shapes=hidden_shapes, info_dim=6,
        pruning_ratio=pruning_ratio, use_trajectory_info=False,
        main_input_dim=main_input_dim, main_out_dim=main_out_dim,
        task_amount=task_amount, generator_mlp_hidden=generator_mlp_hidden,
        key=pkey)

    # embedding_input: [task_amount, em_input_shape] task-embedding rows
    embedding_input = jax.random.normal(ekey, (task_amount, em_input_shape),
                                        dtype=jnp.float32)
    # x is unused when use_trajectory_info=False (trajectory encoder external)
    x = jnp.zeros((task_amount, 8, 6), dtype=jnp.float32)

    task_binary_masks, converted_list = net.forward(x, embedding_input, nkey)
    task_binary_masks = [jax.block_until_ready(m) for m in task_binary_masks]

    expected_shapes = [(task_amount, 16, 12), (task_amount, 16, 16),
                       (task_amount, 4, 16)]
    assert [tuple(m.shape) for m in task_binary_masks] == expected_shapes
    assert len(converted_list) == task_amount
    assert len(converted_list[0]) == len(task_binary_masks)

    for m, k in zip(task_binary_masks, net.layer_k):
        assert bool(jnp.all(jnp.isfinite(m)))
        assert bool(jnp.all((m == 0.0) | (m == 1.0)))          # hard binary mask
        counts = jnp.sum(m.reshape(m.shape[0], -1), axis=-1)
        assert bool(jnp.all(counts == k)), (counts, k)         # exactly k kept/row

    print("KERNEL_OK")
</pallas_src>

<mosaic_0001>
module attributes {stable_mosaic.version = 11 : i64} {
  func.func @_mask_forward_kernel(%arg0: i32, %arg1: memref<1xi32, #tpu.memory_space<smem>>, %arg2: memref<8x8xf32, #tpu.memory_space<vmem>>, %arg3: memref<8x32xf32, #tpu.memory_space<vmem>>, %arg4: memref<1x32xf32, #tpu.memory_space<vmem>>, %arg5: memref<32x512xf32, #tpu.memory_space<vmem>>, %arg6: memref<1x512xf32, #tpu.memory_space<vmem>>, %arg7: memref<8x512xf32, #tpu.memory_space<vmem>>) attributes {dimension_semantics = [#tpu.dimension_semantics<parallel>], iteration_bounds = array<i64: 1>, scalar_prefetch = 1 : i64, scratch_operands = 0 : i64, tpu.core_type = #tpu.core_type<tc>, window_params = [{transform_indices = @transform_0, window_bounds = array<i64: 8, 8>}, {pipeline_mode = #tpu.pipeline_mode<synchronous>, transform_indices = @transform_1, window_bounds = array<i64: 8, 32>}, {pipeline_mode = #tpu.pipeline_mode<synchronous>, transform_indices = @transform_2, window_bounds = array<i64: 1, 32>}, {pipeline_mode = #tpu.pipeline_mode<synchronous>, transform_indices = @transform_3, window_bounds = array<i64: 32, 512>}, {pipeline_mode = #tpu.pipeline_mode<synchronous>, transform_indices = @transform_4, window_bounds = array<i64: 1, 512>}, {transform_indices = @transform_5, window_bounds = array<i64: 8, 512>}]} {
    %c0 = arith.constant 0 : index
    %c0_0 = arith.constant 0 : index
    %0 = vector.load %arg2[%c0, %c0_0] : memref<8x8xf32, #tpu.memory_space<vmem>>, vector<8x8xf32>
    %c0_1 = arith.constant 0 : index
    %c0_2 = arith.constant 0 : index
    %1 = vector.load %arg3[%c0_1, %c0_2] : memref<8x32xf32, #tpu.memory_space<vmem>>, vector<8x32xf32>
    %cst = arith.constant dense<0.000000e+00> : vector<8x32xf32>
    %2 = tpu.matmul %0, %1, %cst {dimension_numbers = #tpu.dot_dimension_numbers<[1], [0], [0], [1], [0, 0, 1, 1], [], []>} : vector<8x8xf32>, vector<8x32xf32>, vector<8x32xf32> -> vector<8x32xf32>
    %c0_3 = arith.constant 0 : index
    %c0_4 = arith.constant 0 : index
    %3 = vector.load %arg4[%c0_3, %c0_4] : memref<1x32xf32, #tpu.memory_space<vmem>>, vector<1x32xf32>
    %4 = vector.broadcast %3 : vector<1x32xf32> to vector<8x32xf32>
    %5 = arith.addf %2, %4 : vector<8x32xf32>
    %cst_5 = arith.constant 0.000000e+00 : f32
    %6 = vector.broadcast %cst_5 : f32 to vector<8x32xf32>
    %7 = arith.maximumf %5, %6 : vector<8x32xf32>
    %c0_6 = arith.constant 0 : index
    %c0_7 = arith.constant 0 : index
    %8 = vector.load %arg5[%c0_6, %c0_7] : memref<32x512xf32, #tpu.memory_space<vmem>>, vector<32x512xf32>
    %cst_8 = arith.constant dense<0.000000e+00> : vector<8x512xf32>
    %9 = tpu.matmul %7, %8, %cst_8 {dimension_numbers = #tpu.dot_dimension_numbers<[1], [0], [0], [1], [0, 0, 1, 1], [], []>} : vector<8x32xf32>, vector<32x512xf32>, vector<8x512xf32> -> vector<8x512xf32>
    %c0_9 = arith.constant 0 : index
    %c0_10 = arith.constant 0 : index
    %10 = vector.load %arg6[%c0_9, %c0_10] : memref<1x512xf32, #tpu.memory_space<vmem>>, vector<1x512xf32>
    %11 = vector.broadcast %10 : vector<1x512xf32> to vector<8x512xf32>
    %12 = arith.addf %9, %11 : vector<8x512xf32>
    %13 = tpu.iota {dimensions = array<i32: 0>} : vector<8x512xi32>
    %c8_i32 = arith.constant 8 : i32
    %14 = arith.muli %arg0, %c8_i32 : i32
    %15 = vector.broadcast %14 : i32 to vector<8x512xi32>
    %16 = arith.addi %13, %15 : vector<8x512xi32>
    %17 = tpu.iota {dimensions = array<i32: 1>} : vector<8x512xi32>
    %c0_11 = arith.constant 0 : index
    %18 = memref.load %arg1[%c0_11] : memref<1xi32, #tpu.memory_space<smem>>
    %c512_i32 = arith.constant 512 : i32
    %19 = vector.broadcast %c512_i32 : i32 to vector<8x512xi32>
    %20 = arith.muli %16, %19 : vector<8x512xi32>
    %21 = arith.addi %20, %17 : vector<8x512xi32>
    %c1663821227_i32 = arith.constant 1663821227 : i32
    %22 = arith.muli %18, %c1663821227_i32 : i32
    %23 = vector.broadcast %22 : i32 to vector<8x512xi32>
    %24 = arith.addi %21, %23 : vector<8x512xi32>
    %c16_i32 = arith.constant 16 : i32
    %25 = vector.broadcast %c16_i32 : i32 to vector<8x512xi32>
    %26 = arith.shrsi %24, %25 : vector<8x512xi32>
    %c65535_i32 = arith.constant 65535 : i32
    %27 = vector.broadcast %c65535_i32 : i32 to vector<8x512xi32>
    %28 = arith.andi %26, %27 : vector<8x512xi32>
    %29 = arith.xori %24, %28 : vector<8x512xi32>
    %c2146121005_i32 = arith.constant 2146121005 : i32
    %30 = vector.broadcast %c2146121005_i32 : i32 to vector<8x512xi32>
    %31 = arith.muli %29, %30 : vector<8x512xi32>
    %c15_i32 = arith.constant 15 : i32
    %32 = vector.broadcast %c15_i32 : i32 to vector<8x512xi32>
    %33 = arith.shrsi %31, %32 : vector<8x512xi32>
    %c131071_i32 = arith.constant 131071 : i32
    %34 = vector.broadcast %c131071_i32 : i32 to vector<8x512xi32>
    %35 = arith.andi %33, %34 : vector<8x512xi32>
    %36 = arith.xori %31, %35 : vector<8x512xi32>
    %c-2073254261_i32 = arith.constant -2073254261 : i32
    %37 = vector.broadcast %c-2073254261_i32 : i32 to vector<8x512xi32>
    %38 = arith.muli %36, %37 : vector<8x512xi32>
    %c16_i32_12 = arith.constant 16 : i32
    %39 = vector.broadcast %c16_i32_12 : i32 to vector<8x512xi32>
    %40 = arith.shrsi %38, %39 : vector<8x512xi32>
    %c65535_i32_13 = arith.constant 65535 : i32
    %41 = vector.broadcast %c65535_i32_13 : i32 to vector<8x512xi32>
    %42 = arith.andi %40, %41 : vector<8x512xi32>
    %43 = arith.xori %38, %42 : vector<8x512xi32>
    %c9_i32 = arith.constant 9 : i32
    %44 = vector.broadcast %c9_i32 : i32 to vector<8x512xi32>
    %45 = arith.shrsi %43, %44 : vector<8x512xi32>
    %c8388607_i32 = arith.constant 8388607 : i32
    %46 = vector.broadcast %c8388607_i32 : i32 to vector<8x512xi32>
    %47 = arith.andi %45, %46 : vector<8x512xi32>
    %48 = arith.sitofp %47 : vector<8x512xi32> to vector<8x512xf32>
    %cst_14 = arith.constant 5.000000e-01 : f32
    %49 = vector.broadcast %cst_14 : f32 to vector<8x512xf32>
    %50 = arith.addf %48, %49 : vector<8x512xf32>
    %cst_15 = arith.constant 1.1920929E-7 : f32
    %51 = vector.broadcast %cst_15 : f32 to vector<8x512xf32>
    %52 = arith.mulf %50, %51 : vector<8x512xf32>
    %53 = math.log %52 : vector<8x512xf32>
    %cst_16 = arith.constant 0.000000e+00 : f32
    %54 = vector.broadcast %cst_16 : f32 to vector<8x512xf32>
    %55 = arith.subf %54, %53 : vector<8x512xf32>
    %56 = math.log %55 : vector<8x512xf32>
    %cst_17 = arith.constant 0.000000e+00 : f32
    %57 = vector.broadcast %cst_17 : f32 to vector<8x512xf32>
    %58 = arith.subf %57, %56 : vector<8x512xf32>
    %59 = arith.addf %12, %58 : vector<8x512xf32>
    %60 = tpu.bitcast %59 : vector<8x512xf32> -> vector<8x512xi32>
    %c0_i32 = arith.constant 0 : i32
    %61 = vector.broadcast %c0_i32 : i32 to vector<8x512xi32>
    %62 = arith.cmpi slt, %60, %61 : vector<8x512xi32>
    %c2147483647_i32 = arith.constant 2147483647 : i32
    %63 = vector.broadcast %c2147483647_i32 : i32 to vector<8x512xi32>
    %64 = arith.xori %60, %63 : vector<8x512xi32>
    %65 = arith.select %62, %64, %60 : vector<8x512xi1>, vector<8x512xi32>
    %66 = tpu.iota {dimensions = array<i32: 1>} : vector<1x512xi32>
    %c0_i32_18 = arith.constant 0 : i32
    %67 = vector.broadcast %c0_i32_18 : i32 to vector<1x512xi32>
    %68 = arith.cmpi sge, %66, %67 : vector<1x512xi32>
    %c192_i32 = arith.constant 192 : i32
    %69 = vector.broadcast %c192_i32 : i32 to vector<1x512xi32>
    %70 = arith.cmpi slt, %66, %69 : vector<1x512xi32>
    %71 = arith.andi %68, %70 : vector<1x512xi1>
    %c192_i32_19 = arith.constant 192 : i32
    %72 = vector.broadcast %c192_i32_19 : i32 to vector<1x512xi32>
    %73 = arith.cmpi sge, %66, %72 : vector<1x512xi32>
    %c448_i32 = arith.constant 448 : i32
    %74 = vector.broadcast %c448_i32 : i32 to vector<1x512xi32>
    %75 = arith.cmpi slt, %66, %74 : vector<1x512xi32>
    %76 = arith.andi %73, %75 : vector<1x512xi1>
    %c448_i32_20 = arith.constant 448 : i32
    %77 = vector.broadcast %c448_i32_20 : i32 to vector<1x512xi32>
    %78 = arith.cmpi sge, %66, %77 : vector<1x512xi32>
    %c512_i32_21 = arith.constant 512 : i32
    %79 = vector.broadcast %c512_i32_21 : i32 to vector<1x512xi32>
    %80 = arith.cmpi slt, %66, %79 : vector<1x512xi32>
    %81 = arith.andi %78, %80 : vector<1x512xi1>
    %c0_i32_22 = arith.constant 0 : i32
    %82 = vector.broadcast %c0_i32_22 : i32 to vector<8x1xi32>
    %c-2147483648_i32 = arith.constant -2147483648 : i32
    %83 = vector.broadcast %c-2147483648_i32 : i32 to vector<8x1xi32>
    %84 = vector.broadcast %82 : vector<8x1xi32> to vector<8x512xi32>
    %85 = arith.cmpi sge, %65, %84 : vector<8x512xi32>
    %86 = vector.broadcast %71 : vector<1x512xi1> to vector<8x512xi1>
    %87 = arith.andi %85, %86 : vector<8x512xi1>
    %cst_23 = arith.constant 1.000000e+00 : f32
    %cst_24 = arith.constant 0.000000e+00 : f32
    %88 = vector.broadcast %cst_23 : f32 to vector<8x512xf32>
    %89 = vector.broadcast %cst_24 : f32 to vector<8x512xf32>
    %90 = arith.select %87, %88, %89 : vector<8x512xi1>, vector<8x512xf32>
    %cst_25 = arith.constant dense<0.000000e+00> : vector<8xf32>
    %91 = vector.multi_reduction <add>, %90, %cst_25 [1] : vector<8x512xf32> to vector<8xf32>
    %92 = vector.shape_cast %91 : vector<8xf32> to vector<8x1xf32>
    %cst_26 = arith.constant 9.600000e+01 : f32
    %93 = vector.broadcast %cst_26 : f32 to vector<8x1xf32>
    %94 = arith.cmpf oge, %92, %93 : vector<8x1xf32>
    %95 = arith.select %94, %82, %83 : vector<8x1xi1>, vector<8x1xi32>
    %96 = vector.broadcast %82 : vector<8x1xi32> to vector<8x512xi32>
    %97 = arith.cmpi sge, %65, %96 : vector<8x512xi32>
    %98 = vector.broadcast %76 : vector<1x512xi1> to vector<8x512xi1>
    %99 = arith.andi %97, %98 : vector<8x512xi1>
    %cst_27 = arith.constant 1.000000e+00 : f32
    %cst_28 = arith.constant 0.000000e+00 : f32
    %100 = vector.broadcast %cst_27 : f32 to vector<8x512xf32>
    %101 = vector.broadcast %cst_28 : f32 to vector<8x512xf32>
    %102 = arith.select %99, %100, %101 : vector<8x512xi1>, vector<8x512xf32>
    %cst_29 = arith.constant dense<0.000000e+00> : vector<8xf32>
    %103 = vector.multi_reduction <add>, %102, %cst_29 [1] : vector<8x512xf32> to vector<8xf32>
    %104 = vector.shape_cast %103 : vector<8xf32> to vector<8x1xf32>
    %cst_30 = arith.constant 1.280000e+02 : f32
    %105 = vector.broadcast %cst_30 : f32 to vector<8x1xf32>
    %106 = arith.cmpf oge, %104, %105 : vector<8x1xf32>
    %107 = arith.select %106, %82, %83 : vector<8x1xi1>, vector<8x1xi32>
    %108 = vector.broadcast %82 : vector<8x1xi32> to vector<8x512xi32>
    %109 = arith.cmpi sge, %65, %108 : vector<8x512xi32>
    %110 = vector.broadcast %81 : vector<1x512xi1> to vector<8x512xi1>
    %111 = arith.andi %109, %110 : vector<8x512xi1>
    %cst_31 = arith.constant 1.000000e+00 : f32
    %cst_32 = arith.constant 0.000000e+00 : f32
    %112 = vector.broadcast %cst_31 : f32 to vector<8x512xf32>
    %113 = vector.broadcast %cst_32 : f32 to vector<8x512xf32>
    %114 = arith.select %111, %112, %113 : vector<8x512xi1>, vector<8x512xf32>
    %cst_33 = arith.constant dense<0.000000e+00> : vector<8xf32>
    %115 = vector.multi_reduction <add>, %114, %cst_33 [1] : vector<8x512xf32> to vector<8xf32>
    %116 = vector.shape_cast %115 : vector<8xf32> to vector<8x1xf32>
    %cst_34 = arith.constant 3.200000e+01 : f32
    %117 = vector.broadcast %cst_34 : f32 to vector<8x1xf32>
    %118 = arith.cmpf oge, %116, %117 : vector<8x1xf32>
    %119 = arith.select %118, %82, %83 : vector<8x1xi1>, vector<8x1xi32>
    %c1073741824_i32 = arith.constant 1073741824 : i32
    %120 = vector.broadcast %c1073741824_i32 : i32 to vector<8x1xi32>
    %121 = arith.ori %95, %120 : vector<8x1xi32>
    %122 = vector.broadcast %121 : vector<8x1xi32> to vector<8x512xi32>
    %123 = arith.cmpi sge, %65, %122 : vector<8x512xi32>
    %124 = vector.broadcast %71 : vector<1x512xi1> to vector<8x512xi1>
    %125 = arith.andi %123, %124 : vector<8x512xi1>
    %cst_35 = arith.constant 1.000000e+00 : f32
    %cst_36 = arith.constant 0.000000e+00 : f32
    %126 = vector.broadcast %cst_35 : f32 to vector<8x512xf32>
    %127 = vector.broadcast %cst_36 : f32 to vector<8x512xf32>
    %128 = arith.select %125, %126, %127 : vector<8x512xi1>, vector<8x512xf32>
    %cst_37 = arith.constant dense<0.000000e+00> : vector<8xf32>
    %129 = vector.multi_reduction <add>, %128, %cst_37 [1] : vector<8x512xf32> to vector<8xf32>
    %130 = vector.shape_cast %129 : vector<8xf32> to vector<8x1xf32>
    %cst_38 = arith.constant 9.600000e+01 : f32
    %131 = vector.broadcast %cst_38 : f32 to vector<8x1xf32>
    %132 = arith.cmpf oge, %130, %131 : vector<8x1xf32>
    %133 = arith.select %132, %121, %95 : vector<8x1xi1>, vector<8x1xi32>
    %c1073741824_i32_39 = arith.constant 1073741824 : i32
    %134 = vector.broadcast %c1073741824_i32_39 : i32 to vector<8x1xi32>
    %135 = arith.ori %107, %134 : vector<8x1xi32>
    %136 = vector.broadcast %135 : vector<8x1xi32> to vector<8x512xi32>
    %137 = arith.cmpi sge, %65, %136 : vector<8x512xi32>
    %138 = vector.broadcast %76 : vector<1x512xi1> to vector<8x512xi1>
    %139 = arith.andi %137, %138 : vector<8x512xi1>
    %cst_40 = arith.constant 1.000000e+00 : f32
    %cst_41 = arith.constant 0.000000e+00 : f32
    %140 = vector.broadcast %cst_40 : f32 to vector<8x512xf32>
    %141 = vector.broadcast %cst_41 : f32 to vector<8x512xf32>
    %142 = arith.select %139, %140, %141 : vector<8x512xi1>, vector<8x512xf32>
    %cst_42 = arith.constant dense<0.000000e+00> : vector<8xf32>
    %143 = vector.multi_reduction <add>, %142, %cst_42 [1] : vector<8x512xf32> to vector<8xf32>
    %144 = vector.shape_cast %143 : vector<8xf32> to vector<8x1xf32>
    %cst_43 = arith.constant 1.280000e+02 : f32
    %145 = vector.broadcast %cst_43 : f32 to vector<8x1xf32>
    %146 = arith.cmpf oge, %144, %145 : vector<8x1xf32>
    %147 = arith.select %146, %135, %107 : vector<8x1xi1>, vector<8x1xi32>
    %c1073741824_i32_44 = arith.constant 1073741824 : i32
    %148 = vector.broadcast %c1073741824_i32_44 : i32 to vector<8x1xi32>
    %149 = arith.ori %119, %148 : vector<8x1xi32>
    %150 = vector.broadcast %149 : vector<8x1xi32> to vector<8x512xi32>
    %151 = arith.cmpi sge, %65, %150 : vector<8x512xi32>
    %152 = vector.broadcast %81 : vector<1x512xi1> to vector<8x512xi1>
    %153 = arith.andi %151, %152 : vector<8x512xi1>
    %cst_45 = arith.constant 1.000000e+00 : f32
    %cst_46 = arith.constant 0.000000e+00 : f32
    %154 = vector.broadcast %cst_45 : f32 to vector<8x512xf32>
    %155 = vector.broadcast %cst_46 : f32 to vector<8x512xf32>
    %156 = arith.select %153, %154, %155 : vector<8x512xi1>, vector<8x512xf32>
    %cst_47 = arith.constant dense<0.000000e+00> : vector<8xf32>
    %157 = vector.multi_reduction <add>, %156, %cst_47 [1] : vector<8x512xf32> to vector<8xf32>
    %158 = vector.shape_cast %157 : vector<8xf32> to vector<8x1xf32>
    %cst_48 = arith.constant 3.200000e+01 : f32
    %159 = vector.broadcast %cst_48 : f32 to vector<8x1xf32>
    %160 = arith.cmpf oge, %158, %159 : vector<8x1xf32>
    %161 = arith.select %160, %149, %119 : vector<8x1xi1>, vector<8x1xi32>
    %c536870912_i32 = arith.constant 536870912 : i32
    %162 = vector.broadcast %c536870912_i32 : i32 to vector<8x1xi32>
    %163 = arith.ori %133, %162 : vector<8x1xi32>
    %164 = vector.broadcast %163 : vector<8x1xi32> to vector<8x512xi32>
    %165 = arith.cmpi sge, %65, %164 : vector<8x512xi32>
    %166 = vector.broadcast %71 : vector<1x512xi1> to vector<8x512xi1>
    %167 = arith.andi %165, %166 : vector<8x512xi1>
    %cst_49 = arith.constant 1.000000e+00 : f32
    %cst_50 = arith.constant 0.000000e+00 : f32
    %168 = vector.broadcast %cst_49 : f32 to vector<8x512xf32>
    %169 = vector.broadcast %cst_50 : f32 to vector<8x512xf32>
    %170 = arith.select %167, %168, %169 : vector<8x512xi1>, vector<8x512xf32>
    %cst_51 = arith.constant dense<0.000000e+00> : vector<8xf32>
    %171 = vector.multi_reduction <add>, %170, %cst_51 [1] : vector<8x512xf32> to vector<8xf32>
    %172 = vector.shape_cast %171 : vector<8xf32> to vector<8x1xf32>
    %cst_52 = arith.constant 9.600000e+01 : f32
    %173 = vector.broadcast %cst_52 : f32 to vector<8x1xf32>
    %174 = arith.cmpf oge, %172, %173 : vector<8x1xf32>
    %175 = arith.select %174, %163, %133 : vector<8x1xi1>, vector<8x1xi32>
    %c536870912_i32_53 = arith.constant 536870912 : i32
    %176 = vector.broadcast %c536870912_i32_53 : i32 to vector<8x1xi32>
    %177 = arith.ori %147, %176 : vector<8x1xi32>
    %178 = vector.broadcast %177 : vector<8x1xi32> to vector<8x512xi32>
    %179 = arith.cmpi sge, %65, %178 : vector<8x512xi32>
    %180 = vector.broadcast %76 : vector<1x512xi1> to vector<8x512xi1>
    %181 = arith.andi %179, %180 : vector<8x512xi1>
    %cst_54 = arith.constant 1.000000e+00 : f32
    %cst_55 = arith.constant 0.000000e+00 : f32
    %182 = vector.broadcast %cst_54 : f32 to vector<8x512xf32>
    %183 = vector.broadcast %cst_55 : f32 to vector<8x512xf32>
    %184 = arith.select %181, %182, %183 : vector<8x512xi1>, vector<8x512xf32>
    %cst_56 = arith.constant dense<0.000000e+00> : vector<8xf32>
    %185 = vector.multi_reduction <add>, %184, %cst_56 [1] : vector<8x512xf32> to vector<8xf32>
    %186 = vector.shape_cast %185 : vector<8xf32> to vector<8x1xf32>
    %cst_57 = arith.constant 1.280000e+02 : f32
    %187 = vector.broadcast %cst_57 : f32 to vector<8x1xf32>
    %188 = arith.cmpf oge, %186, %187 : vector<8x1xf32>
    %189 = arith.select %188, %177, %147 : vector<8x1xi1>, vector<8x1xi32>
    %c536870912_i32_58 = arith.constant 536870912 : i32
    %190 = vector.broadcast %c536870912_i32_58 : i32 to vector<8x1xi32>
    %191 = arith.ori %161, %190 : vector<8x1xi32>
    %192 = vector.broadcast %191 : vector<8x1xi32> to vector<8x512xi32>
    %193 = arith.cmpi sge, %65, %192 : vector<8x512xi32>
    %194 = vector.broadcast %81 : vector<1x512xi1> to vector<8x512xi1>
    %195 = arith.andi %193, %194 : vector<8x512xi1>
    %cst_59 = arith.constant 1.000000e+00 : f32
    %cst_60 = arith.constant 0.000000e+00 : f32
    %196 = vector.broadcast %cst_59 : f32 to vector<8x512xf32>
    %197 = vector.broadcast %cst_60 : f32 to vector<8x512xf32>
    %198 = arith.select %195, %196, %197 : vector<8x512xi1>, vector<8x512xf32>
    %cst_61 = arith.constant dense<0.000000e+00> : vector<8xf32>
    %199 = vector.multi_reduction <add>, %198, %cst_61 [1] : vector<8x512xf32> to vector<8xf32>
    %200 = vector.shape_cast %199 : vector<8xf32> to vector<8x1xf32>
    %cst_62 = arith.constant 3.200000e+01 : f32
    %201 = vector.broadcast %cst_62 : f32 to vector<8x1xf32>
    %202 = arith.cmpf oge, %200, %201 : vector<8x1xf32>
    %203 = arith.select %202, %191, %161 : vector<8x1xi1>, vector<8x1xi32>
    %c268435456_i32 = arith.constant 268435456 : i32
    %204 = vector.broadcast %c268435456_i32 : i32 to vector<8x1xi32>
    %205 = arith.ori %175, %204 : vector<8x1xi32>
    %206 = vector.broadcast %205 : vector<8x1xi32> to vector<8x512xi32>
    %207 = arith.cmpi sge, %65, %206 : vector<8x512xi32>
    %208 = vector.broadcast %71 : vector<1x512xi1> to vector<8x512xi1>
    %209 = arith.andi %207, %208 : vector<8x512xi1>
    %cst_63 = arith.constant 1.000000e+00 : f32
    %cst_64 = arith.constant 0.000000e+00 : f32
    %210 = vector.broadcast %cst_63 : f32 to vector<8x512xf32>
    %211 = vector.broadcast %cst_64 : f32 to vector<8x512xf32>
    %212 = arith.select %209, %210, %211 : vector<8x512xi1>, vector<8x512xf32>
    %cst_65 = arith.constant dense<0.000000e+00> : vector<8xf32>
    %213 = vector.multi_reduction <add>, %212, %cst_65 [1] : vector<8x512xf32> to vector<8xf32>
    %214 = vector.shape_cast %213 : vector<8xf32> to vector<8x1xf32>
    %cst_66 = arith.constant 9.600000e+01 : f32
    %215 = vector.broadcast %cst_66 : f32 to vector<8x1xf32>
    %216 = arith.cmpf oge, %214, %215 : vector<8x1xf32>
    %217 = arith.select %216, %205, %175 : vector<8x1xi1>, vector<8x1xi32>
    %c268435456_i32_67 = arith.constant 268435456 : i32
    %218 = vector.broadcast %c268435456_i32_67 : i32 to vector<8x1xi32>
    %219 = arith.ori %189, %218 : vector<8x1xi32>
    %220 = vector.broadcast %219 : vector<8x1xi32> to vector<8x512xi32>
    %221 = arith.cmpi sge, %65, %220 : vector<8x512xi32>
    %222 = vector.broadcast %76 : vector<1x512xi1> to vector<8x512xi1>
    %223 = arith.andi %221, %222 : vector<8x512xi1>
    %cst_68 = arith.constant 1.000000e+00 : f32
    %cst_69 = arith.constant 0.000000e+00 : f32
    %224 = vector.broadcast %cst_68 : f32 to vector<8x512xf32>
    %225 = vector.broadcast %cst_69 : f32 to vector<8x512xf32>
    %226 = arith.select %223, %224, %225 : vector<8x512xi1>, vector<8x512xf32>
    %cst_70 = arith.constant dense<0.000000e+00> : vector<8xf32>
    %227 = vector.multi_reduction <add>, %226, %cst_70 [1] : vector<8x512xf32> to vector<8xf32>
    %228 = vector.shape_cast %227 : vector<8xf32> to vector<8x1xf32>
    %cst_71 = arith.constant 1.280000e+02 : f32
    %229 = vector.broadcast %cst_71 : f32 to vector<8x1xf32>
    %230 = arith.cmpf oge, %228, %229 : vector<8x1xf32>
    %231 = arith.select %230, %219, %189 : vector<8x1xi1>, vector<8x1xi32>
    %c268435456_i32_72 = arith.constant 268435456 : i32
    %232 = vector.broadcast %c268435456_i32_72 : i32 to vector<8x1xi32>
    %233 = arith.ori %203, %232 : vector<8x1xi32>
    %234 = vector.broadcast %233 : vector<8x1xi32> to vector<8x512xi32>
    %235 = arith.cmpi sge, %65, %234 : vector<8x512xi32>
    %236 = vector.broadcast %81 : vector<1x512xi1> to vector<8x512xi1>
    %237 = arith.andi %235, %236 : vector<8x512xi1>
    %cst_73 = arith.constant 1.000000e+00 : f32
    %cst_74 = arith.constant 0.000000e+00 : f32
    %238 = vector.broadcast %cst_73 : f32 to vector<8x512xf32>
    %239 = vector.broadcast %cst_74 : f32 to vector<8x512xf32>
    %240 = arith.select %237, %238, %239 : vector<8x512xi1>, vector<8x512xf32>
    %cst_75 = arith.constant dense<0.000000e+00> : vector<8xf32>
    %241 = vector.multi_reduction <add>, %240, %cst_75 [1] : vector<8x512xf32> to vector<8xf32>
    %242 = vector.shape_cast %241 : vector<8xf32> to vector<8x1xf32>
    %cst_76 = arith.constant 3.200000e+01 : f32
    %243 = vector.broadcast %cst_76 : f32 to vector<8x1xf32>
    %244 = arith.cmpf oge, %242, %243 : vector<8x1xf32>
    %245 = arith.select %244, %233, %203 : vector<8x1xi1>, vector<8x1xi32>
    %c134217728_i32 = arith.constant 134217728 : i32
    %246 = vector.broadcast %c134217728_i32 : i32 to vector<8x1xi32>
    %247 = arith.ori %217, %246 : vector<8x1xi32>
    %248 = vector.broadcast %247 : vector<8x1xi32> to vector<8x512xi32>
    %249 = arith.cmpi sge, %65, %248 : vector<8x512xi32>
    %250 = vector.broadcast %71 : vector<1x512xi1> to vector<8x512xi1>
    %251 = arith.andi %249, %250 : vector<8x512xi1>
    %cst_77 = arith.constant 1.000000e+00 : f32
    %cst_78 = arith.constant 0.000000e+00 : f32
    %252 = vector.broadcast %cst_77 : f32 to vector<8x512xf32>
    %253 = vector.broadcast %cst_78 : f32 to vector<8x512xf32>
    %254 = arith.select %251, %252, %253 : vector<8x512xi1>, vector<8x512xf32>
    %cst_79 = arith.constant dense<0.000000e+00> : vector<8xf32>
    %255 = vector.multi_reduction <add>, %254, %cst_79 [1] : vector<8x512xf32> to vector<8xf32>
    %256 = vector.shape_cast %255 : vector<8xf32> to vector<8x1xf32>
    %cst_80 = arith.constant 9.600000e+01 : f32
    %257 = vector.broadcast %cst_80 : f32 to vector<8x1xf32>
    %258 = arith.cmpf oge, %256, %257 : vector<8x1xf32>
    %259 = arith.select %258, %247, %217 : vector<8x1xi1>, vector<8x1xi32>
    %c134217728_i32_81 = arith.constant 134217728 : i32
    %260 = vector.broadcast %c134217728_i32_81 : i32 to vector<8x1xi32>
    %261 = arith.ori %231, %260 : vector<8x1xi32>
    %262 = vector.broadcast %261 : vector<8x1xi32> to vector<8x512xi32>
    %263 = arith.cmpi sge, %65, %262 : vector<8x512xi32>
    %264 = vector.broadcast %76 : vector<1x512xi1> to vector<8x512xi1>
    %265 = arith.andi %263, %264 : vector<8x512xi1>
    %cst_82 = arith.constant 1.000000e+00 : f32
    %cst_83 = arith.constant 0.000000e+00 : f32
    %266 = vector.broadcast %cst_82 : f32 to vector<8x512xf32>
    %267 = vector.broadcast %cst_83 : f32 to vector<8x512xf32>
    %268 = arith.select %265, %266, %267 : vector<8x512xi1>, vector<8x512xf32>
    %cst_84 = arith.constant dense<0.000000e+00> : vector<8xf32>
    %269 = vector.multi_reduction <add>, %268, %cst_84 [1] : vector<8x512xf32> to vector<8xf32>
    %270 = vector.shape_cast %269 : vector<8xf32> to vector<8x1xf32>
    %cst_85 = arith.constant 1.280000e+02 : f32
    %271 = vector.broadcast %cst_85 : f32 to vector<8x1xf32>
    %272 = arith.cmpf oge, %270, %271 : vector<8x1xf32>
    %273 = arith.select %272, %261, %231 : vector<8x1xi1>, vector<8x1xi32>
    %c134217728_i32_86 = arith.constant 134217728 : i32
    %274 = vector.broadcast %c134217728_i32_86 : i32 to vector<8x1xi32>
    %275 = arith.ori %245, %274 : vector<8x1xi32>
    %276 = vector.broadcast %275 : vector<8x1xi32> to vector<8x512xi32>
    %277 = arith.cmpi sge, %65, %276 : vector<8x512xi32>
    %278 = vector.broadcast %81 : vector<1x512xi1> to vector<8x512xi1>
    %279 = arith.andi %277, %278 : vector<8x512xi1>
    %cst_87 = arith.constant 1.000000e+00 : f32
    %cst_88 = arith.constant 0.000000e+00 : f32
    %280 = vector.broadcast %cst_87 : f32 to vector<8x512xf32>
    %281 = vector.broadcast %cst_88 : f32 to vector<8x512xf32>
    %282 = arith.select %279, %280, %281 : vector<8x512xi1>, vector<8x512xf32>
    %cst_89 = arith.constant dense<0.000000e+00> : vector<8xf32>
    %283 = vector.multi_reduction <add>, %282, %cst_89 [1] : vector<8x512xf32> to vector<8xf32>
    %284 = vector.shape_cast %283 : vector<8xf32> to vector<8x1xf32>
    %cst_90 = arith.constant 3.200000e+01 : f32
    %285 = vector.broadcast %cst_90 : f32 to vector<8x1xf32>
    %286 = arith.cmpf oge, %284, %285 : vector<8x1xf32>
    %287 = arith.select %286, %275, %245 : vector<8x1xi1>, vector<8x1xi32>
    %c67108864_i32 = arith.constant 67108864 : i32
    %288 = vector.broadcast %c67108864_i32 : i32 to vector<8x1xi32>
    %289 = arith.ori %259, %288 : vector<8x1xi32>
    %290 = vector.broadcast %289 : vector<8x1xi32> to vector<8x512xi32>
    %291 = arith.cmpi sge, %65, %290 : vector<8x512xi32>
    %292 = vector.broadcast %71 : vector<1x512xi1> to vector<8x512xi1>
    %293 = arith.andi %291, %292 : vector<8x512xi1>
    %cst_91 = arith.constant 1.000000e+00 : f32
    %cst_92 = arith.constant 0.000000e+00 : f32
    %294 = vector.broadcast %cst_91 : f32 to vector<8x512xf32>
    %295 = vector.broadcast %cst_92 : f32 to vector<8x512xf32>
    %296 = arith.select %293, %294, %295 : vector<8x512xi1>, vector<8x512xf32>
    %cst_93 = arith.constant dense<0.000000e+00> : vector<8xf32>
    %297 = vector.multi_reduction <add>, %296, %cst_93 [1] : vector<8x512xf32> to vector<8xf32>
    %298 = vector.shape_cast %297 : vector<8xf32> to vector<8x1xf32>
    %cst_94 = arith.constant 9.600000e+01 : f32
    %299 = vector.broadcast %cst_94 : f32 to vector<8x1xf32>
    %300 = arith.cmpf oge, %298, %299 : vector<8x1xf32>
    %301 = arith.select %300, %289, %259 : vector<8x1xi1>, vector<8x1xi32>
    %c67108864_i32_95 = arith.constant 67108864 : i32
    %302 = vector.broadcast %c67108864_i32_95 : i32 to vector<8x1xi32>
    %303 = arith.ori %273, %302 : vector<8x1xi32>
    %304 = vector.broadcast %303 : vector<8x1xi32> to vector<8x512xi32>
    %305 = arith.cmpi sge, %65, %304 : vector<8x512xi32>
    %306 = vector.broadcast %76 : vector<1x512xi1> to vector<8x512xi1>
    %307 = arith.andi %305, %306 : vector<8x512xi1>
    %cst_96 = arith.constant 1.000000e+00 : f32
    %cst_97 = arith.constant 0.000000e+00 : f32
    %308 = vector.broadcast %cst_96 : f32 to vector<8x512xf32>
    %309 = vector.broadcast %cst_97 : f32 to vector<8x512xf32>
    %310 = arith.select %307, %308, %309 : vector<8x512xi1>, vector<8x512xf32>
    %cst_98 = arith.constant dense<0.000000e+00> : vector<8xf32>
    %311 = vector.multi_reduction <add>, %310, %cst_98 [1] : vector<8x512xf32> to vector<8xf32>
    %312 = vector.shape_cast %311 : vector<8xf32> to vector<8x1xf32>
    %cst_99 = arith.constant 1.280000e+02 : f32
    %313 = vector.broadcast %cst_99 : f32 to vector<8x1xf32>
    %314 = arith.cmpf oge, %312, %313 : vector<8x1xf32>
    %315 = arith.select %314, %303, %273 : vector<8x1xi1>, vector<8x1xi32>
    %c67108864_i32_100 = arith.constant 67108864 : i32
    %316 = vector.broadcast %c67108864_i32_100 : i32 to vector<8x1xi32>
    %317 = arith.ori %287, %316 : vector<8x1xi32>
    %318 = vector.broadcast %317 : vector<8x1xi32> to vector<8x512xi32>
    %319 = arith.cmpi sge, %65, %318 : vector<8x512xi32>
    %320 = vector.broadcast %81 : vector<1x512xi1> to vector<8x512xi1>
    %321 = arith.andi %319, %320 : vector<8x512xi1>
    %cst_101 = arith.constant 1.000000e+00 : f32
    %cst_102 = arith.constant 0.000000e+00 : f32
    %322 = vector.broadcast %cst_101 : f32 to vector<8x512xf32>
    %323 = vector.broadcast %cst_102 : f32 to vector<8x512xf32>
    %324 = arith.select %321, %322, %323 : vector<8x512xi1>, vector<8x512xf32>
    %cst_103 = arith.constant dense<0.000000e+00> : vector<8xf32>
    %325 = vector.multi_reduction <add>, %324, %cst_103 [1] : vector<8x512xf32> to vector<8xf32>
    %326 = vector.shape_cast %325 : vector<8xf32> to vector<8x1xf32>
    %cst_104 = arith.constant 3.200000e+01 : f32
    %327 = vector.broadcast %cst_104 : f32 to vector<8x1xf32>
    %328 = arith.cmpf oge, %326, %327 : vector<8x1xf32>
    %329 = arith.select %328, %317, %287 : vector<8x1xi1>, vector<8x1xi32>
    %c33554432_i32 = arith.constant 33554432 : i32
    %330 = vector.broadcast %c33554432_i32 : i32 to vector<8x1xi32>
    %331 = arith.ori %301, %330 : vector<8x1xi32>
    %332 = vector.broadcast %331 : vector<8x1xi32> to vector<8x512xi32>
    %333 = arith.cmpi sge, %65, %332 : vector<8x512xi32>
    %334 = vector.broadcast %71 : vector<1x512xi1> to vector<8x512xi1>
    %335 = arith.andi %333, %334 : vector<8x512xi1>
    %cst_105 = arith.constant 1.000000e+00 : f32
    %cst_106 = arith.constant 0.000000e+00 : f32
    %336 = vector.broadcast %cst_105 : f32 to vector<8x512xf32>
    %337 = vector.broadcast %cst_106 : f32 to vector<8x512xf32>
    %338 = arith.select %335, %336, %337 : vector<8x512xi1>, vector<8x512xf32>
    %cst_107 = arith.constant dense<0.000000e+00> : vector<8xf32>
    %339 = vector.multi_reduction <add>, %338, %cst_107 [1] : vector<8x512xf32> to vector<8xf32>
    %340 = vector.shape_cast %339 : vector<8xf32> to vector<8x1xf32>
    %cst_108 = arith.constant 9.600000e+01 : f32
    %341 = vector.broadcast %cst_108 : f32 to vector<8x1xf32>
    %342 = arith.cmpf oge, %340, %341 : vector<8x1xf32>
    %343 = arith.select %342, %331, %301 : vector<8x1xi1>, vector<8x1xi32>
    %c33554432_i32_109 = arith.constant 33554432 : i32
    %344 = vector.broadcast %c33554432_i32_109 : i32 to vector<8x1xi32>
    %345 = arith.ori %315, %344 : vector<8x1xi32>
    %346 = vector.broadcast %345 : vector<8x1xi32> to vector<8x512xi32>
    %347 = arith.cmpi sge, %65, %346 : vector<8x512xi32>
    %348 = vector.broadcast %76 : vector<1x512xi1> to vector<8x512xi1>
    %349 = arith.andi %347, %348 : vector<8x512xi1>
    %cst_110 = arith.constant 1.000000e+00 : f32
    %cst_111 = arith.constant 0.000000e+00 : f32
    %350 = vector.broadcast %cst_110 : f32 to vector<8x512xf32>
    %351 = vector.broadcast %cst_111 : f32 to vector<8x512xf32>
    %352 = arith.select %349, %350, %351 : vector<8x512xi1>, vector<8x512xf32>
    %cst_112 = arith.constant dense<0.000000e+00> : vector<8xf32>
    %353 = vector.multi_reduction <add>, %352, %cst_112 [1] : vector<8x512xf32> to vector<8xf32>
    %354 = vector.shape_cast %353 : vector<8xf32> to vector<8x1xf32>
    %cst_113 = arith.constant 1.280000e+02 : f32
    %355 = vector.broadcast %cst_113 : f32 to vector<8x1xf32>
    %356 = arith.cmpf oge, %354, %355 : vector<8x1xf32>
    %357 = arith.select %356, %345, %315 : vector<8x1xi1>, vector<8x1xi32>
    %c33554432_i32_114 = arith.constant 33554432 : i32
    %358 = vector.broadcast %c33554432_i32_114 : i32 to vector<8x1xi32>
    %359 = arith.ori %329, %358 : vector<8x1xi32>
    %360 = vector.broadcast %359 : vector<8x1xi32> to vector<8x512xi32>
    %361 = arith.cmpi sge, %65, %360 : vector<8x512xi32>
    %362 = vector.broadcast %81 : vector<1x512xi1> to vector<8x512xi1>
    %363 = arith.andi %361, %362 : vector<8x512xi1>
    %cst_115 = arith.constant 1.000000e+00 : f32
    %cst_116 = arith.constant 0.000000e+00 : f32
    %364 = vector.broadcast %cst_115 : f32 to vector<8x512xf32>
    %365 = vector.broadcast %cst_116 : f32 to vector<8x512xf32>
    %366 = arith.select %363, %364, %365 : vector<8x512xi1>, vector<8x512xf32>
    %cst_117 = arith.constant dense<0.000000e+00> : vector<8xf32>
    %367 = vector.multi_reduction <add>, %366, %cst_117 [1] : vector<8x512xf32> to vector<8xf32>
    %368 = vector.shape_cast %367 : vector<8xf32> to vector<8x1xf32>
    %cst_118 = arith.constant 3.200000e+01 : f32
    %369 = vector.broadcast %cst_118 : f32 to vector<8x1xf32>
    %370 = arith.cmpf oge, %368, %369 : vector<8x1xf32>
    %371 = arith.select %370, %359, %329 : vector<8x1xi1>, vector<8x1xi32>
    %c16777216_i32 = arith.constant 16777216 : i32
    %372 = vector.broadcast %c16777216_i32 : i32 to vector<8x1xi32>
    %373 = arith.ori %343, %372 : vector<8x1xi32>
    %374 = vector.broadcast %373 : vector<8x1xi32> to vector<8x512xi32>
    %375 = arith.cmpi sge, %65, %374 : vector<8x512xi32>
    %376 = vector.broadcast %71 : vector<1x512xi1> to vector<8x512xi1>
    %377 = arith.andi %375, %376 : vector<8x512xi1>
    %cst_119 = arith.constant 1.000000e+00 : f32
    %cst_120 = arith.constant 0.000000e+00 : f32
    %378 = vector.broadcast %cst_119 : f32 to vector<8x512xf32>
    %379 = vector.broadcast %cst_120 : f32 to vector<8x512xf32>
    %380 = arith.select %377, %378, %379 : vector<8x512xi1>, vector<8x512xf32>
    %cst_121 = arith.constant dense<0.000000e+00> : vector<8xf32>
    %381 = vector.multi_reduction <add>, %380, %cst_121 [1] : vector<8x512xf32> to vector<8xf32>
    %382 = vector.shape_cast %381 : vector<8xf32> to vector<8x1xf32>
    %cst_122 = arith.constant 9.600000e+01 : f32
    %383 = vector.broadcast %cst_122 : f32 to vector<8x1xf32>
    %384 = arith.cmpf oge, %382, %383 : vector<8x1xf32>
    %385 = arith.select %384, %373, %343 : vector<8x1xi1>, vector<8x1xi32>
    %c16777216_i32_123 = arith.constant 16777216 : i32
    %386 = vector.broadcast %c16777216_i32_123 : i32 to vector<8x1xi32>
    %387 = arith.ori %357, %386 : vector<8x1xi32>
    %388 = vector.broadcast %387 : vector<8x1xi32> to vector<8x512xi32>
    %389 = arith.cmpi sge, %65, %388 : vector<8x512xi32>
    %390 = vector.broadcast %76 : vector<1x512xi1> to vector<8x512xi1>
    %391 = arith.andi %389, %390 : vector<8x512xi1>
    %cst_124 = arith.constant 1.000000e+00 : f32
    %cst_125 = arith.constant 0.000000e+00 : f32
    %392 = vector.broadcast %cst_124 : f32 to vector<8x512xf32>
    %393 = vector.broadcast %cst_125 : f32 to vector<8x512xf32>
    %394 = arith.select %391, %392, %393 : vector<8x512xi1>, vector<8x512xf32>
    %cst_126 = arith.constant dense<0.000000e+00> : vector<8xf32>
    %395 = vector.multi_reduction <add>, %394, %cst_126 [1] : vector<8x512xf32> to vector<8xf32>
    %396 = vector.shape_cast %395 : vector<8xf32> to vector<8x1xf32>
    %cst_127 = arith.constant 1.280000e+02 : f32
    %397 = vector.broadcast %cst_127 : f32 to vector<8x1xf32>
    %398 = arith.cmpf oge, %396, %397 : vector<8x1xf32>
    %399 = arith.select %398, %387, %357 : vector<8x1xi1>, vector<8x1xi32>
    %c16777216_i32_128 = arith.constant 16777216 : i32
    %400 = vector.broadcast %c16777216_i32_128 : i32 to vector<8x1xi32>
    %401 = arith.ori %371, %400 : vector<8x1xi32>
    %402 = vector.broadcast %401 : vector<8x1xi32> to vector<8x512xi32>
    %403 = arith.cmpi sge, %65, %402 : vector<8x512xi32>
    %404 = vector.broadcast %81 : vector<1x512xi1> to vector<8x512xi1>
    %405 = arith.andi %403, %404 : vector<8x512xi1>
    %cst_129 = arith.constant 1.000000e+00 : f32
    %cst_130 = arith.constant 0.000000e+00 : f32
    %406 = vector.broadcast %cst_129 : f32 to vector<8x512xf32>
    %407 = vector.broadcast %cst_130 : f32 to vector<8x512xf32>
    %408 = arith.select %405, %406, %407 : vector<8x512xi1>, vector<8x512xf32>
    %cst_131 = arith.constant dense<0.000000e+00> : vector<8xf32>
    %409 = vector.multi_reduction <add>, %408, %cst_131 [1] : vector<8x512xf32> to vector<8xf32>
    %410 = vector.shape_cast %409 : vector<8xf32> to vector<8x1xf32>
    %cst_132 = arith.constant 3.200000e+01 : f32
    %411 = vector.broadcast %cst_132 : f32 to vector<8x1xf32>
    %412 = arith.cmpf oge, %410, %411 : vector<8x1xf32>
    %413 = arith.select %412, %401, %371 : vector<8x1xi1>, vector<8x1xi32>
    %c8388608_i32 = arith.constant 8388608 : i32
    %414 = vector.broadcast %c8388608_i32 : i32 to vector<8x1xi32>
    %415 = arith.ori %385, %414 : vector<8x1xi32>
    %416 = vector.broadcast %415 : vector<8x1xi32> to vector<8x512xi32>
    %417 = arith.cmpi sge, %65, %416 : vector<8x512xi32>
    %418 = vector.broadcast %71 : vector<1x512xi1> to vector<8x512xi1>
    %419 = arith.andi %417, %418 : vector<8x512xi1>
    %cst_133 = arith.constant 1.000000e+00 : f32
    %cst_134 = arith.constant 0.000000e+00 : f32
    %420 = vector.broadcast %cst_133 : f32 to vector<8x512xf32>
    %421 = vector.broadcast %cst_134 : f32 to vector<8x512xf32>
    %422 = arith.select %419, %420, %421 : vector<8x512xi1>, vector<8x512xf32>
    %cst_135 = arith.constant dense<0.000000e+00> : vector<8xf32>
    %423 = vector.multi_reduction <add>, %422, %cst_135 [1] : vector<8x512xf32> to vector<8xf32>
    %424 = vector.shape_cast %423 : vector<8xf32> to vector<8x1xf32>
    %cst_136 = arith.constant 9.600000e+01 : f32
    %425 = vector.broadcast %cst_136 : f32 to vector<8x1xf32>
    %426 = arith.cmpf oge, %424, %425 : vector<8x1xf32>
    %427 = arith.select %426, %415, %385 : vector<8x1xi1>, vector<8x1xi32>
    %c8388608_i32_137 = arith.constant 8388608 : i32
    %428 = vector.broadcast %c8388608_i32_137 : i32 to vector<8x1xi32>
    %429 = arith.ori %399, %428 : vector<8x1xi32>
    %430 = vector.broadcast %429 : vector<8x1xi32> to vector<8x512xi32>
    %431 = arith.cmpi sge, %65, %430 : vector<8x512xi32>
    %432 = vector.broadcast %76 : vector<1x512xi1> to vector<8x512xi1>
    %433 = arith.andi %431, %432 : vector<8x512xi1>
    %cst_138 = arith.constant 1.000000e+00 : f32
    %cst_139 = arith.constant 0.000000e+00 : f32
    %434 = vector.broadcast %cst_138 : f32 to vector<8x512xf32>
    %435 = vector.broadcast %cst_139 : f32 to vector<8x512xf32>
    %436 = arith.select %433, %434, %435 : vector<8x512xi1>, vector<8x512xf32>
    %cst_140 = arith.constant dense<0.000000e+00> : vector<8xf32>
    %437 = vector.multi_reduction <add>, %436, %cst_140 [1] : vector<8x512xf32> to vector<8xf32>
    %438 = vector.shape_cast %437 : vector<8xf32> to vector<8x1xf32>
    %cst_141 = arith.constant 1.280000e+02 : f32
    %439 = vector.broadcast %cst_141 : f32 to vector<8x1xf32>
    %440 = arith.cmpf oge, %438, %439 : vector<8x1xf32>
    %441 = arith.select %440, %429, %399 : vector<8x1xi1>, vector<8x1xi32>
    %c8388608_i32_142 = arith.constant 8388608 : i32
    %442 = vector.broadcast %c8388608_i32_142 : i32 to vector<8x1xi32>
    %443 = arith.ori %413, %442 : vector<8x1xi32>
    %444 = vector.broadcast %443 : vector<8x1xi32> to vector<8x512xi32>
    %445 = arith.cmpi sge, %65, %444 : vector<8x512xi32>
    %446 = vector.broadcast %81 : vector<1x512xi1> to vector<8x512xi1>
    %447 = arith.andi %445, %446 : vector<8x512xi1>
    %cst_143 = arith.constant 1.000000e+00 : f32
    %cst_144 = arith.constant 0.000000e+00 : f32
    %448 = vector.broadcast %cst_143 : f32 to vector<8x512xf32>
    %449 = vector.broadcast %cst_144 : f32 to vector<8x512xf32>
    %450 = arith.select %447, %448, %449 : vector<8x512xi1>, vector<8x512xf32>
    %cst_145 = arith.constant dense<0.000000e+00> : vector<8xf32>
    %451 = vector.multi_reduction <add>, %450, %cst_145 [1] : vector<8x512xf32> to vector<8xf32>
    %452 = vector.shape_cast %451 : vector<8xf32> to vector<8x1xf32>
    %cst_146 = arith.constant 3.200000e+01 : f32
    %453 = vector.broadcast %cst_146 : f32 to vector<8x1xf32>
    %454 = arith.cmpf oge, %452, %453 : vector<8x1xf32>
    %455 = arith.select %454, %443, %413 : vector<8x1xi1>, vector<8x1xi32>
    %c4194304_i32 = arith.constant 4194304 : i32
    %456 = vector.broadcast %c4194304_i32 : i32 to vector<8x1xi32>
    %457 = arith.ori %427, %456 : vector<8x1xi32>
    %458 = vector.broadcast %457 : vector<8x1xi32> to vector<8x512xi32>
    %459 = arith.cmpi sge, %65, %458 : vector<8x512xi32>
    %460 = vector.broadcast %71 : vector<1x512xi1> to vector<8x512xi1>
    %461 = arith.andi %459, %460 : vector<8x512xi1>
    %cst_147 = arith.constant 1.000000e+00 : f32
    %cst_148 = arith.constant 0.000000e+00 : f32
    %462 = vector.broadcast %cst_147 : f32 to vector<8x512xf32>
    %463 = vector.broadcast %cst_148 : f32 to vector<8x512xf32>
    %464 = arith.select %461, %462, %463 : vector<8x512xi1>, vector<8x512xf32>
    %cst_149 = arith.constant dense<0.000000e+00> : vector<8xf32>
    %465 = vector.multi_reduction <add>, %464, %cst_149 [1] : vector<8x512xf32> to vector<8xf32>
    %466 = vector.shape_cast %465 : vector<8xf32> to vector<8x1xf32>
    %cst_150 = arith.constant 9.600000e+01 : f32
    %467 = vector.broadcast %cst_150 : f32 to vector<8x1xf32>
    %468 = arith.cmpf oge, %466, %467 : vector<8x1xf32>
    %469 = arith.select %468, %457, %427 : vector<8x1xi1>, vector<8x1xi32>
    %c4194304_i32_151 = arith.constant 4194304 : i32
    %470 = vector.broadcast %c4194304_i32_151 : i32 to vector<8x1xi32>
    %471 = arith.ori %441, %470 : vector<8x1xi32>
    %472 = vector.broadcast %471 : vector<8x1xi32> to vector<8x512xi32>
    %473 = arith.cmpi sge, %65, %472 : vector<8x512xi32>
    %474 = vector.broadcast %76 : vector<1x512xi1> to vector<8x512xi1>
    %475 = arith.andi %473, %474 : vector<8x512xi1>
    %cst_152 = arith.constant 1.000000e+00 : f32
    %cst_153 = arith.constant 0.000000e+00 : f32
    %476 = vector.broadcast %cst_152 : f32 to vector<8x512xf32>
    %477 = vector.broadcast %cst_153 : f32 to vector<8x512xf32>
    %478 = arith.select %475, %476, %477 : vector<8x512xi1>, vector<8x512xf32>
    %cst_154 = arith.constant dense<0.000000e+00> : vector<8xf32>
    %479 = vector.multi_reduction <add>, %478, %cst_154 [1] : vector<8x512xf32> to vector<8xf32>
    %480 = vector.shape_cast %479 : vector<8xf32> to vector<8x1xf32>
    %cst_155 = arith.constant 1.280000e+02 : f32
    %481 = vector.broadcast %cst_155 : f32 to vector<8x1xf32>
    %482 = arith.cmpf oge, %480, %481 : vector<8x1xf32>
    %483 = arith.select %482, %471, %441 : vector<8x1xi1>, vector<8x1xi32>
    %c4194304_i32_156 = arith.constant 4194304 : i32
    %484 = vector.broadcast %c4194304_i32_156 : i32 to vector<8x1xi32>
    %485 = arith.ori %455, %484 : vector<8x1xi32>
    %486 = vector.broadcast %485 : vector<8x1xi32> to vector<8x512xi32>
    %487 = arith.cmpi sge, %65, %486 : vector<8x512xi32>
    %488 = vector.broadcast %81 : vector<1x512xi1> to vector<8x512xi1>
    %489 = arith.andi %487, %488 : vector<8x512xi1>
    %cst_157 = arith.constant 1.000000e+00 : f32
    %cst_158 = arith.constant 0.000000e+00 : f32
    %490 = vector.broadcast %cst_157 : f32 to vector<8x512xf32>
    %491 = vector.broadcast %cst_158 : f32 to vector<8x512xf32>
    %492 = arith.select %489, %490, %491 : vector<8x512xi1>, vector<8x512xf32>
    %cst_159 = arith.constant dense<0.000000e+00> : vector<8xf32>
    %493 = vector.multi_reduction <add>, %492, %cst_159 [1] : vector<8x512xf32> to vector<8xf32>
    %494 = vector.shape_cast %493 : vector<8xf32> to vector<8x1xf32>
    %cst_160 = arith.constant 3.200000e+01 : f32
    %495 = vector.broadcast %cst_160 : f32 to vector<8x1xf32>
    %496 = arith.cmpf oge, %494, %495 : vector<8x1xf32>
    %497 = arith.select %496, %485, %455 : vector<8x1xi1>, vector<8x1xi32>
    %c2097152_i32 = arith.constant 2097152 : i32
    %498 = vector.broadcast %c2097152_i32 : i32 to vector<8x1xi32>
    %499 = arith.ori %469, %498 : vector<8x1xi32>
    %500 = vector.broadcast %499 : vector<8x1xi32> to vector<8x512xi32>
    %501 = arith.cmpi sge, %65, %500 : vector<8x512xi32>
    %502 = vector.broadcast %71 : vector<1x512xi1> to vector<8x512xi1>
    %503 = arith.andi %501, %502 : vector<8x512xi1>
    %cst_161 = arith.constant 1.000000e+00 : f32
    %cst_162 = arith.constant 0.000000e+00 : f32
    %504 = vector.broadcast %cst_161 : f32 to vector<8x512xf32>
    %505 = vector.broadcast %cst_162 : f32 to vector<8x512xf32>
    %506 = arith.select %503, %504, %505 : vector<8x512xi1>, vector<8x512xf32>
    %cst_163 = arith.constant dense<0.000000e+00> : vector<8xf32>
    %507 = vector.multi_reduction <add>, %506, %cst_163 [1] : vector<8x512xf32> to vector<8xf32>
    %508 = vector.shape_cast %507 : vector<8xf32> to vector<8x1xf32>
    %cst_164 = arith.constant 9.600000e+01 : f32
    %509 = vector.broadcast %cst_164 : f32 to vector<8x1xf32>
    %510 = arith.cmpf oge, %508, %509 : vector<8x1xf32>
    %511 = arith.select %510, %499, %469 : vector<8x1xi1>, vector<8x1xi32>
    %c2097152_i32_165 = arith.constant 2097152 : i32
    %512 = vector.broadcast %c2097152_i32_165 : i32 to vector<8x1xi32>
    %513 = arith.ori %483, %512 : vector<8x1xi32>
    %514 = vector.broadcast %513 : vector<8x1xi32> to vector<8x512xi32>
    %515 = arith.cmpi sge, %65, %514 : vector<8x512xi32>
    %516 = vector.broadcast %76 : vector<1x512xi1> to vector<8x512xi1>
    %517 = arith.andi %515, %516 : vector<8x512xi1>
    %cst_166 = arith.constant 1.000000e+00 : f32
    %cst_167 = arith.constant 0.000000e+00 : f32
    %518 = vector.broadcast %cst_166 : f32 to vector<8x512xf32>
    %519 = vector.broadcast %cst_167 : f32 to vector<8x512xf32>
    %520 = arith.select %517, %518, %519 : vector<8x512xi1>, vector<8x512xf32>
    %cst_168 = arith.constant dense<0.000000e+00> : vector<8xf32>
    %521 = vector.multi_reduction <add>, %520, %cst_168 [1] : vector<8x512xf32> to vector<8xf32>
    %522 = vector.shape_cast %521 : vector<8xf32> to vector<8x1xf32>
    %cst_169 = arith.constant 1.280000e+02 : f32
    %523 = vector.broadcast %cst_169 : f32 to vector<8x1xf32>
    %524 = arith.cmpf oge, %522, %523 : vector<8x1xf32>
    %525 = arith.select %524, %513, %483 : vector<8x1xi1>, vector<8x1xi32>
    %c2097152_i32_170 = arith.constant 2097152 : i32
    %526 = vector.broadcast %c2097152_i32_170 : i32 to vector<8x1xi32>
    %527 = arith.ori %497, %526 : vector<8x1xi32>
    %528 = vector.broadcast %527 : vector<8x1xi32> to vector<8x512xi32>
    %529 = arith.cmpi sge, %65, %528 : vector<8x512xi32>
    %530 = vector.broadcast %81 : vector<1x512xi1> to vector<8x512xi1>
    %531 = arith.andi %529, %530 : vector<8x512xi1>
    %cst_171 = arith.constant 1.000000e+00 : f32
    %cst_172 = arith.constant 0.000000e+00 : f32
    %532 = vector.broadcast %cst_171 : f32 to vector<8x512xf32>
    %533 = vector.broadcast %cst_172 : f32 to vector<8x512xf32>
    %534 = arith.select %531, %532, %533 : vector<8x512xi1>, vector<8x512xf32>
    %cst_173 = arith.constant dense<0.000000e+00> : vector<8xf32>
    %535 = vector.multi_reduction <add>, %534, %cst_173 [1] : vector<8x512xf32> to vector<8xf32>
    %536 = vector.shape_cast %535 : vector<8xf32> to vector<8x1xf32>
    %cst_174 = arith.constant 3.200000e+01 : f32
    %537 = vector.broadcast %cst_174 : f32 to vector<8x1xf32>
    %538 = arith.cmpf oge, %536, %537 : vector<8x1xf32>
    %539 = arith.select %538, %527, %497 : vector<8x1xi1>, vector<8x1xi32>
    %c1048576_i32 = arith.constant 1048576 : i32
    %540 = vector.broadcast %c1048576_i32 : i32 to vector<8x1xi32>
    %541 = arith.ori %511, %540 : vector<8x1xi32>
    %542 = vector.broadcast %541 : vector<8x1xi32> to vector<8x512xi32>
    %543 = arith.cmpi sge, %65, %542 : vector<8x512xi32>
    %544 = vector.broadcast %71 : vector<1x512xi1> to vector<8x512xi1>
    %545 = arith.andi %543, %544 : vector<8x512xi1>
    %cst_175 = arith.constant 1.000000e+00 : f32
    %cst_176 = arith.constant 0.000000e+00 : f32
    %546 = vector.broadcast %cst_175 : f32 to vector<8x512xf32>
    %547 = vector.broadcast %cst_176 : f32 to vector<8x512xf32>
    %548 = arith.select %545, %546, %547 : vector<8x512xi1>, vector<8x512xf32>
    %cst_177 = arith.constant dense<0.000000e+00> : vector<8xf32>
    %549 = vector.multi_reduction <add>, %548, %cst_177 [1] : vector<8x512xf32> to vector<8xf32>
    %550 = vector.shape_cast %549 : vector<8xf32> to vector<8x1xf32>
    %cst_178 = arith.constant 9.600000e+01 : f32
    %551 = vector.broadcast %cst_178 : f32 to vector<8x1xf32>
    %552 = arith.cmpf oge, %550, %551 : vector<8x1xf32>
    %553 = arith.select %552, %541, %511 : vector<8x1xi1>, vector<8x1xi32>
    %c1048576_i32_179 = arith.constant 1048576 : i32
    %554 = vector.broadcast %c1048576_i32_179 : i32 to vector<8x1xi32>
    %555 = arith.ori %525, %554 : vector<8x1xi32>
    %556 = vector.broadcast %555 : vector<8x1xi32> to vector<8x512xi32>
    %557 = arith.cmpi sge, %65, %556 : vector<8x512xi32>
    %558 = vector.broadcast %76 : vector<1x512xi1> to vector<8x512xi1>
    %559 = arith.andi %557, %558 : vector<8x512xi1>
    %cst_180 = arith.constant 1.000000e+00 : f32
    %cst_181 = arith.constant 0.000000e+00 : f32
    %560 = vector.broadcast %cst_180 : f32 to vector<8x512xf32>
    %561 = vector.broadcast %cst_181 : f32 to vector<8x512xf32>
    %562 = arith.select %559, %560, %561 : vector<8x512xi1>, vector<8x512xf32>
    %cst_182 = arith.constant dense<0.000000e+00> : vector<8xf32>
    %563 = vector.multi_reduction <add>, %562, %cst_182 [1] : vector<8x512xf32> to vector<8xf32>
    %564 = vector.shape_cast %563 : vector<8xf32> to vector<8x1xf32>
    %cst_183 = arith.constant 1.280000e+02 : f32
    %565 = vector.broadcast %cst_183 : f32 to vector<8x1xf32>
    %566 = arith.cmpf oge, %564, %565 : vector<8x1xf32>
    %567 = arith.select %566, %555, %525 : vector<8x1xi1>, vector<8x1xi32>
    %c1048576_i32_184 = arith.constant 1048576 : i32
    %568 = vector.broadcast %c1048576_i32_184 : i32 to vector<8x1xi32>
    %569 = arith.ori %539, %568 : vector<8x1xi32>
    %570 = vector.broadcast %569 : vector<8x1xi32> to vector<8x512xi32>
    %571 = arith.cmpi sge, %65, %570 : vector<8x512xi32>
    %572 = vector.broadcast %81 : vector<1x512xi1> to vector<8x512xi1>
    %573 = arith.andi %571, %572 : vector<8x512xi1>
    %cst_185 = arith.constant 1.000000e+00 : f32
    %cst_186 = arith.constant 0.000000e+00 : f32
    %574 = vector.broadcast %cst_185 : f32 to vector<8x512xf32>
    %575 = vector.broadcast %cst_186 : f32 to vector<8x512xf32>
    %576 = arith.select %573, %574, %575 : vector<8x512xi1>, vector<8x512xf32>
    %cst_187 = arith.constant dense<0.000000e+00> : vector<8xf32>
    %577 = vector.multi_reduction <add>, %576, %cst_187 [1] : vector<8x512xf32> to vector<8xf32>
    %578 = vector.shape_cast %577 : vector<8xf32> to vector<8x1xf32>
    %cst_188 = arith.constant 3.200000e+01 : f32
    %579 = vector.broadcast %cst_188 : f32 to vector<8x1xf32>
    %580 = arith.cmpf oge, %578, %579 : vector<8x1xf32>
    %581 = arith.select %580, %569, %539 : vector<8x1xi1>, vector<8x1xi32>
    %c524288_i32 = arith.constant 524288 : i32
    %582 = vector.broadcast %c524288_i32 : i32 to vector<8x1xi32>
    %583 = arith.ori %553, %582 : vector<8x1xi32>
    %584 = vector.broadcast %583 : vector<8x1xi32> to vector<8x512xi32>
    %585 = arith.cmpi sge, %65, %584 : vector<8x512xi32>
    %586 = vector.broadcast %71 : vector<1x512xi1> to vector<8x512xi1>
    %587 = arith.andi %585, %586 : vector<8x512xi1>
    %cst_189 = arith.constant 1.000000e+00 : f32
    %cst_190 = arith.constant 0.000000e+00 : f32
    %588 = vector.broadcast %cst_189 : f32 to vector<8x512xf32>
    %589 = vector.broadcast %cst_190 : f32 to vector<8x512xf32>
    %590 = arith.select %587, %588, %589 : vector<8x512xi1>, vector<8x512xf32>
    %cst_191 = arith.constant dense<0.000000e+00> : vector<8xf32>
    %591 = vector.multi_reduction <add>, %590, %cst_191 [1] : vector<8x512xf32> to vector<8xf32>
    %592 = vector.shape_cast %591 : vector<8xf32> to vector<8x1xf32>
    %cst_192 = arith.constant 9.600000e+01 : f32
    %593 = vector.broadcast %cst_192 : f32 to vector<8x1xf32>
    %594 = arith.cmpf oge, %592, %593 : vector<8x1xf32>
    %595 = arith.select %594, %583, %553 : vector<8x1xi1>, vector<8x1xi32>
    %c524288_i32_193 = arith.constant 524288 : i32
    %596 = vector.broadcast %c524288_i32_193 : i32 to vector<8x1xi32>
    %597 = arith.ori %567, %596 : vector<8x1xi32>
    %598 = vector.broadcast %597 : vector<8x1xi32> to vector<8x512xi32>
    %599 = arith.cmpi sge, %65, %598 : vector<8x512xi32>
    %600 = vector.broadcast %76 : vector<1x512xi1> to vector<8x512xi1>
    %601 = arith.andi %599, %600 : vector<8x512xi1>
    %cst_194 = arith.constant 1.000000e+00 : f32
    %cst_195 = arith.constant 0.000000e+00 : f32
    %602 = vector.broadcast %cst_194 : f32 to vector<8x512xf32>
    %603 = vector.broadcast %cst_195 : f32 to vector<8x512xf32>
    %604 = arith.select %601, %602, %603 : vector<8x512xi1>, vector<8x512xf32>
    %cst_196 = arith.constant dense<0.000000e+00> : vector<8xf32>
    %605 = vector.multi_reduction <add>, %604, %cst_196 [1] : vector<8x512xf32> to vector<8xf32>
    %606 = vector.shape_cast %605 : vector<8xf32> to vector<8x1xf32>
    %cst_197 = arith.constant 1.280000e+02 : f32
    %607 = vector.broadcast %cst_197 : f32 to vector<8x1xf32>
    %608 = arith.cmpf oge, %606, %607 : vector<8x1xf32>
    %609 = arith.select %608, %597, %567 : vector<8x1xi1>, vector<8x1xi32>
    %c524288_i32_198 = arith.constant 524288 : i32
    %610 = vector.broadcast %c524288_i32_198 : i32 to vector<8x1xi32>
    %611 = arith.ori %581, %610 : vector<8x1xi32>
    %612 = vector.broadcast %611 : vector<8x1xi32> to vector<8x512xi32>
    %613 = arith.cmpi sge, %65, %612 : vector<8x512xi32>
    %614 = vector.broadcast %81 : vector<1x512xi1> to vector<8x512xi1>
    %615 = arith.andi %613, %614 : vector<8x512xi1>
    %cst_199 = arith.constant 1.000000e+00 : f32
    %cst_200 = arith.constant 0.000000e+00 : f32
    %616 = vector.broadcast %cst_199 : f32 to vector<8x512xf32>
    %617 = vector.broadcast %cst_200 : f32 to vector<8x512xf32>
    %618 = arith.select %615, %616, %617 : vector<8x512xi1>, vector<8x512xf32>
    %cst_201 = arith.constant dense<0.000000e+00> : vector<8xf32>
    %619 = vector.multi_reduction <add>, %618, %cst_201 [1] : vector<8x512xf32> to vector<8xf32>
    %620 = vector.shape_cast %619 : vector<8xf32> to vector<8x1xf32>
    %cst_202 = arith.constant 3.200000e+01 : f32
    %621 = vector.broadcast %cst_202 : f32 to vector<8x1xf32>
    %622 = arith.cmpf oge, %620, %621 : vector<8x1xf32>
    %623 = arith.select %622, %611, %581 : vector<8x1xi1>, vector<8x1xi32>
    %c262144_i32 = arith.constant 262144 : i32
    %624 = vector.broadcast %c262144_i32 : i32 to vector<8x1xi32>
    %625 = arith.ori %595, %624 : vector<8x1xi32>
    %626 = vector.broadcast %625 : vector<8x1xi32> to vector<8x512xi32>
    %627 = arith.cmpi sge, %65, %626 : vector<8x512xi32>
    %628 = vector.broadcast %71 : vector<1x512xi1> to vector<8x512xi1>
    %629 = arith.andi %627, %628 : vector<8x512xi1>
    %cst_203 = arith.constant 1.000000e+00 : f32
    %cst_204 = arith.constant 0.000000e+00 : f32
    %630 = vector.broadcast %cst_203 : f32 to vector<8x512xf32>
    %631 = vector.broadcast %cst_204 : f32 to vector<8x512xf32>
    %632 = arith.select %629, %630, %631 : vector<8x512xi1>, vector<8x512xf32>
    %cst_205 = arith.constant dense<0.000000e+00> : vector<8xf32>
    %633 = vector.multi_reduction <add>, %632, %cst_205 [1] : vector<8x512xf32> to vector<8xf32>
    %634 = vector.shape_cast %633 : vector<8xf32> to vector<8x1xf32>
    %cst_206 = arith.constant 9.600000e+01 : f32
    %635 = vector.broadcast %cst_206 : f32 to vector<8x1xf32>
    %636 = arith.cmpf oge, %634, %635 : vector<8x1xf32>
    %637 = arith.select %636, %625, %595 : vector<8x1xi1>, vector<8x1xi32>
    %c262144_i32_207 = arith.constant 262144 : i32
    %638 = vector.broadcast %c262144_i32_207 : i32 to vector<8x1xi32>
    %639 = arith.ori %609, %638 : vector<8x1xi32>
    %640 = vector.broadcast %639 : vector<8x1xi32> to vector<8x512xi32>
    %641 = arith.cmpi sge, %65, %640 : vector<8x512xi32>
    %642 = vector.broadcast %76 : vector<1x512xi1> to vector<8x512xi1>
    %643 = arith.andi %641, %642 : vector<8x512xi1>
    %cst_208 = arith.constant 1.000000e+00 : f32
    %cst_209 = arith.constant 0.000000e+00 : f32
    %644 = vector.broadcast %cst_208 : f32 to vector<8x512xf32>
    %645 = vector.broadcast %cst_209 : f32 to vector<8x512xf32>
    %646 = arith.select %643, %644, %645 : vector<8x512xi1>, vector<8x512xf32>
    %cst_210 = arith.constant dense<0.000000e+00> : vector<8xf32>
    %647 = vector.multi_reduction <add>, %646, %cst_210 [1] : vector<8x512xf32> to vector<8xf32>
    %648 = vector.shape_cast %647 : vector<8xf32> to vector<8x1xf32>
    %cst_211 = arith.constant 1.280000e+02 : f32
    %649 = vector.broadcast %cst_211 : f32 to vector<8x1xf32>
    %650 = arith.cmpf oge, %648, %649 : vector<8x1xf32>
    %651 = arith.select %650, %639, %609 : vector<8x1xi1>, vector<8x1xi32>
    %c262144_i32_212 = arith.constant 262144 : i32
    %652 = vector.broadcast %c262144_i32_212 : i32 to vector<8x1xi32>
    %653 = arith.ori %623, %652 : vector<8x1xi32>
    %654 = vector.broadcast %653 : vector<8x1xi32> to vector<8x512xi32>
    %655 = arith.cmpi sge, %65, %654 : vector<8x512xi32>
    %656 = vector.broadcast %81 : vector<1x512xi1> to vector<8x512xi1>
    %657 = arith.andi %655, %656 : vector<8x512xi1>
    %cst_213 = arith.constant 1.000000e+00 : f32
    %cst_214 = arith.constant 0.000000e+00 : f32
    %658 = vector.broadcast %cst_213 : f32 to vector<8x512xf32>
    %659 = vector.broadcast %cst_214 : f32 to vector<8x512xf32>
    %660 = arith.select %657, %658, %659 : vector<8x512xi1>, vector<8x512xf32>
    %cst_215 = arith.constant dense<0.000000e+00> : vector<8xf32>
    %661 = vector.multi_reduction <add>, %660, %cst_215 [1] : vector<8x512xf32> to vector<8xf32>
    %662 = vector.shape_cast %661 : vector<8xf32> to vector<8x1xf32>
    %cst_216 = arith.constant 3.200000e+01 : f32
    %663 = vector.broadcast %cst_216 : f32 to vector<8x1xf32>
    %664 = arith.cmpf oge, %662, %663 : vector<8x1xf32>
    %665 = arith.select %664, %653, %623 : vector<8x1xi1>, vector<8x1xi32>
    %c131072_i32 = arith.constant 131072 : i32
    %666 = vector.broadcast %c131072_i32 : i32 to vector<8x1xi32>
    %667 = arith.ori %637, %666 : vector<8x1xi32>
    %668 = vector.broadcast %667 : vector<8x1xi32> to vector<8x512xi32>
    %669 = arith.cmpi sge, %65, %668 : vector<8x512xi32>
    %670 = vector.broadcast %71 : vector<1x512xi1> to vector<8x512xi1>
    %671 = arith.andi %669, %670 : vector<8x512xi1>
    %cst_217 = arith.constant 1.000000e+00 : f32
    %cst_218 = arith.constant 0.000000e+00 : f32
    %672 = vector.broadcast %cst_217 : f32 to vector<8x512xf32>
    %673 = vector.broadcast %cst_218 : f32 to vector<8x512xf32>
    %674 = arith.select %671, %672, %673 : vector<8x512xi1>, vector<8x512xf32>
    %cst_219 = arith.constant dense<0.000000e+00> : vector<8xf32>
    %675 = vector.multi_reduction <add>, %674, %cst_219 [1] : vector<8x512xf32> to vector<8xf32>
    %676 = vector.shape_cast %675 : vector<8xf32> to vector<8x1xf32>
    %cst_220 = arith.constant 9.600000e+01 : f32
    %677 = vector.broadcast %cst_220 : f32 to vector<8x1xf32>
    %678 = arith.cmpf oge, %676, %677 : vector<8x1xf32>
    %679 = arith.select %678, %667, %637 : vector<8x1xi1>, vector<8x1xi32>
    %c131072_i32_221 = arith.constant 131072 : i32
    %680 = vector.broadcast %c131072_i32_221 : i32 to vector<8x1xi32>
    %681 = arith.ori %651, %680 : vector<8x1xi32>
    %682 = vector.broadcast %681 : vector<8x1xi32> to vector<8x512xi32>
    %683 = arith.cmpi sge, %65, %682 : vector<8x512xi32>
    %684 = vector.broadcast %76 : vector<1x512xi1> to vector<8x512xi1>
    %685 = arith.andi %683, %684 : vector<8x512xi1>
    %cst_222 = arith.constant 1.000000e+00 : f32
    %cst_223 = arith.constant 0.000000e+00 : f32
    %686 = vector.broadcast %cst_222 : f32 to vector<8x512xf32>
    %687 = vector.broadcast %cst_223 : f32 to vector<8x512xf32>
    %688 = arith.select %685, %686, %687 : vector<8x512xi1>, vector<8x512xf32>
    %cst_224 = arith.constant dense<0.000000e+00> : vector<8xf32>
    %689 = vector.multi_reduction <add>, %688, %cst_224 [1] : vector<8x512xf32> to vector<8xf32>
    %690 = vector.shape_cast %689 : vector<8xf32> to vector<8x1xf32>
    %cst_225 = arith.constant 1.280000e+02 : f32
    %691 = vector.broadcast %cst_225 : f32 to vector<8x1xf32>
    %692 = arith.cmpf oge, %690, %691 : vector<8x1xf32>
    %693 = arith.select %692, %681, %651 : vector<8x1xi1>, vector<8x1xi32>
    %c131072_i32_226 = arith.constant 131072 : i32
    %694 = vector.broadcast %c131072_i32_226 : i32 to vector<8x1xi32>
    %695 = arith.ori %665, %694 : vector<8x1xi32>
    %696 = vector.broadcast %695 : vector<8x1xi32> to vector<8x512xi32>
    %697 = arith.cmpi sge, %65, %696 : vector<8x512xi32>
    %698 = vector.broadcast %81 : vector<1x512xi1> to vector<8x512xi1>
    %699 = arith.andi %697, %698 : vector<8x512xi1>
    %cst_227 = arith.constant 1.000000e+00 : f32
    %cst_228 = arith.constant 0.000000e+00 : f32
    %700 = vector.broadcast %cst_227 : f32 to vector<8x512xf32>
    %701 = vector.broadcast %cst_228 : f32 to vector<8x512xf32>
    %702 = arith.select %699, %700, %701 : vector<8x512xi1>, vector<8x512xf32>
    %cst_229 = arith.constant dense<0.000000e+00> : vector<8xf32>
    %703 = vector.multi_reduction <add>, %702, %cst_229 [1] : vector<8x512xf32> to vector<8xf32>
    %704 = vector.shape_cast %703 : vector<8xf32> to vector<8x1xf32>
    %cst_230 = arith.constant 3.200000e+01 : f32
    %705 = vector.broadcast %cst_230 : f32 to vector<8x1xf32>
    %706 = arith.cmpf oge, %704, %705 : vector<8x1xf32>
    %707 = arith.select %706, %695, %665 : vector<8x1xi1>, vector<8x1xi32>
    %c65536_i32 = arith.constant 65536 : i32
    %708 = vector.broadcast %c65536_i32 : i32 to vector<8x1xi32>
    %709 = arith.ori %679, %708 : vector<8x1xi32>
    %710 = vector.broadcast %709 : vector<8x1xi32> to vector<8x512xi32>
    %711 = arith.cmpi sge, %65, %710 : vector<8x512xi32>
    %712 = vector.broadcast %71 : vector<1x512xi1> to vector<8x512xi1>
    %713 = arith.andi %711, %712 : vector<8x512xi1>
    %cst_231 = arith.constant 1.000000e+00 : f32
    %cst_232 = arith.constant 0.000000e+00 : f32
    %714 = vector.broadcast %cst_231 : f32 to vector<8x512xf32>
    %715 = vector.broadcast %cst_232 : f32 to vector<8x512xf32>
    %716 = arith.select %713, %714, %715 : vector<8x512xi1>, vector<8x512xf32>
    %cst_233 = arith.constant dense<0.000000e+00> : vector<8xf32>
    %717 = vector.multi_reduction <add>, %716, %cst_233 [1] : vector<8x512xf32> to vector<8xf32>
    %718 = vector.shape_cast %717 : vector<8xf32> to vector<8x1xf32>
    %cst_234 = arith.constant 9.600000e+01 : f32
    %719 = vector.broadcast %cst_234 : f32 to vector<8x1xf32>
    %720 = arith.cmpf oge, %718, %719 : vector<8x1xf32>
    %721 = arith.select %720, %709, %679 : vector<8x1xi1>, vector<8x1xi32>
    %c65536_i32_235 = arith.constant 65536 : i32
    %722 = vector.broadcast %c65536_i32_235 : i32 to vector<8x1xi32>
    %723 = arith.ori %693, %722 : vector<8x1xi32>
    %724 = vector.broadcast %723 : vector<8x1xi32> to vector<8x512xi32>
    %725 = arith.cmpi sge, %65, %724 : vector<8x512xi32>
    %726 = vector.broadcast %76 : vector<1x512xi1> to vector<8x512xi1>
    %727 = arith.andi %725, %726 : vector<8x512xi1>
    %cst_236 = arith.constant 1.000000e+00 : f32
    %cst_237 = arith.constant 0.000000e+00 : f32
    %728 = vector.broadcast %cst_236 : f32 to vector<8x512xf32>
    %729 = vector.broadcast %cst_237 : f32 to vector<8x512xf32>
    %730 = arith.select %727, %728, %729 : vector<8x512xi1>, vector<8x512xf32>
    %cst_238 = arith.constant dense<0.000000e+00> : vector<8xf32>
    %731 = vector.multi_reduction <add>, %730, %cst_238 [1] : vector<8x512xf32> to vector<8xf32>
    %732 = vector.shape_cast %731 : vector<8xf32> to vector<8x1xf32>
    %cst_239 = arith.constant 1.280000e+02 : f32
    %733 = vector.broadcast %cst_239 : f32 to vector<8x1xf32>
    %734 = arith.cmpf oge, %732, %733 : vector<8x1xf32>
    %735 = arith.select %734, %723, %693 : vector<8x1xi1>, vector<8x1xi32>
    %c65536_i32_240 = arith.constant 65536 : i32
    %736 = vector.broadcast %c65536_i32_240 : i32 to vector<8x1xi32>
    %737 = arith.ori %707, %736 : vector<8x1xi32>
    %738 = vector.broadcast %737 : vector<8x1xi32> to vector<8x512xi32>
    %739 = arith.cmpi sge, %65, %738 : vector<8x512xi32>
    %740 = vector.broadcast %81 : vector<1x512xi1> to vector<8x512xi1>
    %741 = arith.andi %739, %740 : vector<8x512xi1>
    %cst_241 = arith.constant 1.000000e+00 : f32
    %cst_242 = arith.constant 0.000000e+00 : f32
    %742 = vector.broadcast %cst_241 : f32 to vector<8x512xf32>
    %743 = vector.broadcast %cst_242 : f32 to vector<8x512xf32>
    %744 = arith.select %741, %742, %743 : vector<8x512xi1>, vector<8x512xf32>
    %cst_243 = arith.constant dense<0.000000e+00> : vector<8xf32>
    %745 = vector.multi_reduction <add>, %744, %cst_243 [1] : vector<8x512xf32> to vector<8xf32>
    %746 = vector.shape_cast %745 : vector<8xf32> to vector<8x1xf32>
    %cst_244 = arith.constant 3.200000e+01 : f32
    %747 = vector.broadcast %cst_244 : f32 to vector<8x1xf32>
    %748 = arith.cmpf oge, %746, %747 : vector<8x1xf32>
    %749 = arith.select %748, %737, %707 : vector<8x1xi1>, vector<8x1xi32>
    %c32768_i32 = arith.constant 32768 : i32
    %750 = vector.broadcast %c32768_i32 : i32 to vector<8x1xi32>
    %751 = arith.ori %721, %750 : vector<8x1xi32>
    %752 = vector.broadcast %751 : vector<8x1xi32> to vector<8x512xi32>
    %753 = arith.cmpi sge, %65, %752 : vector<8x512xi32>
    %754 = vector.broadcast %71 : vector<1x512xi1> to vector<8x512xi1>
    %755 = arith.andi %753, %754 : vector<8x512xi1>
    %cst_245 = arith.constant 1.000000e+00 : f32
    %cst_246 = arith.constant 0.000000e+00 : f32
    %756 = vector.broadcast %cst_245 : f32 to vector<8x512xf32>
    %757 = vector.broadcast %cst_246 : f32 to vector<8x512xf32>
    %758 = arith.select %755, %756, %757 : vector<8x512xi1>, vector<8x512xf32>
    %cst_247 = arith.constant dense<0.000000e+00> : vector<8xf32>
    %759 = vector.multi_reduction <add>, %758, %cst_247 [1] : vector<8x512xf32> to vector<8xf32>
    %760 = vector.shape_cast %759 : vector<8xf32> to vector<8x1xf32>
    %cst_248 = arith.constant 9.600000e+01 : f32
    %761 = vector.broadcast %cst_248 : f32 to vector<8x1xf32>
    %762 = arith.cmpf oge, %760, %761 : vector<8x1xf32>
    %763 = arith.select %762, %751, %721 : vector<8x1xi1>, vector<8x1xi32>
    %c32768_i32_249 = arith.constant 32768 : i32
    %764 = vector.broadcast %c32768_i32_249 : i32 to vector<8x1xi32>
    %765 = arith.ori %735, %764 : vector<8x1xi32>
    %766 = vector.broadcast %765 : vector<8x1xi32> to vector<8x512xi32>
    %767 = arith.cmpi sge, %65, %766 : vector<8x512xi32>
    %768 = vector.broadcast %76 : vector<1x512xi1> to vector<8x512xi1>
    %769 = arith.andi %767, %768 : vector<8x512xi1>
    %cst_250 = arith.constant 1.000000e+00 : f32
    %cst_251 = arith.constant 0.000000e+00 : f32
    %770 = vector.broadcast %cst_250 : f32 to vector<8x512xf32>
    %771 = vector.broadcast %cst_251 : f32 to vector<8x512xf32>
    %772 = arith.select %769, %770, %771 : vector<8x512xi1>, vector<8x512xf32>
    %cst_252 = arith.constant dense<0.000000e+00> : vector<8xf32>
    %773 = vector.multi_reduction <add>, %772, %cst_252 [1] : vector<8x512xf32> to vector<8xf32>
    %774 = vector.shape_cast %773 : vector<8xf32> to vector<8x1xf32>
    %cst_253 = arith.constant 1.280000e+02 : f32
    %775 = vector.broadcast %cst_253 : f32 to vector<8x1xf32>
    %776 = arith.cmpf oge, %774, %775 : vector<8x1xf32>
    %777 = arith.select %776, %765, %735 : vector<8x1xi1>, vector<8x1xi32>
    %c32768_i32_254 = arith.constant 32768 : i32
    %778 = vector.broadcast %c32768_i32_254 : i32 to vector<8x1xi32>
    %779 = arith.ori %749, %778 : vector<8x1xi32>
    %780 = vector.broadcast %779 : vector<8x1xi32> to vector<8x512xi32>
    %781 = arith.cmpi sge, %65, %780 : vector<8x512xi32>
    %782 = vector.broadcast %81 : vector<1x512xi1> to vector<8x512xi1>
    %783 = arith.andi %781, %782 : vector<8x512xi1>
    %cst_255 = arith.constant 1.000000e+00 : f32
    %cst_256 = arith.constant 0.000000e+00 : f32
    %784 = vector.broadcast %cst_255 : f32 to vector<8x512xf32>
    %785 = vector.broadcast %cst_256 : f32 to vector<8x512xf32>
    %786 = arith.select %783, %784, %785 : vector<8x512xi1>, vector<8x512xf32>
    %cst_257 = arith.constant dense<0.000000e+00> : vector<8xf32>
    %787 = vector.multi_reduction <add>, %786, %cst_257 [1] : vector<8x512xf32> to vector<8xf32>
    %788 = vector.shape_cast %787 : vector<8xf32> to vector<8x1xf32>
    %cst_258 = arith.constant 3.200000e+01 : f32
    %789 = vector.broadcast %cst_258 : f32 to vector<8x1xf32>
    %790 = arith.cmpf oge, %788, %789 : vector<8x1xf32>
    %791 = arith.select %790, %779, %749 : vector<8x1xi1>, vector<8x1xi32>
    %c16384_i32 = arith.constant 16384 : i32
    %792 = vector.broadcast %c16384_i32 : i32 to vector<8x1xi32>
    %793 = arith.ori %763, %792 : vector<8x1xi32>
    %794 = vector.broadcast %793 : vector<8x1xi32> to vector<8x512xi32>
    %795 = arith.cmpi sge, %65, %794 : vector<8x512xi32>
    %796 = vector.broadcast %71 : vector<1x512xi1> to vector<8x512xi1>
    %797 = arith.andi %795, %796 : vector<8x512xi1>
    %cst_259 = arith.constant 1.000000e+00 : f32
    %cst_260 = arith.constant 0.000000e+00 : f32
    %798 = vector.broadcast %cst_259 : f32 to vector<8x512xf32>
    %799 = vector.broadcast %cst_260 : f32 to vector<8x512xf32>
    %800 = arith.select %797, %798, %799 : vector<8x512xi1>, vector<8x512xf32>
    %cst_261 = arith.constant dense<0.000000e+00> : vector<8xf32>
    %801 = vector.multi_reduction <add>, %800, %cst_261 [1] : vector<8x512xf32> to vector<8xf32>
    %802 = vector.shape_cast %801 : vector<8xf32> to vector<8x1xf32>
    %cst_262 = arith.constant 9.600000e+01 : f32
    %803 = vector.broadcast %cst_262 : f32 to vector<8x1xf32>
    %804 = arith.cmpf oge, %802, %803 : vector<8x1xf32>
    %805 = arith.select %804, %793, %763 : vector<8x1xi1>, vector<8x1xi32>
    %c16384_i32_263 = arith.constant 16384 : i32
    %806 = vector.broadcast %c16384_i32_263 : i32 to vector<8x1xi32>
    %807 = arith.ori %777, %806 : vector<8x1xi32>
    %808 = vector.broadcast %807 : vector<8x1xi32> to vector<8x512xi32>
    %809 = arith.cmpi sge, %65, %808 : vector<8x512xi32>
    %810 = vector.broadcast %76 : vector<1x512xi1> to vector<8x512xi1>
    %811 = arith.andi %809, %810 : vector<8x512xi1>
    %cst_264 = arith.constant 1.000000e+00 : f32
    %cst_265 = arith.constant 0.000000e+00 : f32
    %812 = vector.broadcast %cst_264 : f32 to vector<8x512xf32>
    %813 = vector.broadcast %cst_265 : f32 to vector<8x512xf32>
    %814 = arith.select %811, %812, %813 : vector<8x512xi1>, vector<8x512xf32>
    %cst_266 = arith.constant dense<0.000000e+00> : vector<8xf32>
    %815 = vector.multi_reduction <add>, %814, %cst_266 [1] : vector<8x512xf32> to vector<8xf32>
    %816 = vector.shape_cast %815 : vector<8xf32> to vector<8x1xf32>
    %cst_267 = arith.constant 1.280000e+02 : f32
    %817 = vector.broadcast %cst_267 : f32 to vector<8x1xf32>
    %818 = arith.cmpf oge, %816, %817 : vector<8x1xf32>
    %819 = arith.select %818, %807, %777 : vector<8x1xi1>, vector<8x1xi32>
    %c16384_i32_268 = arith.constant 16384 : i32
    %820 = vector.broadcast %c16384_i32_268 : i32 to vector<8x1xi32>
    %821 = arith.ori %791, %820 : vector<8x1xi32>
    %822 = vector.broadcast %821 : vector<8x1xi32> to vector<8x512xi32>
    %823 = arith.cmpi sge, %65, %822 : vector<8x512xi32>
    %824 = vector.broadcast %81 : vector<1x512xi1> to vector<8x512xi1>
    %825 = arith.andi %823, %824 : vector<8x512xi1>
    %cst_269 = arith.constant 1.000000e+00 : f32
    %cst_270 = arith.constant 0.000000e+00 : f32
    %826 = vector.broadcast %cst_269 : f32 to vector<8x512xf32>
    %827 = vector.broadcast %cst_270 : f32 to vector<8x512xf32>
    %828 = arith.select %825, %826, %827 : vector<8x512xi1>, vector<8x512xf32>
    %cst_271 = arith.constant dense<0.000000e+00> : vector<8xf32>
    %829 = vector.multi_reduction <add>, %828, %cst_271 [1] : vector<8x512xf32> to vector<8xf32>
    %830 = vector.shape_cast %829 : vector<8xf32> to vector<8x1xf32>
    %cst_272 = arith.constant 3.200000e+01 : f32
    %831 = vector.broadcast %cst_272 : f32 to vector<8x1xf32>
    %832 = arith.cmpf oge, %830, %831 : vector<8x1xf32>
    %833 = arith.select %832, %821, %791 : vector<8x1xi1>, vector<8x1xi32>
    %c8192_i32 = arith.constant 8192 : i32
    %834 = vector.broadcast %c8192_i32 : i32 to vector<8x1xi32>
    %835 = arith.ori %805, %834 : vector<8x1xi32>
    %836 = vector.broadcast %835 : vector<8x1xi32> to vector<8x512xi32>
    %837 = arith.cmpi sge, %65, %836 : vector<8x512xi32>
    %838 = vector.broadcast %71 : vector<1x512xi1> to vector<8x512xi1>
    %839 = arith.andi %837, %838 : vector<8x512xi1>
    %cst_273 = arith.constant 1.000000e+00 : f32
    %cst_274 = arith.constant 0.000000e+00 : f32
    %840 = vector.broadcast %cst_273 : f32 to vector<8x512xf32>
    %841 = vector.broadcast %cst_274 : f32 to vector<8x512xf32>
    %842 = arith.select %839, %840, %841 : vector<8x512xi1>, vector<8x512xf32>
    %cst_275 = arith.constant dense<0.000000e+00> : vector<8xf32>
    %843 = vector.multi_reduction <add>, %842, %cst_275 [1] : vector<8x512xf32> to vector<8xf32>
    %844 = vector.shape_cast %843 : vector<8xf32> to vector<8x1xf32>
    %cst_276 = arith.constant 9.600000e+01 : f32
    %845 = vector.broadcast %cst_276 : f32 to vector<8x1xf32>
    %846 = arith.cmpf oge, %844, %845 : vector<8x1xf32>
    %847 = arith.select %846, %835, %805 : vector<8x1xi1>, vector<8x1xi32>
    %c8192_i32_277 = arith.constant 8192 : i32
    %848 = vector.broadcast %c8192_i32_277 : i32 to vector<8x1xi32>
    %849 = arith.ori %819, %848 : vector<8x1xi32>
    %850 = vector.broadcast %849 : vector<8x1xi32> to vector<8x512xi32>
    %851 = arith.cmpi sge, %65, %850 : vector<8x512xi32>
    %852 = vector.broadcast %76 : vector<1x512xi1> to vector<8x512xi1>
    %853 = arith.andi %851, %852 : vector<8x512xi1>
    %cst_278 = arith.constant 1.000000e+00 : f32
    %cst_279 = arith.constant 0.000000e+00 : f32
    %854 = vector.broadcast %cst_278 : f32 to vector<8x512xf32>
    %855 = vector.broadcast %cst_279 : f32 to vector<8x512xf32>
    %856 = arith.select %853, %854, %855 : vector<8x512xi1>, vector<8x512xf32>
    %cst_280 = arith.constant dense<0.000000e+00> : vector<8xf32>
    %857 = vector.multi_reduction <add>, %856, %cst_280 [1] : vector<8x512xf32> to vector<8xf32>
    %858 = vector.shape_cast %857 : vector<8xf32> to vector<8x1xf32>
    %cst_281 = arith.constant 1.280000e+02 : f32
    %859 = vector.broadcast %cst_281 : f32 to vector<8x1xf32>
    %860 = arith.cmpf oge, %858, %859 : vector<8x1xf32>
    %861 = arith.select %860, %849, %819 : vector<8x1xi1>, vector<8x1xi32>
    %c8192_i32_282 = arith.constant 8192 : i32
    %862 = vector.broadcast %c8192_i32_282 : i32 to vector<8x1xi32>
    %863 = arith.ori %833, %862 : vector<8x1xi32>
    %864 = vector.broadcast %863 : vector<8x1xi32> to vector<8x512xi32>
    %865 = arith.cmpi sge, %65, %864 : vector<8x512xi32>
    %866 = vector.broadcast %81 : vector<1x512xi1> to vector<8x512xi1>
    %867 = arith.andi %865, %866 : vector<8x512xi1>
    %cst_283 = arith.constant 1.000000e+00 : f32
    %cst_284 = arith.constant 0.000000e+00 : f32
    %868 = vector.broadcast %cst_283 : f32 to vector<8x512xf32>
    %869 = vector.broadcast %cst_284 : f32 to vector<8x512xf32>
    %870 = arith.select %867, %868, %869 : vector<8x512xi1>, vector<8x512xf32>
    %cst_285 = arith.constant dense<0.000000e+00> : vector<8xf32>
    %871 = vector.multi_reduction <add>, %870, %cst_285 [1] : vector<8x512xf32> to vector<8xf32>
    %872 = vector.shape_cast %871 : vector<8xf32> to vector<8x1xf32>
    %cst_286 = arith.constant 3.200000e+01 : f32
    %873 = vector.broadcast %cst_286 : f32 to vector<8x1xf32>
    %874 = arith.cmpf oge, %872, %873 : vector<8x1xf32>
    %875 = arith.select %874, %863, %833 : vector<8x1xi1>, vector<8x1xi32>
    %c4096_i32 = arith.constant 4096 : i32
    %876 = vector.broadcast %c4096_i32 : i32 to vector<8x1xi32>
    %877 = arith.ori %847, %876 : vector<8x1xi32>
    %878 = vector.broadcast %877 : vector<8x1xi32> to vector<8x512xi32>
    %879 = arith.cmpi sge, %65, %878 : vector<8x512xi32>
    %880 = vector.broadcast %71 : vector<1x512xi1> to vector<8x512xi1>
    %881 = arith.andi %879, %880 : vector<8x512xi1>
    %cst_287 = arith.constant 1.000000e+00 : f32
    %cst_288 = arith.constant 0.000000e+00 : f32
    %882 = vector.broadcast %cst_287 : f32 to vector<8x512xf32>
    %883 = vector.broadcast %cst_288 : f32 to vector<8x512xf32>
    %884 = arith.select %881, %882, %883 : vector<8x512xi1>, vector<8x512xf32>
    %cst_289 = arith.constant dense<0.000000e+00> : vector<8xf32>
    %885 = vector.multi_reduction <add>, %884, %cst_289 [1] : vector<8x512xf32> to vector<8xf32>
    %886 = vector.shape_cast %885 : vector<8xf32> to vector<8x1xf32>
    %cst_290 = arith.constant 9.600000e+01 : f32
    %887 = vector.broadcast %cst_290 : f32 to vector<8x1xf32>
    %888 = arith.cmpf oge, %886, %887 : vector<8x1xf32>
    %889 = arith.select %888, %877, %847 : vector<8x1xi1>, vector<8x1xi32>
    %c4096_i32_291 = arith.constant 4096 : i32
    %890 = vector.broadcast %c4096_i32_291 : i32 to vector<8x1xi32>
    %891 = arith.ori %861, %890 : vector<8x1xi32>
    %892 = vector.broadcast %891 : vector<8x1xi32> to vector<8x512xi32>
    %893 = arith.cmpi sge, %65, %892 : vector<8x512xi32>
    %894 = vector.broadcast %76 : vector<1x512xi1> to vector<8x512xi1>
    %895 = arith.andi %893, %894 : vector<8x512xi1>
    %cst_292 = arith.constant 1.000000e+00 : f32
    %cst_293 = arith.constant 0.000000e+00 : f32
    %896 = vector.broadcast %cst_292 : f32 to vector<8x512xf32>
    %897 = vector.broadcast %cst_293 : f32 to vector<8x512xf32>
    %898 = arith.select %895, %896, %897 : vector<8x512xi1>, vector<8x512xf32>
    %cst_294 = arith.constant dense<0.000000e+00> : vector<8xf32>
    %899 = vector.multi_reduction <add>, %898, %cst_294 [1] : vector<8x512xf32> to vector<8xf32>
    %900 = vector.shape_cast %899 : vector<8xf32> to vector<8x1xf32>
    %cst_295 = arith.constant 1.280000e+02 : f32
    %901 = vector.broadcast %cst_295 : f32 to vector<8x1xf32>
    %902 = arith.cmpf oge, %900, %901 : vector<8x1xf32>
    %903 = arith.select %902, %891, %861 : vector<8x1xi1>, vector<8x1xi32>
    %c4096_i32_296 = arith.constant 4096 : i32
    %904 = vector.broadcast %c4096_i32_296 : i32 to vector<8x1xi32>
    %905 = arith.ori %875, %904 : vector<8x1xi32>
    %906 = vector.broadcast %905 : vector<8x1xi32> to vector<8x512xi32>
    %907 = arith.cmpi sge, %65, %906 : vector<8x512xi32>
    %908 = vector.broadcast %81 : vector<1x512xi1> to vector<8x512xi1>
    %909 = arith.andi %907, %908 : vector<8x512xi1>
    %cst_297 = arith.constant 1.000000e+00 : f32
    %cst_298 = arith.constant 0.000000e+00 : f32
    %910 = vector.broadcast %cst_297 : f32 to vector<8x512xf32>
    %911 = vector.broadcast %cst_298 : f32 to vector<8x512xf32>
    %912 = arith.select %909, %910, %911 : vector<8x512xi1>, vector<8x512xf32>
    %cst_299 = arith.constant dense<0.000000e+00> : vector<8xf32>
    %913 = vector.multi_reduction <add>, %912, %cst_299 [1] : vector<8x512xf32> to vector<8xf32>
    %914 = vector.shape_cast %913 : vector<8xf32> to vector<8x1xf32>
    %cst_300 = arith.constant 3.200000e+01 : f32
    %915 = vector.broadcast %cst_300 : f32 to vector<8x1xf32>
    %916 = arith.cmpf oge, %914, %915 : vector<8x1xf32>
    %917 = arith.select %916, %905, %875 : vector<8x1xi1>, vector<8x1xi32>
    %c2048_i32 = arith.constant 2048 : i32
    %918 = vector.broadcast %c2048_i32 : i32 to vector<8x1xi32>
    %919 = arith.ori %889, %918 : vector<8x1xi32>
    %920 = vector.broadcast %919 : vector<8x1xi32> to vector<8x512xi32>
    %921 = arith.cmpi sge, %65, %920 : vector<8x512xi32>
    %922 = vector.broadcast %71 : vector<1x512xi1> to vector<8x512xi1>
    %923 = arith.andi %921, %922 : vector<8x512xi1>
    %cst_301 = arith.constant 1.000000e+00 : f32
    %cst_302 = arith.constant 0.000000e+00 : f32
    %924 = vector.broadcast %cst_301 : f32 to vector<8x512xf32>
    %925 = vector.broadcast %cst_302 : f32 to vector<8x512xf32>
    %926 = arith.select %923, %924, %925 : vector<8x512xi1>, vector<8x512xf32>
    %cst_303 = arith.constant dense<0.000000e+00> : vector<8xf32>
    %927 = vector.multi_reduction <add>, %926, %cst_303 [1] : vector<8x512xf32> to vector<8xf32>
    %928 = vector.shape_cast %927 : vector<8xf32> to vector<8x1xf32>
    %cst_304 = arith.constant 9.600000e+01 : f32
    %929 = vector.broadcast %cst_304 : f32 to vector<8x1xf32>
    %930 = arith.cmpf oge, %928, %929 : vector<8x1xf32>
    %931 = arith.select %930, %919, %889 : vector<8x1xi1>, vector<8x1xi32>
    %c2048_i32_305 = arith.constant 2048 : i32
    %932 = vector.broadcast %c2048_i32_305 : i32 to vector<8x1xi32>
    %933 = arith.ori %903, %932 : vector<8x1xi32>
    %934 = vector.broadcast %933 : vector<8x1xi32> to vector<8x512xi32>
    %935 = arith.cmpi sge, %65, %934 : vector<8x512xi32>
    %936 = vector.broadcast %76 : vector<1x512xi1> to vector<8x512xi1>
    %937 = arith.andi %935, %936 : vector<8x512xi1>
    %cst_306 = arith.constant 1.000000e+00 : f32
    %cst_307 = arith.constant 0.000000e+00 : f32
    %938 = vector.broadcast %cst_306 : f32 to vector<8x512xf32>
    %939 = vector.broadcast %cst_307 : f32 to vector<8x512xf32>
    %940 = arith.select %937, %938, %939 : vector<8x512xi1>, vector<8x512xf32>
    %cst_308 = arith.constant dense<0.000000e+00> : vector<8xf32>
    %941 = vector.multi_reduction <add>, %940, %cst_308 [1] : vector<8x512xf32> to vector<8xf32>
    %942 = vector.shape_cast %941 : vector<8xf32> to vector<8x1xf32>
    %cst_309 = arith.constant 1.280000e+02 : f32
    %943 = vector.broadcast %cst_309 : f32 to vector<8x1xf32>
    %944 = arith.cmpf oge, %942, %943 : vector<8x1xf32>
    %945 = arith.select %944, %933, %903 : vector<8x1xi1>, vector<8x1xi32>
    %c2048_i32_310 = arith.constant 2048 : i32
    %946 = vector.broadcast %c2048_i32_310 : i32 to vector<8x1xi32>
    %947 = arith.ori %917, %946 : vector<8x1xi32>
    %948 = vector.broadcast %947 : vector<8x1xi32> to vector<8x512xi32>
    %949 = arith.cmpi sge, %65, %948 : vector<8x512xi32>
    %950 = vector.broadcast %81 : vector<1x512xi1> to vector<8x512xi1>
    %951 = arith.andi %949, %950 : vector<8x512xi1>
    %cst_311 = arith.constant 1.000000e+00 : f32
    %cst_312 = arith.constant 0.000000e+00 : f32
    %952 = vector.broadcast %cst_311 : f32 to vector<8x512xf32>
    %953 = vector.broadcast %cst_312 : f32 to vector<8x512xf32>
    %954 = arith.select %951, %952, %953 : vector<8x512xi1>, vector<8x512xf32>
    %cst_313 = arith.constant dense<0.000000e+00> : vector<8xf32>
    %955 = vector.multi_reduction <add>, %954, %cst_313 [1] : vector<8x512xf32> to vector<8xf32>
    %956 = vector.shape_cast %955 : vector<8xf32> to vector<8x1xf32>
    %cst_314 = arith.constant 3.200000e+01 : f32
    %957 = vector.broadcast %cst_314 : f32 to vector<8x1xf32>
    %958 = arith.cmpf oge, %956, %957 : vector<8x1xf32>
    %959 = arith.select %958, %947, %917 : vector<8x1xi1>, vector<8x1xi32>
    %c1024_i32 = arith.constant 1024 : i32
    %960 = vector.broadcast %c1024_i32 : i32 to vector<8x1xi32>
    %961 = arith.ori %931, %960 : vector<8x1xi32>
    %962 = vector.broadcast %961 : vector<8x1xi32> to vector<8x512xi32>
    %963 = arith.cmpi sge, %65, %962 : vector<8x512xi32>
    %964 = vector.broadcast %71 : vector<1x512xi1> to vector<8x512xi1>
    %965 = arith.andi %963, %964 : vector<8x512xi1>
    %cst_315 = arith.constant 1.000000e+00 : f32
    %cst_316 = arith.constant 0.000000e+00 : f32
    %966 = vector.broadcast %cst_315 : f32 to vector<8x512xf32>
    %967 = vector.broadcast %cst_316 : f32 to vector<8x512xf32>
    %968 = arith.select %965, %966, %967 : vector<8x512xi1>, vector<8x512xf32>
    %cst_317 = arith.constant dense<0.000000e+00> : vector<8xf32>
    %969 = vector.multi_reduction <add>, %968, %cst_317 [1] : vector<8x512xf32> to vector<8xf32>
    %970 = vector.shape_cast %969 : vector<8xf32> to vector<8x1xf32>
    %cst_318 = arith.constant 9.600000e+01 : f32
    %971 = vector.broadcast %cst_318 : f32 to vector<8x1xf32>
    %972 = arith.cmpf oge, %970, %971 : vector<8x1xf32>
    %973 = arith.select %972, %961, %931 : vector<8x1xi1>, vector<8x1xi32>
    %c1024_i32_319 = arith.constant 1024 : i32
    %974 = vector.broadcast %c1024_i32_319 : i32 to vector<8x1xi32>
    %975 = arith.ori %945, %974 : vector<8x1xi32>
    %976 = vector.broadcast %975 : vector<8x1xi32> to vector<8x512xi32>
    %977 = arith.cmpi sge, %65, %976 : vector<8x512xi32>
    %978 = vector.broadcast %76 : vector<1x512xi1> to vector<8x512xi1>
    %979 = arith.andi %977, %978 : vector<8x512xi1>
    %cst_320 = arith.constant 1.000000e+00 : f32
    %cst_321 = arith.constant 0.000000e+00 : f32
    %980 = vector.broadcast %cst_320 : f32 to vector<8x512xf32>
    %981 = vector.broadcast %cst_321 : f32 to vector<8x512xf32>
    %982 = arith.select %979, %980, %981 : vector<8x512xi1>, vector<8x512xf32>
    %cst_322 = arith.constant dense<0.000000e+00> : vector<8xf32>
    %983 = vector.multi_reduction <add>, %982, %cst_322 [1] : vector<8x512xf32> to vector<8xf32>
    %984 = vector.shape_cast %983 : vector<8xf32> to vector<8x1xf32>
    %cst_323 = arith.constant 1.280000e+02 : f32
    %985 = vector.broadcast %cst_323 : f32 to vector<8x1xf32>
    %986 = arith.cmpf oge, %984, %985 : vector<8x1xf32>
    %987 = arith.select %986, %975, %945 : vector<8x1xi1>, vector<8x1xi32>
    %c1024_i32_324 = arith.constant 1024 : i32
    %988 = vector.broadcast %c1024_i32_324 : i32 to vector<8x1xi32>
    %989 = arith.ori %959, %988 : vector<8x1xi32>
    %990 = vector.broadcast %989 : vector<8x1xi32> to vector<8x512xi32>
    %991 = arith.cmpi sge, %65, %990 : vector<8x512xi32>
    %992 = vector.broadcast %81 : vector<1x512xi1> to vector<8x512xi1>
    %993 = arith.andi %991, %992 : vector<8x512xi1>
    %cst_325 = arith.constant 1.000000e+00 : f32
    %cst_326 = arith.constant 0.000000e+00 : f32
    %994 = vector.broadcast %cst_325 : f32 to vector<8x512xf32>
    %995 = vector.broadcast %cst_326 : f32 to vector<8x512xf32>
    %996 = arith.select %993, %994, %995 : vector<8x512xi1>, vector<8x512xf32>
    %cst_327 = arith.constant dense<0.000000e+00> : vector<8xf32>
    %997 = vector.multi_reduction <add>, %996, %cst_327 [1] : vector<8x512xf32> to vector<8xf32>
    %998 = vector.shape_cast %997 : vector<8xf32> to vector<8x1xf32>
    %cst_328 = arith.constant 3.200000e+01 : f32
    %999 = vector.broadcast %cst_328 : f32 to vector<8x1xf32>
    %1000 = arith.cmpf oge, %998, %999 : vector<8x1xf32>
    %1001 = arith.select %1000, %989, %959 : vector<8x1xi1>, vector<8x1xi32>
    %c512_i32_329 = arith.constant 512 : i32
    %1002 = vector.broadcast %c512_i32_329 : i32 to vector<8x1xi32>
    %1003 = arith.ori %973, %1002 : vector<8x1xi32>
    %1004 = vector.broadcast %1003 : vector<8x1xi32> to vector<8x512xi32>
    %1005 = arith.cmpi sge, %65, %1004 : vector<8x512xi32>
    %1006 = vector.broadcast %71 : vector<1x512xi1> to vector<8x512xi1>
    %1007 = arith.andi %1005, %1006 : vector<8x512xi1>
    %cst_330 = arith.constant 1.000000e+00 : f32
    %cst_331 = arith.constant 0.000000e+00 : f32
    %1008 = vector.broadcast %cst_330 : f32 to vector<8x512xf32>
    %1009 = vector.broadcast %cst_331 : f32 to vector<8x512xf32>
    %1010 = arith.select %1007, %1008, %1009 : vector<8x512xi1>, vector<8x512xf32>
    %cst_332 = arith.constant dense<0.000000e+00> : vector<8xf32>
    %1011 = vector.multi_reduction <add>, %1010, %cst_332 [1] : vector<8x512xf32> to vector<8xf32>
    %1012 = vector.shape_cast %1011 : vector<8xf32> to vector<8x1xf32>
    %cst_333 = arith.constant 9.600000e+01 : f32
    %1013 = vector.broadcast %cst_333 : f32 to vector<8x1xf32>
    %1014 = arith.cmpf oge, %1012, %1013 : vector<8x1xf32>
    %1015 = arith.select %1014, %1003, %973 : vector<8x1xi1>, vector<8x1xi32>
    %c512_i32_334 = arith.constant 512 : i32
    %1016 = vector.broadcast %c512_i32_334 : i32 to vector<8x1xi32>
    %1017 = arith.ori %987, %1016 : vector<8x1xi32>
    %1018 = vector.broadcast %1017 : vector<8x1xi32> to vector<8x512xi32>
    %1019 = arith.cmpi sge, %65, %1018 : vector<8x512xi32>
    %1020 = vector.broadcast %76 : vector<1x512xi1> to vector<8x512xi1>
    %1021 = arith.andi %1019, %1020 : vector<8x512xi1>
    %cst_335 = arith.constant 1.000000e+00 : f32
    %cst_336 = arith.constant 0.000000e+00 : f32
    %1022 = vector.broadcast %cst_335 : f32 to vector<8x512xf32>
    %1023 = vector.broadcast %cst_336 : f32 to vector<8x512xf32>
    %1024 = arith.select %1021, %1022, %1023 : vector<8x512xi1>, vector<8x512xf32>
    %cst_337 = arith.constant dense<0.000000e+00> : vector<8xf32>
    %1025 = vector.multi_reduction <add>, %1024, %cst_337 [1] : vector<8x512xf32> to vector<8xf32>
    %1026 = vector.shape_cast %1025 : vector<8xf32> to vector<8x1xf32>
    %cst_338 = arith.constant 1.280000e+02 : f32
    %1027 = vector.broadcast %cst_338 : f32 to vector<8x1xf32>
    %1028 = arith.cmpf oge, %1026, %1027 : vector<8x1xf32>
    %1029 = arith.select %1028, %1017, %987 : vector<8x1xi1>, vector<8x1xi32>
    %c512_i32_339 = arith.constant 512 : i32
    %1030 = vector.broadcast %c512_i32_339 : i32 to vector<8x1xi32>
    %1031 = arith.ori %1001, %1030 : vector<8x1xi32>
    %1032 = vector.broadcast %1031 : vector<8x1xi32> to vector<8x512xi32>
    %1033 = arith.cmpi sge, %65, %1032 : vector<8x512xi32>
    %1034 = vector.broadcast %81 : vector<1x512xi1> to vector<8x512xi1>
    %1035 = arith.andi %1033, %1034 : vector<8x512xi1>
    %cst_340 = arith.constant 1.000000e+00 : f32
    %cst_341 = arith.constant 0.000000e+00 : f32
    %1036 = vector.broadcast %cst_340 : f32 to vector<8x512xf32>
    %1037 = vector.broadcast %cst_341 : f32 to vector<8x512xf32>
    %1038 = arith.select %1035, %1036, %1037 : vector<8x512xi1>, vector<8x512xf32>
    %cst_342 = arith.constant dense<0.000000e+00> : vector<8xf32>
    %1039 = vector.multi_reduction <add>, %1038, %cst_342 [1] : vector<8x512xf32> to vector<8xf32>
    %1040 = vector.shape_cast %1039 : vector<8xf32> to vector<8x1xf32>
    %cst_343 = arith.constant 3.200000e+01 : f32
    %1041 = vector.broadcast %cst_343 : f32 to vector<8x1xf32>
    %1042 = arith.cmpf oge, %1040, %1041 : vector<8x1xf32>
    %1043 = arith.select %1042, %1031, %1001 : vector<8x1xi1>, vector<8x1xi32>
    %c256_i32 = arith.constant 256 : i32
    %1044 = vector.broadcast %c256_i32 : i32 to vector<8x1xi32>
    %1045 = arith.ori %1015, %1044 : vector<8x1xi32>
    %1046 = vector.broadcast %1045 : vector<8x1xi32> to vector<8x512xi32>
    %1047 = arith.cmpi sge, %65, %1046 : vector<8x512xi32>
    %1048 = vector.broadcast %71 : vector<1x512xi1> to vector<8x512xi1>
    %1049 = arith.andi %1047, %1048 : vector<8x512xi1>
    %cst_344 = arith.constant 1.000000e+00 : f32
    %cst_345 = arith.constant 0.000000e+00 : f32
    %1050 = vector.broadcast %cst_344 : f32 to vector<8x512xf32>
    %1051 = vector.broadcast %cst_345 : f32 to vector<8x512xf32>
    %1052 = arith.select %1049, %1050, %1051 : vector<8x512xi1>, vector<8x512xf32>
    %cst_346 = arith.constant dense<0.000000e+00> : vector<8xf32>
    %1053 = vector.multi_reduction <add>, %1052, %cst_346 [1] : vector<8x512xf32> to vector<8xf32>
    %1054 = vector.shape_cast %1053 : vector<8xf32> to vector<8x1xf32>
    %cst_347 = arith.constant 9.600000e+01 : f32
    %1055 = vector.broadcast %cst_347 : f32 to vector<8x1xf32>
    %1056 = arith.cmpf oge, %1054, %1055 : vector<8x1xf32>
    %1057 = arith.select %1056, %1045, %1015 : vector<8x1xi1>, vector<8x1xi32>
    %c256_i32_348 = arith.constant 256 : i32
    %1058 = vector.broadcast %c256_i32_348 : i32 to vector<8x1xi32>
    %1059 = arith.ori %1029, %1058 : vector<8x1xi32>
    %1060 = vector.broadcast %1059 : vector<8x1xi32> to vector<8x512xi32>
    %1061 = arith.cmpi sge, %65, %1060 : vector<8x512xi32>
    %1062 = vector.broadcast %76 : vector<1x512xi1> to vector<8x512xi1>
    %1063 = arith.andi %1061, %1062 : vector<8x512xi1>
    %cst_349 = arith.constant 1.000000e+00 : f32
    %cst_350 = arith.constant 0.000000e+00 : f32
    %1064 = vector.broadcast %cst_349 : f32 to vector<8x512xf32>
    %1065 = vector.broadcast %cst_350 : f32 to vector<8x512xf32>
    %1066 = arith.select %1063, %1064, %1065 : vector<8x512xi1>, vector<8x512xf32>
    %cst_351 = arith.constant dense<0.000000e+00> : vector<8xf32>
    %1067 = vector.multi_reduction <add>, %1066, %cst_351 [1] : vector<8x512xf32> to vector<8xf32>
    %1068 = vector.shape_cast %1067 : vector<8xf32> to vector<8x1xf32>
    %cst_352 = arith.constant 1.280000e+02 : f32
    %1069 = vector.broadcast %cst_352 : f32 to vector<8x1xf32>
    %1070 = arith.cmpf oge, %1068, %1069 : vector<8x1xf32>
    %1071 = arith.select %1070, %1059, %1029 : vector<8x1xi1>, vector<8x1xi32>
    %c256_i32_353 = arith.constant 256 : i32
    %1072 = vector.broadcast %c256_i32_353 : i32 to vector<8x1xi32>
    %1073 = arith.ori %1043, %1072 : vector<8x1xi32>
    %1074 = vector.broadcast %1073 : vector<8x1xi32> to vector<8x512xi32>
    %1075 = arith.cmpi sge, %65, %1074 : vector<8x512xi32>
    %1076 = vector.broadcast %81 : vector<1x512xi1> to vector<8x512xi1>
    %1077 = arith.andi %1075, %1076 : vector<8x512xi1>
    %cst_354 = arith.constant 1.000000e+00 : f32
    %cst_355 = arith.constant 0.000000e+00 : f32
    %1078 = vector.broadcast %cst_354 : f32 to vector<8x512xf32>
    %1079 = vector.broadcast %cst_355 : f32 to vector<8x512xf32>
    %1080 = arith.select %1077, %1078, %1079 : vector<8x512xi1>, vector<8x512xf32>
    %cst_356 = arith.constant dense<0.000000e+00> : vector<8xf32>
    %1081 = vector.multi_reduction <add>, %1080, %cst_356 [1] : vector<8x512xf32> to vector<8xf32>
    %1082 = vector.shape_cast %1081 : vector<8xf32> to vector<8x1xf32>
    %cst_357 = arith.constant 3.200000e+01 : f32
    %1083 = vector.broadcast %cst_357 : f32 to vector<8x1xf32>
    %1084 = arith.cmpf oge, %1082, %1083 : vector<8x1xf32>
    %1085 = arith.select %1084, %1073, %1043 : vector<8x1xi1>, vector<8x1xi32>
    %c128_i32 = arith.constant 128 : i32
    %1086 = vector.broadcast %c128_i32 : i32 to vector<8x1xi32>
    %1087 = arith.ori %1057, %1086 : vector<8x1xi32>
    %1088 = vector.broadcast %1087 : vector<8x1xi32> to vector<8x512xi32>
    %1089 = arith.cmpi sge, %65, %1088 : vector<8x512xi32>
    %1090 = vector.broadcast %71 : vector<1x512xi1> to vector<8x512xi1>
    %1091 = arith.andi %1089, %1090 : vector<8x512xi1>
    %cst_358 = arith.constant 1.000000e+00 : f32
    %cst_359 = arith.constant 0.000000e+00 : f32
    %1092 = vector.broadcast %cst_358 : f32 to vector<8x512xf32>
    %1093 = vector.broadcast %cst_359 : f32 to vector<8x512xf32>
    %1094 = arith.select %1091, %1092, %1093 : vector<8x512xi1>, vector<8x512xf32>
    %cst_360 = arith.constant dense<0.000000e+00> : vector<8xf32>
    %1095 = vector.multi_reduction <add>, %1094, %cst_360 [1] : vector<8x512xf32> to vector<8xf32>
    %1096 = vector.shape_cast %1095 : vector<8xf32> to vector<8x1xf32>
    %cst_361 = arith.constant 9.600000e+01 : f32
    %1097 = vector.broadcast %cst_361 : f32 to vector<8x1xf32>
    %1098 = arith.cmpf oge, %1096, %1097 : vector<8x1xf32>
    %1099 = arith.select %1098, %1087, %1057 : vector<8x1xi1>, vector<8x1xi32>
    %c128_i32_362 = arith.constant 128 : i32
    %1100 = vector.broadcast %c128_i32_362 : i32 to vector<8x1xi32>
    %1101 = arith.ori %1071, %1100 : vector<8x1xi32>
    %1102 = vector.broadcast %1101 : vector<8x1xi32> to vector<8x512xi32>
    %1103 = arith.cmpi sge, %65, %1102 : vector<8x512xi32>
    %1104 = vector.broadcast %76 : vector<1x512xi1> to vector<8x512xi1>
    %1105 = arith.andi %1103, %1104 : vector<8x512xi1>
    %cst_363 = arith.constant 1.000000e+00 : f32
    %cst_364 = arith.constant 0.000000e+00 : f32
    %1106 = vector.broadcast %cst_363 : f32 to vector<8x512xf32>
    %1107 = vector.broadcast %cst_364 : f32 to vector<8x512xf32>
    %1108 = arith.select %1105, %1106, %1107 : vector<8x512xi1>, vector<8x512xf32>
    %cst_365 = arith.constant dense<0.000000e+00> : vector<8xf32>
    %1109 = vector.multi_reduction <add>, %1108, %cst_365 [1] : vector<8x512xf32> to vector<8xf32>
    %1110 = vector.shape_cast %1109 : vector<8xf32> to vector<8x1xf32>
    %cst_366 = arith.constant 1.280000e+02 : f32
    %1111 = vector.broadcast %cst_366 : f32 to vector<8x1xf32>
    %1112 = arith.cmpf oge, %1110, %1111 : vector<8x1xf32>
    %1113 = arith.select %1112, %1101, %1071 : vector<8x1xi1>, vector<8x1xi32>
    %c128_i32_367 = arith.constant 128 : i32
    %1114 = vector.broadcast %c128_i32_367 : i32 to vector<8x1xi32>
    %1115 = arith.ori %1085, %1114 : vector<8x1xi32>
    %1116 = vector.broadcast %1115 : vector<8x1xi32> to vector<8x512xi32>
    %1117 = arith.cmpi sge, %65, %1116 : vector<8x512xi32>
    %1118 = vector.broadcast %81 : vector<1x512xi1> to vector<8x512xi1>
    %1119 = arith.andi %1117, %1118 : vector<8x512xi1>
    %cst_368 = arith.constant 1.000000e+00 : f32
    %cst_369 = arith.constant 0.000000e+00 : f32
    %1120 = vector.broadcast %cst_368 : f32 to vector<8x512xf32>
    %1121 = vector.broadcast %cst_369 : f32 to vector<8x512xf32>
    %1122 = arith.select %1119, %1120, %1121 : vector<8x512xi1>, vector<8x512xf32>
    %cst_370 = arith.constant dense<0.000000e+00> : vector<8xf32>
    %1123 = vector.multi_reduction <add>, %1122, %cst_370 [1] : vector<8x512xf32> to vector<8xf32>
    %1124 = vector.shape_cast %1123 : vector<8xf32> to vector<8x1xf32>
    %cst_371 = arith.constant 3.200000e+01 : f32
    %1125 = vector.broadcast %cst_371 : f32 to vector<8x1xf32>
    %1126 = arith.cmpf oge, %1124, %1125 : vector<8x1xf32>
    %1127 = arith.select %1126, %1115, %1085 : vector<8x1xi1>, vector<8x1xi32>
    %c64_i32 = arith.constant 64 : i32
    %1128 = vector.broadcast %c64_i32 : i32 to vector<8x1xi32>
    %1129 = arith.ori %1099, %1128 : vector<8x1xi32>
    %1130 = vector.broadcast %1129 : vector<8x1xi32> to vector<8x512xi32>
    %1131 = arith.cmpi sge, %65, %1130 : vector<8x512xi32>
    %1132 = vector.broadcast %71 : vector<1x512xi1> to vector<8x512xi1>
    %1133 = arith.andi %1131, %1132 : vector<8x512xi1>
    %cst_372 = arith.constant 1.000000e+00 : f32
    %cst_373 = arith.constant 0.000000e+00 : f32
    %1134 = vector.broadcast %cst_372 : f32 to vector<8x512xf32>
    %1135 = vector.broadcast %cst_373 : f32 to vector<8x512xf32>
    %1136 = arith.select %1133, %1134, %1135 : vector<8x512xi1>, vector<8x512xf32>
    %cst_374 = arith.constant dense<0.000000e+00> : vector<8xf32>
    %1137 = vector.multi_reduction <add>, %1136, %cst_374 [1] : vector<8x512xf32> to vector<8xf32>
    %1138 = vector.shape_cast %1137 : vector<8xf32> to vector<8x1xf32>
    %cst_375 = arith.constant 9.600000e+01 : f32
    %1139 = vector.broadcast %cst_375 : f32 to vector<8x1xf32>
    %1140 = arith.cmpf oge, %1138, %1139 : vector<8x1xf32>
    %1141 = arith.select %1140, %1129, %1099 : vector<8x1xi1>, vector<8x1xi32>
    %c64_i32_376 = arith.constant 64 : i32
    %1142 = vector.broadcast %c64_i32_376 : i32 to vector<8x1xi32>
    %1143 = arith.ori %1113, %1142 : vector<8x1xi32>
    %1144 = vector.broadcast %1143 : vector<8x1xi32> to vector<8x512xi32>
    %1145 = arith.cmpi sge, %65, %1144 : vector<8x512xi32>
    %1146 = vector.broadcast %76 : vector<1x512xi1> to vector<8x512xi1>
    %1147 = arith.andi %1145, %1146 : vector<8x512xi1>
    %cst_377 = arith.constant 1.000000e+00 : f32
    %cst_378 = arith.constant 0.000000e+00 : f32
    %1148 = vector.broadcast %cst_377 : f32 to vector<8x512xf32>
    %1149 = vector.broadcast %cst_378 : f32 to vector<8x512xf32>
    %1150 = arith.select %1147, %1148, %1149 : vector<8x512xi1>, vector<8x512xf32>
    %cst_379 = arith.constant dense<0.000000e+00> : vector<8xf32>
    %1151 = vector.multi_reduction <add>, %1150, %cst_379 [1] : vector<8x512xf32> to vector<8xf32>
    %1152 = vector.shape_cast %1151 : vector<8xf32> to vector<8x1xf32>
    %cst_380 = arith.constant 1.280000e+02 : f32
    %1153 = vector.broadcast %cst_380 : f32 to vector<8x1xf32>
    %1154 = arith.cmpf oge, %1152, %1153 : vector<8x1xf32>
    %1155 = arith.select %1154, %1143, %1113 : vector<8x1xi1>, vector<8x1xi32>
    %c64_i32_381 = arith.constant 64 : i32
    %1156 = vector.broadcast %c64_i32_381 : i32 to vector<8x1xi32>
    %1157 = arith.ori %1127, %1156 : vector<8x1xi32>
    %1158 = vector.broadcast %1157 : vector<8x1xi32> to vector<8x512xi32>
    %1159 = arith.cmpi sge, %65, %1158 : vector<8x512xi32>
    %1160 = vector.broadcast %81 : vector<1x512xi1> to vector<8x512xi1>
    %1161 = arith.andi %1159, %1160 : vector<8x512xi1>
    %cst_382 = arith.constant 1.000000e+00 : f32
    %cst_383 = arith.constant 0.000000e+00 : f32
    %1162 = vector.broadcast %cst_382 : f32 to vector<8x512xf32>
    %1163 = vector.broadcast %cst_383 : f32 to vector<8x512xf32>
    %1164 = arith.select %1161, %1162, %1163 : vector<8x512xi1>, vector<8x512xf32>
    %cst_384 = arith.constant dense<0.000000e+00> : vector<8xf32>
    %1165 = vector.multi_reduction <add>, %1164, %cst_384 [1] : vector<8x512xf32> to vector<8xf32>
    %1166 = vector.shape_cast %1165 : vector<8xf32> to vector<8x1xf32>
    %cst_385 = arith.constant 3.200000e+01 : f32
    %1167 = vector.broadcast %cst_385 : f32 to vector<8x1xf32>
    %1168 = arith.cmpf oge, %1166, %1167 : vector<8x1xf32>
    %1169 = arith.select %1168, %1157, %1127 : vector<8x1xi1>, vector<8x1xi32>
    %c32_i32 = arith.constant 32 : i32
    %1170 = vector.broadcast %c32_i32 : i32 to vector<8x1xi32>
    %1171 = arith.ori %1141, %1170 : vector<8x1xi32>
    %1172 = vector.broadcast %1171 : vector<8x1xi32> to vector<8x512xi32>
    %1173 = arith.cmpi sge, %65, %1172 : vector<8x512xi32>
    %1174 = vector.broadcast %71 : vector<1x512xi1> to vector<8x512xi1>
    %1175 = arith.andi %1173, %1174 : vector<8x512xi1>
    %cst_386 = arith.constant 1.000000e+00 : f32
    %cst_387 = arith.constant 0.000000e+00 : f32
    %1176 = vector.broadcast %cst_386 : f32 to vector<8x512xf32>
    %1177 = vector.broadcast %cst_387 : f32 to vector<8x512xf32>
    %1178 = arith.select %1175, %1176, %1177 : vector<8x512xi1>, vector<8x512xf32>
    %cst_388 = arith.constant dense<0.000000e+00> : vector<8xf32>
    %1179 = vector.multi_reduction <add>, %1178, %cst_388 [1] : vector<8x512xf32> to vector<8xf32>
    %1180 = vector.shape_cast %1179 : vector<8xf32> to vector<8x1xf32>
    %cst_389 = arith.constant 9.600000e+01 : f32
    %1181 = vector.broadcast %cst_389 : f32 to vector<8x1xf32>
    %1182 = arith.cmpf oge, %1180, %1181 : vector<8x1xf32>
    %1183 = arith.select %1182, %1171, %1141 : vector<8x1xi1>, vector<8x1xi32>
    %c32_i32_390 = arith.constant 32 : i32
    %1184 = vector.broadcast %c32_i32_390 : i32 to vector<8x1xi32>
    %1185 = arith.ori %1155, %1184 : vector<8x1xi32>
    %1186 = vector.broadcast %1185 : vector<8x1xi32> to vector<8x512xi32>
    %1187 = arith.cmpi sge, %65, %1186 : vector<8x512xi32>
    %1188 = vector.broadcast %76 : vector<1x512xi1> to vector<8x512xi1>
    %1189 = arith.andi %1187, %1188 : vector<8x512xi1>
    %cst_391 = arith.constant 1.000000e+00 : f32
    %cst_392 = arith.constant 0.000000e+00 : f32
    %1190 = vector.broadcast %cst_391 : f32 to vector<8x512xf32>
    %1191 = vector.broadcast %cst_392 : f32 to vector<8x512xf32>
    %1192 = arith.select %1189, %1190, %1191 : vector<8x512xi1>, vector<8x512xf32>
    %cst_393 = arith.constant dense<0.000000e+00> : vector<8xf32>
    %1193 = vector.multi_reduction <add>, %1192, %cst_393 [1] : vector<8x512xf32> to vector<8xf32>
    %1194 = vector.shape_cast %1193 : vector<8xf32> to vector<8x1xf32>
    %cst_394 = arith.constant 1.280000e+02 : f32
    %1195 = vector.broadcast %cst_394 : f32 to vector<8x1xf32>
    %1196 = arith.cmpf oge, %1194, %1195 : vector<8x1xf32>
    %1197 = arith.select %1196, %1185, %1155 : vector<8x1xi1>, vector<8x1xi32>
    %c32_i32_395 = arith.constant 32 : i32
    %1198 = vector.broadcast %c32_i32_395 : i32 to vector<8x1xi32>
    %1199 = arith.ori %1169, %1198 : vector<8x1xi32>
    %1200 = vector.broadcast %1199 : vector<8x1xi32> to vector<8x512xi32>
    %1201 = arith.cmpi sge, %65, %1200 : vector<8x512xi32>
    %1202 = vector.broadcast %81 : vector<1x512xi1> to vector<8x512xi1>
    %1203 = arith.andi %1201, %1202 : vector<8x512xi1>
    %cst_396 = arith.constant 1.000000e+00 : f32
    %cst_397 = arith.constant 0.000000e+00 : f32
    %1204 = vector.broadcast %cst_396 : f32 to vector<8x512xf32>
    %1205 = vector.broadcast %cst_397 : f32 to vector<8x512xf32>
    %1206 = arith.select %1203, %1204, %1205 : vector<8x512xi1>, vector<8x512xf32>
    %cst_398 = arith.constant dense<0.000000e+00> : vector<8xf32>
    %1207 = vector.multi_reduction <add>, %1206, %cst_398 [1] : vector<8x512xf32> to vector<8xf32>
    %1208 = vector.shape_cast %1207 : vector<8xf32> to vector<8x1xf32>
    %cst_399 = arith.constant 3.200000e+01 : f32
    %1209 = vector.broadcast %cst_399 : f32 to vector<8x1xf32>
    %1210 = arith.cmpf oge, %1208, %1209 : vector<8x1xf32>
    %1211 = arith.select %1210, %1199, %1169 : vector<8x1xi1>, vector<8x1xi32>
    %c16_i32_400 = arith.constant 16 : i32
    %1212 = vector.broadcast %c16_i32_400 : i32 to vector<8x1xi32>
    %1213 = arith.ori %1183, %1212 : vector<8x1xi32>
    %1214 = vector.broadcast %1213 : vector<8x1xi32> to vector<8x512xi32>
    %1215 = arith.cmpi sge, %65, %1214 : vector<8x512xi32>
    %1216 = vector.broadcast %71 : vector<1x512xi1> to vector<8x512xi1>
    %1217 = arith.andi %1215, %1216 : vector<8x512xi1>
    %cst_401 = arith.constant 1.000000e+00 : f32
    %cst_402 = arith.constant 0.000000e+00 : f32
    %1218 = vector.broadcast %cst_401 : f32 to vector<8x512xf32>
    %1219 = vector.broadcast %cst_402 : f32 to vector<8x512xf32>
    %1220 = arith.select %1217, %1218, %1219 : vector<8x512xi1>, vector<8x512xf32>
    %cst_403 = arith.constant dense<0.000000e+00> : vector<8xf32>
    %1221 = vector.multi_reduction <add>, %1220, %cst_403 [1] : vector<8x512xf32> to vector<8xf32>
    %1222 = vector.shape_cast %1221 : vector<8xf32> to vector<8x1xf32>
    %cst_404 = arith.constant 9.600000e+01 : f32
    %1223 = vector.broadcast %cst_404 : f32 to vector<8x1xf32>
    %1224 = arith.cmpf oge, %1222, %1223 : vector<8x1xf32>
    %1225 = arith.select %1224, %1213, %1183 : vector<8x1xi1>, vector<8x1xi32>
    %c16_i32_405 = arith.constant 16 : i32
    %1226 = vector.broadcast %c16_i32_405 : i32 to vector<8x1xi32>
    %1227 = arith.ori %1197, %1226 : vector<8x1xi32>
    %1228 = vector.broadcast %1227 : vector<8x1xi32> to vector<8x512xi32>
    %1229 = arith.cmpi sge, %65, %1228 : vector<8x512xi32>
    %1230 = vector.broadcast %76 : vector<1x512xi1> to vector<8x512xi1>
    %1231 = arith.andi %1229, %1230 : vector<8x512xi1>
    %cst_406 = arith.constant 1.000000e+00 : f32
    %cst_407 = arith.constant 0.000000e+00 : f32
    %1232 = vector.broadcast %cst_406 : f32 to vector<8x512xf32>
    %1233 = vector.broadcast %cst_407 : f32 to vector<8x512xf32>
    %1234 = arith.select %1231, %1232, %1233 : vector<8x512xi1>, vector<8x512xf32>
    %cst_408 = arith.constant dense<0.000000e+00> : vector<8xf32>
    %1235 = vector.multi_reduction <add>, %1234, %cst_408 [1] : vector<8x512xf32> to vector<8xf32>
    %1236 = vector.shape_cast %1235 : vector<8xf32> to vector<8x1xf32>
    %cst_409 = arith.constant 1.280000e+02 : f32
    %1237 = vector.broadcast %cst_409 : f32 to vector<8x1xf32>
    %1238 = arith.cmpf oge, %1236, %1237 : vector<8x1xf32>
    %1239 = arith.select %1238, %1227, %1197 : vector<8x1xi1>, vector<8x1xi32>
    %c16_i32_410 = arith.constant 16 : i32
    %1240 = vector.broadcast %c16_i32_410 : i32 to vector<8x1xi32>
    %1241 = arith.ori %1211, %1240 : vector<8x1xi32>
    %1242 = vector.broadcast %1241 : vector<8x1xi32> to vector<8x512xi32>
    %1243 = arith.cmpi sge, %65, %1242 : vector<8x512xi32>
    %1244 = vector.broadcast %81 : vector<1x512xi1> to vector<8x512xi1>
    %1245 = arith.andi %1243, %1244 : vector<8x512xi1>
    %cst_411 = arith.constant 1.000000e+00 : f32
    %cst_412 = arith.constant 0.000000e+00 : f32
    %1246 = vector.broadcast %cst_411 : f32 to vector<8x512xf32>
    %1247 = vector.broadcast %cst_412 : f32 to vector<8x512xf32>
    %1248 = arith.select %1245, %1246, %1247 : vector<8x512xi1>, vector<8x512xf32>
    %cst_413 = arith.constant dense<0.000000e+00> : vector<8xf32>
    %1249 = vector.multi_reduction <add>, %1248, %cst_413 [1] : vector<8x512xf32> to vector<8xf32>
    %1250 = vector.shape_cast %1249 : vector<8xf32> to vector<8x1xf32>
    %cst_414 = arith.constant 3.200000e+01 : f32
    %1251 = vector.broadcast %cst_414 : f32 to vector<8x1xf32>
    %1252 = arith.cmpf oge, %1250, %1251 : vector<8x1xf32>
    %1253 = arith.select %1252, %1241, %1211 : vector<8x1xi1>, vector<8x1xi32>
    %c8_i32_415 = arith.constant 8 : i32
    %1254 = vector.broadcast %c8_i32_415 : i32 to vector<8x1xi32>
    %1255 = arith.ori %1225, %1254 : vector<8x1xi32>
    %1256 = vector.broadcast %1255 : vector<8x1xi32> to vector<8x512xi32>
    %1257 = arith.cmpi sge, %65, %1256 : vector<8x512xi32>
    %1258 = vector.broadcast %71 : vector<1x512xi1> to vector<8x512xi1>
    %1259 = arith.andi %1257, %1258 : vector<8x512xi1>
    %cst_416 = arith.constant 1.000000e+00 : f32
    %cst_417 = arith.constant 0.000000e+00 : f32
    %1260 = vector.broadcast %cst_416 : f32 to vector<8x512xf32>
    %1261 = vector.broadcast %cst_417 : f32 to vector<8x512xf32>
    %1262 = arith.select %1259, %1260, %1261 : vector<8x512xi1>, vector<8x512xf32>
    %cst_418 = arith.constant dense<0.000000e+00> : vector<8xf32>
    %1263 = vector.multi_reduction <add>, %1262, %cst_418 [1] : vector<8x512xf32> to vector<8xf32>
    %1264 = vector.shape_cast %1263 : vector<8xf32> to vector<8x1xf32>
    %cst_419 = arith.constant 9.600000e+01 : f32
    %1265 = vector.broadcast %cst_419 : f32 to vector<8x1xf32>
    %1266 = arith.cmpf oge, %1264, %1265 : vector<8x1xf32>
    %1267 = arith.select %1266, %1255, %1225 : vector<8x1xi1>, vector<8x1xi32>
    %c8_i32_420 = arith.constant 8 : i32
    %1268 = vector.broadcast %c8_i32_420 : i32 to vector<8x1xi32>
    %1269 = arith.ori %1239, %1268 : vector<8x1xi32>
    %1270 = vector.broadcast %1269 : vector<8x1xi32> to vector<8x512xi32>
    %1271 = arith.cmpi sge, %65, %1270 : vector<8x512xi32>
    %1272 = vector.broadcast %76 : vector<1x512xi1> to vector<8x512xi1>
    %1273 = arith.andi %1271, %1272 : vector<8x512xi1>
    %cst_421 = arith.constant 1.000000e+00 : f32
    %cst_422 = arith.constant 0.000000e+00 : f32
    %1274 = vector.broadcast %cst_421 : f32 to vector<8x512xf32>
    %1275 = vector.broadcast %cst_422 : f32 to vector<8x512xf32>
    %1276 = arith.select %1273, %1274, %1275 : vector<8x512xi1>, vector<8x512xf32>
    %cst_423 = arith.constant dense<0.000000e+00> : vector<8xf32>
    %1277 = vector.multi_reduction <add>, %1276, %cst_423 [1] : vector<8x512xf32> to vector<8xf32>
    %1278 = vector.shape_cast %1277 : vector<8xf32> to vector<8x1xf32>
    %cst_424 = arith.constant 1.280000e+02 : f32
    %1279 = vector.broadcast %cst_424 : f32 to vector<8x1xf32>
    %1280 = arith.cmpf oge, %1278, %1279 : vector<8x1xf32>
    %1281 = arith.select %1280, %1269, %1239 : vector<8x1xi1>, vector<8x1xi32>
    %c8_i32_425 = arith.constant 8 : i32
    %1282 = vector.broadcast %c8_i32_425 : i32 to vector<8x1xi32>
    %1283 = arith.ori %1253, %1282 : vector<8x1xi32>
    %1284 = vector.broadcast %1283 : vector<8x1xi32> to vector<8x512xi32>
    %1285 = arith.cmpi sge, %65, %1284 : vector<8x512xi32>
    %1286 = vector.broadcast %81 : vector<1x512xi1> to vector<8x512xi1>
    %1287 = arith.andi %1285, %1286 : vector<8x512xi1>
    %cst_426 = arith.constant 1.000000e+00 : f32
    %cst_427 = arith.constant 0.000000e+00 : f32
    %1288 = vector.broadcast %cst_426 : f32 to vector<8x512xf32>
    %1289 = vector.broadcast %cst_427 : f32 to vector<8x512xf32>
    %1290 = arith.select %1287, %1288, %1289 : vector<8x512xi1>, vector<8x512xf32>
    %cst_428 = arith.constant dense<0.000000e+00> : vector<8xf32>
    %1291 = vector.multi_reduction <add>, %1290, %cst_428 [1] : vector<8x512xf32> to vector<8xf32>
    %1292 = vector.shape_cast %1291 : vector<8xf32> to vector<8x1xf32>
    %cst_429 = arith.constant 3.200000e+01 : f32
    %1293 = vector.broadcast %cst_429 : f32 to vector<8x1xf32>
    %1294 = arith.cmpf oge, %1292, %1293 : vector<8x1xf32>
    %1295 = arith.select %1294, %1283, %1253 : vector<8x1xi1>, vector<8x1xi32>
    %c4_i32 = arith.constant 4 : i32
    %1296 = vector.broadcast %c4_i32 : i32 to vector<8x1xi32>
    %1297 = arith.ori %1267, %1296 : vector<8x1xi32>
    %1298 = vector.broadcast %1297 : vector<8x1xi32> to vector<8x512xi32>
    %1299 = arith.cmpi sge, %65, %1298 : vector<8x512xi32>
    %1300 = vector.broadcast %71 : vector<1x512xi1> to vector<8x512xi1>
    %1301 = arith.andi %1299, %1300 : vector<8x512xi1>
    %cst_430 = arith.constant 1.000000e+00 : f32
    %cst_431 = arith.constant 0.000000e+00 : f32
    %1302 = vector.broadcast %cst_430 : f32 to vector<8x512xf32>
    %1303 = vector.broadcast %cst_431 : f32 to vector<8x512xf32>
    %1304 = arith.select %1301, %1302, %1303 : vector<8x512xi1>, vector<8x512xf32>
    %cst_432 = arith.constant dense<0.000000e+00> : vector<8xf32>
    %1305 = vector.multi_reduction <add>, %1304, %cst_432 [1] : vector<8x512xf32> to vector<8xf32>
    %1306 = vector.shape_cast %1305 : vector<8xf32> to vector<8x1xf32>
    %cst_433 = arith.constant 9.600000e+01 : f32
    %1307 = vector.broadcast %cst_433 : f32 to vector<8x1xf32>
    %1308 = arith.cmpf oge, %1306, %1307 : vector<8x1xf32>
    %1309 = arith.select %1308, %1297, %1267 : vector<8x1xi1>, vector<8x1xi32>
    %c4_i32_434 = arith.constant 4 : i32
    %1310 = vector.broadcast %c4_i32_434 : i32 to vector<8x1xi32>
    %1311 = arith.ori %1281, %1310 : vector<8x1xi32>
    %1312 = vector.broadcast %1311 : vector<8x1xi32> to vector<8x512xi32>
    %1313 = arith.cmpi sge, %65, %1312 : vector<8x512xi32>
    %1314 = vector.broadcast %76 : vector<1x512xi1> to vector<8x512xi1>
    %1315 = arith.andi %1313, %1314 : vector<8x512xi1>
    %cst_435 = arith.constant 1.000000e+00 : f32
    %cst_436 = arith.constant 0.000000e+00 : f32
    %1316 = vector.broadcast %cst_435 : f32 to vector<8x512xf32>
    %1317 = vector.broadcast %cst_436 : f32 to vector<8x512xf32>
    %1318 = arith.select %1315, %1316, %1317 : vector<8x512xi1>, vector<8x512xf32>
    %cst_437 = arith.constant dense<0.000000e+00> : vector<8xf32>
    %1319 = vector.multi_reduction <add>, %1318, %cst_437 [1] : vector<8x512xf32> to vector<8xf32>
    %1320 = vector.shape_cast %1319 : vector<8xf32> to vector<8x1xf32>
    %cst_438 = arith.constant 1.280000e+02 : f32
    %1321 = vector.broadcast %cst_438 : f32 to vector<8x1xf32>
    %1322 = arith.cmpf oge, %1320, %1321 : vector<8x1xf32>
    %1323 = arith.select %1322, %1311, %1281 : vector<8x1xi1>, vector<8x1xi32>
    %c4_i32_439 = arith.constant 4 : i32
    %1324 = vector.broadcast %c4_i32_439 : i32 to vector<8x1xi32>
    %1325 = arith.ori %1295, %1324 : vector<8x1xi32>
    %1326 = vector.broadcast %1325 : vector<8x1xi32> to vector<8x512xi32>
    %1327 = arith.cmpi sge, %65, %1326 : vector<8x512xi32>
    %1328 = vector.broadcast %81 : vector<1x512xi1> to vector<8x512xi1>
    %1329 = arith.andi %1327, %1328 : vector<8x512xi1>
    %cst_440 = arith.constant 1.000000e+00 : f32
    %cst_441 = arith.constant 0.000000e+00 : f32
    %1330 = vector.broadcast %cst_440 : f32 to vector<8x512xf32>
    %1331 = vector.broadcast %cst_441 : f32 to vector<8x512xf32>
    %1332 = arith.select %1329, %1330, %1331 : vector<8x512xi1>, vector<8x512xf32>
    %cst_442 = arith.constant dense<0.000000e+00> : vector<8xf32>
    %1333 = vector.multi_reduction <add>, %1332, %cst_442 [1] : vector<8x512xf32> to vector<8xf32>
    %1334 = vector.shape_cast %1333 : vector<8xf32> to vector<8x1xf32>
    %cst_443 = arith.constant 3.200000e+01 : f32
    %1335 = vector.broadcast %cst_443 : f32 to vector<8x1xf32>
    %1336 = arith.cmpf oge, %1334, %1335 : vector<8x1xf32>
    %1337 = arith.select %1336, %1325, %1295 : vector<8x1xi1>, vector<8x1xi32>
    %c2_i32 = arith.constant 2 : i32
    %1338 = vector.broadcast %c2_i32 : i32 to vector<8x1xi32>
    %1339 = arith.ori %1309, %1338 : vector<8x1xi32>
    %1340 = vector.broadcast %1339 : vector<8x1xi32> to vector<8x512xi32>
    %1341 = arith.cmpi sge, %65, %1340 : vector<8x512xi32>
    %1342 = vector.broadcast %71 : vector<1x512xi1> to vector<8x512xi1>
    %1343 = arith.andi %1341, %1342 : vector<8x512xi1>
    %cst_444 = arith.constant 1.000000e+00 : f32
    %cst_445 = arith.constant 0.000000e+00 : f32
    %1344 = vector.broadcast %cst_444 : f32 to vector<8x512xf32>
    %1345 = vector.broadcast %cst_445 : f32 to vector<8x512xf32>
    %1346 = arith.select %1343, %1344, %1345 : vector<8x512xi1>, vector<8x512xf32>
    %cst_446 = arith.constant dense<0.000000e+00> : vector<8xf32>
    %1347 = vector.multi_reduction <add>, %1346, %cst_446 [1] : vector<8x512xf32> to vector<8xf32>
    %1348 = vector.shape_cast %1347 : vector<8xf32> to vector<8x1xf32>
    %cst_447 = arith.constant 9.600000e+01 : f32
    %1349 = vector.broadcast %cst_447 : f32 to vector<8x1xf32>
    %1350 = arith.cmpf oge, %1348, %1349 : vector<8x1xf32>
    %1351 = arith.select %1350, %1339, %1309 : vector<8x1xi1>, vector<8x1xi32>
    %c2_i32_448 = arith.constant 2 : i32
    %1352 = vector.broadcast %c2_i32_448 : i32 to vector<8x1xi32>
    %1353 = arith.ori %1323, %1352 : vector<8x1xi32>
    %1354 = vector.broadcast %1353 : vector<8x1xi32> to vector<8x512xi32>
    %1355 = arith.cmpi sge, %65, %1354 : vector<8x512xi32>
    %1356 = vector.broadcast %76 : vector<1x512xi1> to vector<8x512xi1>
    %1357 = arith.andi %1355, %1356 : vector<8x512xi1>
    %cst_449 = arith.constant 1.000000e+00 : f32
    %cst_450 = arith.constant 0.000000e+00 : f32
    %1358 = vector.broadcast %cst_449 : f32 to vector<8x512xf32>
    %1359 = vector.broadcast %cst_450 : f32 to vector<8x512xf32>
    %1360 = arith.select %1357, %1358, %1359 : vector<8x512xi1>, vector<8x512xf32>
    %cst_451 = arith.constant dense<0.000000e+00> : vector<8xf32>
    %1361 = vector.multi_reduction <add>, %1360, %cst_451 [1] : vector<8x512xf32> to vector<8xf32>
    %1362 = vector.shape_cast %1361 : vector<8xf32> to vector<8x1xf32>
    %cst_452 = arith.constant 1.280000e+02 : f32
    %1363 = vector.broadcast %cst_452 : f32 to vector<8x1xf32>
    %1364 = arith.cmpf oge, %1362, %1363 : vector<8x1xf32>
    %1365 = arith.select %1364, %1353, %1323 : vector<8x1xi1>, vector<8x1xi32>
    %c2_i32_453 = arith.constant 2 : i32
    %1366 = vector.broadcast %c2_i32_453 : i32 to vector<8x1xi32>
    %1367 = arith.ori %1337, %1366 : vector<8x1xi32>
    %1368 = vector.broadcast %1367 : vector<8x1xi32> to vector<8x512xi32>
    %1369 = arith.cmpi sge, %65, %1368 : vector<8x512xi32>
    %1370 = vector.broadcast %81 : vector<1x512xi1> to vector<8x512xi1>
    %1371 = arith.andi %1369, %1370 : vector<8x512xi1>
    %cst_454 = arith.constant 1.000000e+00 : f32
    %cst_455 = arith.constant 0.000000e+00 : f32
    %1372 = vector.broadcast %cst_454 : f32 to vector<8x512xf32>
    %1373 = vector.broadcast %cst_455 : f32 to vector<8x512xf32>
    %1374 = arith.select %1371, %1372, %1373 : vector<8x512xi1>, vector<8x512xf32>
    %cst_456 = arith.constant dense<0.000000e+00> : vector<8xf32>
    %1375 = vector.multi_reduction <add>, %1374, %cst_456 [1] : vector<8x512xf32> to vector<8xf32>
    %1376 = vector.shape_cast %1375 : vector<8xf32> to vector<8x1xf32>
    %cst_457 = arith.constant 3.200000e+01 : f32
    %1377 = vector.broadcast %cst_457 : f32 to vector<8x1xf32>
    %1378 = arith.cmpf oge, %1376, %1377 : vector<8x1xf32>
    %1379 = arith.select %1378, %1367, %1337 : vector<8x1xi1>, vector<8x1xi32>
    %c1_i32 = arith.constant 1 : i32
    %1380 = vector.broadcast %c1_i32 : i32 to vector<8x1xi32>
    %1381 = arith.ori %1351, %1380 : vector<8x1xi32>
    %1382 = vector.broadcast %1381 : vector<8x1xi32> to vector<8x512xi32>
    %1383 = arith.cmpi sge, %65, %1382 : vector<8x512xi32>
    %1384 = vector.broadcast %71 : vector<1x512xi1> to vector<8x512xi1>
    %1385 = arith.andi %1383, %1384 : vector<8x512xi1>
    %cst_458 = arith.constant 1.000000e+00 : f32
    %cst_459 = arith.constant 0.000000e+00 : f32
    %1386 = vector.broadcast %cst_458 : f32 to vector<8x512xf32>
    %1387 = vector.broadcast %cst_459 : f32 to vector<8x512xf32>
    %1388 = arith.select %1385, %1386, %1387 : vector<8x512xi1>, vector<8x512xf32>
    %cst_460 = arith.constant dense<0.000000e+00> : vector<8xf32>
    %1389 = vector.multi_reduction <add>, %1388, %cst_460 [1] : vector<8x512xf32> to vector<8xf32>
    %1390 = vector.shape_cast %1389 : vector<8xf32> to vector<8x1xf32>
    %cst_461 = arith.constant 9.600000e+01 : f32
    %1391 = vector.broadcast %cst_461 : f32 to vector<8x1xf32>
    %1392 = arith.cmpf oge, %1390, %1391 : vector<8x1xf32>
    %1393 = arith.select %1392, %1381, %1351 : vector<8x1xi1>, vector<8x1xi32>
    %c1_i32_462 = arith.constant 1 : i32
    %1394 = vector.broadcast %c1_i32_462 : i32 to vector<8x1xi32>
    %1395 = arith.ori %1365, %1394 : vector<8x1xi32>
    %1396 = vector.broadcast %1395 : vector<8x1xi32> to vector<8x512xi32>
    %1397 = arith.cmpi sge, %65, %1396 : vector<8x512xi32>
    %1398 = vector.broadcast %76 : vector<1x512xi1> to vector<8x512xi1>
    %1399 = arith.andi %1397, %1398 : vector<8x512xi1>
    %cst_463 = arith.constant 1.000000e+00 : f32
    %cst_464 = arith.constant 0.000000e+00 : f32
    %1400 = vector.broadcast %cst_463 : f32 to vector<8x512xf32>
    %1401 = vector.broadcast %cst_464 : f32 to vector<8x512xf32>
    %1402 = arith.select %1399, %1400, %1401 : vector<8x512xi1>, vector<8x512xf32>
    %cst_465 = arith.constant dense<0.000000e+00> : vector<8xf32>
    %1403 = vector.multi_reduction <add>, %1402, %cst_465 [1] : vector<8x512xf32> to vector<8xf32>
    %1404 = vector.shape_cast %1403 : vector<8xf32> to vector<8x1xf32>
    %cst_466 = arith.constant 1.280000e+02 : f32
    %1405 = vector.broadcast %cst_466 : f32 to vector<8x1xf32>
    %1406 = arith.cmpf oge, %1404, %1405 : vector<8x1xf32>
    %1407 = arith.select %1406, %1395, %1365 : vector<8x1xi1>, vector<8x1xi32>
    %c1_i32_467 = arith.constant 1 : i32
    %1408 = vector.broadcast %c1_i32_467 : i32 to vector<8x1xi32>
    %1409 = arith.ori %1379, %1408 : vector<8x1xi32>
    %1410 = vector.broadcast %1409 : vector<8x1xi32> to vector<8x512xi32>
    %1411 = arith.cmpi sge, %65, %1410 : vector<8x512xi32>
    %1412 = vector.broadcast %81 : vector<1x512xi1> to vector<8x512xi1>
    %1413 = arith.andi %1411, %1412 : vector<8x512xi1>
    %cst_468 = arith.constant 1.000000e+00 : f32
    %cst_469 = arith.constant 0.000000e+00 : f32
    %1414 = vector.broadcast %cst_468 : f32 to vector<8x512xf32>
    %1415 = vector.broadcast %cst_469 : f32 to vector<8x512xf32>
    %1416 = arith.select %1413, %1414, %1415 : vector<8x512xi1>, vector<8x512xf32>
    %cst_470 = arith.constant dense<0.000000e+00> : vector<8xf32>
    %1417 = vector.multi_reduction <add>, %1416, %cst_470 [1] : vector<8x512xf32> to vector<8xf32>
    %1418 = vector.shape_cast %1417 : vector<8xf32> to vector<8x1xf32>
    %cst_471 = arith.constant 3.200000e+01 : f32
    %1419 = vector.broadcast %cst_471 : f32 to vector<8x1xf32>
    %1420 = arith.cmpf oge, %1418, %1419 : vector<8x1xf32>
    %1421 = arith.select %1420, %1409, %1379 : vector<8x1xi1>, vector<8x1xi32>
    %c192_i32_472 = arith.constant 192 : i32
    %1422 = vector.broadcast %c192_i32_472 : i32 to vector<1x512xi32>
    %1423 = arith.cmpi sge, %66, %1422 : vector<1x512xi32>
    %1424 = vector.shape_cast %1423 : vector<1x512xi1> to vector<1x512xi1>
    %1425 = vector.broadcast %1424 : vector<1x512xi1> to vector<8x512xi1>
    %1426 = vector.shape_cast %1407 : vector<8x1xi32> to vector<8x1xi32>
    %1427 = vector.broadcast %1426 : vector<8x1xi32> to vector<8x512xi32>
    %1428 = vector.shape_cast %1393 : vector<8x1xi32> to vector<8x1xi32>
    %1429 = vector.broadcast %1428 : vector<8x1xi32> to vector<8x512xi32>
    %1430 = arith.select %1425, %1427, %1429 : vector<8x512xi1>, vector<8x512xi32>
    %c448_i32_473 = arith.constant 448 : i32
    %1431 = vector.broadcast %c448_i32_473 : i32 to vector<1x512xi32>
    %1432 = arith.cmpi sge, %66, %1431 : vector<1x512xi32>
    %1433 = vector.shape_cast %1432 : vector<1x512xi1> to vector<1x512xi1>
    %1434 = vector.broadcast %1433 : vector<1x512xi1> to vector<8x512xi1>
    %1435 = vector.shape_cast %1421 : vector<8x1xi32> to vector<8x1xi32>
    %1436 = vector.broadcast %1435 : vector<8x1xi32> to vector<8x512xi32>
    %1437 = arith.select %1434, %1436, %1430 : vector<8x512xi1>, vector<8x512xi32>
    %1438 = arith.cmpi sge, %65, %1437 : vector<8x512xi32>
    %cst_474 = arith.constant 1.000000e+00 : f32
    %cst_475 = arith.constant 0.000000e+00 : f32
    %1439 = vector.broadcast %cst_474 : f32 to vector<8x512xf32>
    %1440 = vector.broadcast %cst_475 : f32 to vector<8x512xf32>
    %1441 = arith.select %1438, %1439, %1440 : vector<8x512xi1>, vector<8x512xf32>
    %c0_476 = arith.constant 0 : index
    %c0_477 = arith.constant 0 : index
    %1442 = vector.load %arg7[%c0_476, %c0_477] : memref<8x512xf32, #tpu.memory_space<vmem>>, vector<8x512xf32>
    tpu.vector_store %arg7[%c0_476, %c0_477], %1441 {strides = array<i32>} : memref<8x512xf32, #tpu.memory_space<vmem>>, vector<8x512xf32>,
    return
  }
  func.func @transform_0(%arg0: i32, %arg1: memref<1xi32, #tpu.memory_space<smem>>) -> (i32, i32) {
    %c0_i32 = arith.constant 0 : i32
    %c0_i32_0 = arith.constant 0 : i32
    return %arg0, %c0_i32 : i32, i32
  }
  func.func @transform_1(%arg0: i32, %arg1: memref<1xi32, #tpu.memory_space<smem>>) -> (i32, i32) {
    %c0_i32 = arith.constant 0 : i32
    %c0_i32_0 = arith.constant 0 : i32
    %c0_i32_1 = arith.constant 0 : i32
    return %c0_i32, %c0_i32_0 : i32, i32
  }
  func.func @transform_2(%arg0: i32, %arg1: memref<1xi32, #tpu.memory_space<smem>>) -> (i32, i32) {
    %c0_i32 = arith.constant 0 : i32
    %c0_i32_0 = arith.constant 0 : i32
    %c0_i32_1 = arith.constant 0 : i32
    return %c0_i32, %c0_i32_0 : i32, i32
  }
  func.func @transform_3(%arg0: i32, %arg1: memref<1xi32, #tpu.memory_space<smem>>) -> (i32, i32) {
    %c0_i32 = arith.constant 0 : i32
    %c0_i32_0 = arith.constant 0 : i32
    %c0_i32_1 = arith.constant 0 : i32
    return %c0_i32, %c0_i32_0 : i32, i32
  }
  func.func @transform_4(%arg0: i32, %arg1: memref<1xi32, #tpu.memory_space<smem>>) -> (i32, i32) {
    %c0_i32 = arith.constant 0 : i32
    %c0_i32_0 = arith.constant 0 : i32
    %c0_i32_1 = arith.constant 0 : i32
    return %c0_i32, %c0_i32_0 : i32, i32
  }
  func.func @transform_5(%arg0: i32, %arg1: memref<1xi32, #tpu.memory_space<smem>>) -> (i32, i32) {
    %c0_i32 = arith.constant 0 : i32
    %c0_i32_0 = arith.constant 0 : i32
    return %arg0, %c0_i32 : i32, i32
  }
}

</mosaic_0001>

<llo_original>
// kernel: _impl.1
$region0: #{_impl.1}
  #allocation0 [shape = 'u32[]', space=smem, size = 0x4, offset = 0x4, fixed_abs, tag = 'smem constant byte address 0x4 - core index']
  #allocation1 [shape = 'u32[144,128]{1,0:T(1,128)}', space=vmem, size = 0x12000, scoped, tag = 'internal scratch']
  #allocation2 [shape = 's32[1]{0}', space=sflag, size = 0x4, scoped, tag = 'scoped memory for _impl.1']
  #allocation3 [shape = 's32[1]{0:T(128)S(6)}', space=smem, size = 0x200, scoped, tag = 'prefetched SMEM operand 0']
  %s0 = inlined_call_operand.<no memory space> [shape: s32[1], index: 0, kind: input, shape index: {}]
  %s1 = inlined_call_operand.vmem [shape: f32[8,8], index: 1, kind: input, shape index: {}]
  %s2 = inlined_call_operand.vmem [shape: f32[8,32], index: 2, kind: input, shape index: {}]
  %s3 = inlined_call_operand.vmem [shape: f32[1,32], index: 3, kind: input, shape index: {}]
  %s4 = inlined_call_operand.hbm [shape: f32[32,512], index: 4, kind: input, shape index: {}]
  %s5 = inlined_call_operand.vmem [shape: f32[1,512], index: 5, kind: input, shape index: {}]
  %s6 = inlined_call_operand.vmem [shape: f32[8,512], index: 6, kind: output, shape index: {}]
  %s7 = sld [smem:[#allocation0]]
  $region34: #{_impl.1} parent=0
    _
  %s9 = ssub.s32 1, %s7
  %s10 = scalar_select 0, %s9, %s7
  %11 = sst [smem:[#allocation3]] %s0
  $region1: #{_impl.1} parent=0
    #allocation4 [shape = 'u8[65536]{0}', space=vmem, size = 0x10000, scoped, tag = 'input window, operand 4, single buffered']
    #allocation5 [shape = 's32[1]{0}', space=sflag, size = 0x4, scoped, tag = 'scoped memory for _impl.1']
    %12 = vsyncpa [#allocation5], 0
    // Predicated region
    $region2: #{_impl.1} parent=1 // pred_check
      _
    $region3: #{_impl.1} parent=1 // pred_check_branch
      %14 = sbr.rel (0) target = $region5
    $region4: #{_impl.1} parent=1 // pred_region
      _
    $region5: #{_impl.1} parent=1 // pred_fallthru
      _
    // Predicated region
    $region6: #{_impl.1} parent=1 // pred_check
      _
    $region7: #{_impl.1} parent=1 // pred_check_branch
      %16 = sbr.rel (0) target = $region9
    $region8: #{_impl.1} parent=1 // pred_region
      _
    $region9: #{_impl.1} parent=1 // pred_fallthru
      _
    // Predicated region
    $region10: #{_impl.1} parent=1 // pred_check
      _
    $region11: #{_impl.1} parent=1 // pred_check_branch
      %18 = sbr.rel (0) target = $region13
    $region12: #{_impl.1} parent=1 // pred_region
      _
    $region13: #{_impl.1} parent=1 // pred_fallthru
      _
    // Predicated region
    $region14: #{_impl.1} parent=1 // pred_check
      _
    $region15: #{_impl.1} parent=1 // pred_check_branch
      %20 = sbr.rel (0) target = $region17
    $region16: #{_impl.1} parent=1 // pred_region
      %s22 = ssub.s32 2048, 2048
      %23 = vsyncadd [#allocation5], %s22
      %s24 = sshll.u32 [#allocation4], 4
      %s25 = int_to_ptr.vmem [resolvable:$true] %s24
      %30 = dma.hbm_to_vmem [thread:$0]  %s4, 2048, %s25, [#allocation5], 512, 512, 32
    $region17: #{_impl.1} parent=1 // pred_fallthru
      _
    // Predicated region
    $region18: #{_impl.1} parent=1 // pred_check
      _
    $region19: #{_impl.1} parent=1 // pred_check_branch
      %32 = sbr.rel (0) target = $region21
    $region20: #{_impl.1} parent=1 // pred_region
      _
    $region21: #{_impl.1} parent=1 // pred_fallthru
      _
    // Predicated region
    $region22: #{_impl.1} parent=1 // pred_check
      _
    $region23: #{_impl.1} parent=1 // pred_check_branch
      %34 = sbr.rel (0) target = $region25
    $region24: #{_impl.1} parent=1 // pred_region
      %35 = dma.done [#allocation5], 2048
    $region25: #{_impl.1} parent=1 // pred_fallthru
      _
    %v36 = vld [vmem:[%s1] sm:$0xff]
    %v37 = vld [vmem:[%s2] sm:$0xff]
    %v38 = vld [vmem:[%s3] sm:$0x1]
    %v40 = vlaneseq
    %v41 = vshrl.u32 %v40, 7
    %v42 = vsub.s32 0, %v41
    %v43 = vrot.slane %v38, %v42
    %vm45 = vcmask 64512
    %v47 = vsel %vm45, %v36, 0
    %49 = vmatprep.subr.mxu0 0.0
    %50 = vmatpush1.msra.mxu0 %v37
    %51 = vmatprep.subr.mxu0 0.0
    %52 = vmatpush1.msra.mxu0 0.0
    %53 = vmatprep.subr.mxu0 0.0
    %54 = vmatpush1.msra.mxu0 0.0
    %55 = vmatprep.subr.mxu0 0.0
    %56 = vmatpush1.msra.mxu0 0.0
    %57 = vmatprep.subr.mxu0 0.0
    %58 = vmatpush1.msra.mxu0 0.0
    %59 = vmatprep.subr.mxu0 0.0
    %60 = vmatpush1.msra.mxu0 0.0
    %61 = vmatprep.subr.mxu0 0.0
    %62 = vmatpush1.msra.mxu0 0.0
    %63 = vmatprep.subr.mxu0 0.0
    %64 = vmatpush1.msra.mxu0 0.0
    %65 = vmatprep.subr.mxu0 0.0
    %66 = vmatpush1.msra.mxu0 0.0
    %67 = vmatprep.subr.mxu0 0.0
    %68 = vmatpush1.msra.mxu0 0.0
    %69 = vmatprep.subr.mxu0 0.0
    %70 = vmatpush1.msra.mxu0 0.0
    %71 = vmatprep.subr.mxu0 0.0
    %72 = vmatpush1.msra.mxu0 0.0
    %73 = vmatprep.subr.mxu0 0.0
    %74 = vmatpush1.msra.mxu0 0.0
    %75 = vmatprep.subr.mxu0 0.0
    %76 = vmatpush1.msra.mxu0 0.0
    %77 = vmatprep.subr.mxu0 0.0
    %78 = vmatpush1.msra.mxu0 0.0
    %79 = vmatprep.subr.mxu0 0.0
    %80 = vmatpush1.msra.mxu0 0.0
    %81 = vmatprep.subr.mxu0 0.0
    %82 = vmatpush1.msra.mxu0 0.0
    %83 = vmatprep.subr.mxu0 0.0
    %84 = vmatpush1.msra.mxu0 0.0
    %85 = vmatprep.subr.mxu0 0.0
    %86 = vmatpush1.msra.mxu0 0.0
    %87 = vmatprep.subr.mxu0 0.0
    %88 = vmatpush1.msra.mxu0 0.0
    %89 = vmatprep.subr.mxu0 0.0
    %90 = vmatpush1.msra.mxu0 0.0
    %91 = vmatprep.subr.mxu0 0.0
    %92 = vmatpush1.msra.mxu0 0.0
    %93 = vmatprep.subr.mxu0 0.0
    %94 = vmatpush1.msra.mxu0 0.0
    %95 = vmatprep.subr.mxu0 0.0
    %96 = vmatpush1.msra.mxu0 0.0
    %97 = vmatprep.subr.mxu0 0.0
    %98 = vmatpush1.msra.mxu0 0.0
    %99 = vmatprep.subr.mxu0 0.0
    %100 = vmatpush1.msra.mxu0 0.0
    %101 = vmatprep.subr.mxu0 0.0
    %102 = vmatpush1.msra.mxu0 0.0
    %103 = vmatprep.subr.mxu0 0.0
    %104 = vmatpush1.msra.mxu0 0.0
    %105 = vmatprep.subr.mxu0 0.0
    %106 = vmatpush1.msra.mxu0 0.0
    %107 = vmatprep.subr.mxu0 0.0
    %108 = vmatpush1.msra.mxu0 0.0
    %109 = vmatprep.subr.mxu0 0.0
    %110 = vmatpush1.msra.mxu0 0.0
    %111 = vmatprep.subr.mxu0 0.0
    %112 = vmatpush1.msra.mxu0 0.0
    %113 = vmatprep.mubr.f32.mxu0 0.0
    %114 = vmatmul.mubr.f32.gmra.mrb[0].mxu0 %v47
    %v115 = vpop.f32.mrb[0].mxu0
    %v116 = vadd.f32 %v43, %v115
    %v117 = vpop.f32.mrb[0].mxu0
    %118 = vdwg.mxu0
    %v119 = vmax.f32 %v116, 0.0
    %v120 = vld [vmem:[#allocation4] sm:$0xff]
    %v121 = vld [vmem:[#allocation4 + $0x8] sm:$0xff]
    %v122 = vld [vmem:[#allocation4 + $0x10] sm:$0xff]
    %v123 = vld [vmem:[#allocation4 + $0x18] sm:$0xff]
    %v124 = vld [vmem:[#allocation4 + $0x20] sm:$0xff]
    %v125 = vld [vmem:[#allocation4 + $0x28] sm:$0xff]
    %v126 = vld [vmem:[#allocation4 + $0x30] sm:$0xff]
    %v127 = vld [vmem:[#allocation4 + $0x38] sm:$0xff]
    %v128 = vld [vmem:[#allocation4 + $0x40] sm:$0xff]
    %v129 = vld [vmem:[#allocation4 + $0x48] sm:$0xff]
    %v130 = vld [vmem:[#allocation4 + $0x50] sm:$0xff]
    %v131 = vld [vmem:[#allocation4 + $0x58] sm:$0xff]
    %v132 = vld [vmem:[#allocation4 + $0x60] sm:$0xff]
    %v133 = vld [vmem:[#allocation4 + $0x68] sm:$0xff]
    %v134 = vld [vmem:[#allocation4 + $0x70] sm:$0xff]
    %v135 = vld [vmem:[#allocation4 + $0x78] sm:$0xff]
    %v136 = vld [vmem:[%s5] sm:$0xf]
    %v138 = vlaneseq
    %v139 = vshrl.u32 %v138, 7
    %v140 = vsub.s32 0, %v139
    %v141 = vrot.slane %v136, %v140
    %v142 = vlaneseq
    %v143 = vshrl.u32 %v142, 7
    %v144 = vsub.s32 1, %v143
    %v145 = vrot.slane %v136, %v144
    %v146 = vlaneseq
    %v147 = vshrl.u32 %v146, 7
    %v148 = vsub.s32 2, %v147
    %v149 = vrot.slane %v136, %v148
    %v150 = vlaneseq
    %v151 = vshrl.u32 %v150, 7
    %v152 = vsub.s32 3, %v151
    %v153 = vrot.slane %v136, %v152
    %vm158 = vcmask 261120
    %v160 = vsel %vm158, %v119, 0
    %162 = vmatprep.subr.mxu0 %v121
    %163 = vmatpush1.msra.mxu0 %v120
    %164 = vmatprep.subr.mxu0 %v125
    %165 = vmatpush1.msra.mxu0 %v124
    %166 = vmatprep.subr.mxu0 %v129
    %167 = vmatpush1.msra.mxu0 %v128
    %168 = vmatprep.subr.mxu0 %v133
    %169 = vmatpush1.msra.mxu0 %v132
    %170 = vmatprep.subr.mxu0 0.0
    %171 = vmatpush1.msra.mxu0 0.0
    %172 = vmatprep.subr.mxu0 0.0
    %173 = vmatpush1.msra.mxu0 0.0
    %174 = vmatprep.subr.mxu0 0.0
    %175 = vmatpush1.msra.mxu0 0.0
    %176 = vmatprep.subr.mxu0 0.0
    %177 = vmatpush1.msra.mxu0 0.0
    %178 = vmatprep.subr.mxu0 0.0
    %179 = vmatpush1.msra.mxu0 0.0
    %180 = vmatprep.subr.mxu0 0.0
    %181 = vmatpush1.msra.mxu0 0.0
    %182 = vmatprep.subr.mxu0 0.0
    %183 = vmatpush1.msra.mxu0 0.0
    %184 = vmatprep.subr.mxu0 0.0
    %185 = vmatpush1.msra.mxu0 0.0
    %186 = vmatprep.subr.mxu0 0.0
    %187 = vmatpush1.msra.mxu0 0.0
    %188 = vmatprep.subr.mxu0 0.0
    %189 = vmatpush1.msra.mxu0 0.0
    %190 = vmatprep.subr.mxu0 0.0
    %191 = vmatpush1.msra.mxu0 0.0
    %192 = vmatprep.subr.mxu0 0.0
    %193 = vmatpush1.msra.mxu0 0.0
    %194 = vmatprep.subr.mxu0 0.0
    %195 = vmatpush1.msra.mxu0 0.0
    %196 = vmatprep.subr.mxu0 0.0
    %197 = vmatpush1.msra.mxu0 0.0
    %198 = vmatprep.subr.mxu0 0.0
    %199 = vmatpush1.msra.mxu0 0.0
    %200 = vmatprep.subr.mxu0 0.0
    %201 = vmatpush1.msra.mxu0 0.0
    %202 = vmatprep.subr.mxu0 0.0
    %203 = vmatpush1.msra.mxu0 0.0
    %204 = vmatprep.subr.mxu0 0.0
    %205 = vmatpush1.msra.mxu0 0.0
    %206 = vmatprep.subr.mxu0 0.0
    %207 = vmatpush1.msra.mxu0 0.0
    %208 = vmatprep.subr.mxu0 0.0
    %209 = vmatpush1.msra.mxu0 0.0
    %210 = vmatprep.subr.mxu0 0.0
    %211 = vmatpush1.msra.mxu0 0.0
    %212 = vmatprep.subr.mxu0 0.0
    %213 = vmatpush1.msra.mxu0 0.0
    %214 = vmatprep.subr.mxu0 0.0
    %215 = vmatpush1.msra.mxu0 0.0
    %216 = vmatprep.subr.mxu0 0.0
    %217 = vmatpush1.msra.mxu0 0.0
    %218 = vmatprep.subr.mxu0 0.0
    %219 = vmatpush1.msra.mxu0 0.0
    %220 = vmatprep.subr.mxu0 0.0
    %221 = vmatpush1.msra.mxu0 0.0
    %222 = vmatprep.subr.mxu0 0.0
    %223 = vmatpush1.msra.mxu0 0.0
    %224 = vmatprep.subr.mxu0 0.0
    %225 = vmatpush1.msra.mxu0 0.0
    %226 = vmatprep.mubr.f32.mxu0 0.0
    %227 = vmatmul.mubr.f32.gmra.mrb[0].mxu0 %v160
    %v228 = vpop.f32.mrb[0].mxu0
    %v229 = vadd.f32 %v141, %v228
    %v230 = vpop.f32.mrb[0].mxu0
    %v231 = vadd.f32 %v145, %v230
    %232 = vdwg.mxu0
    %233 = vmatprep.subr.mxu0 %v123
    %234 = vmatpush1.msra.mxu0 %v122
    %235 = vmatprep.subr.mxu0 %v127
    %236 = vmatpush1.msra.mxu0 %v126
    %237 = vmatprep.subr.mxu0 %v131
    %238 = vmatpush1.msra.mxu0 %v130
    %239 = vmatprep.subr.mxu0 %v135
    %240 = vmatpush1.msra.mxu0 %v134
    %241 = vmatprep.subr.mxu0 0.0
    %242 = vmatpush1.msra.mxu0 0.0
    %243 = vmatprep.subr.mxu0 0.0
    %244 = vmatpush1.msra.mxu0 0.0
    %245 = vmatprep.subr.mxu0 0.0
    %246 = vmatpush1.msra.mxu0 0.0
    %247 = vmatprep.subr.mxu0 0.0
    %248 = vmatpush1.msra.mxu0 0.0
    %249 = vmatprep.subr.mxu0 0.0
    %250 = vmatpush1.msra.mxu0 0.0
    %251 = vmatprep.subr.mxu0 0.0
    %252 = vmatpush1.msra.mxu0 0.0
    %253 = vmatprep.subr.mxu0 0.0
    %254 = vmatpush1.msra.mxu0 0.0
    %255 = vmatprep.subr.mxu0 0.0
    %256 = vmatpush1.msra.mxu0 0.0
    %257 = vmatprep.subr.mxu0 0.0
    %258 = vmatpush1.msra.mxu0 0.0
    %259 = vmatprep.subr.mxu0 0.0
    %260 = vmatpush1.msra.mxu0 0.0
    %261 = vmatprep.subr.mxu0 0.0
    %262 = vmatpush1.msra.mxu0 0.0
    %263 = vmatprep.subr.mxu0 0.0
    %264 = vmatpush1.msra.mxu0 0.0
    %265 = vmatprep.subr.mxu0 0.0
    %266 = vmatpush1.msra.mxu0 0.0
    %267 = vmatprep.subr.mxu0 0.0
    %268 = vmatpush1.msra.mxu0 0.0
    %269 = vmatprep.subr.mxu0 0.0
    %270 = vmatpush1.msra.mxu0 0.0
    %271 = vmatprep.subr.mxu0 0.0
    %272 = vmatpush1.msra.mxu0 0.0
    %273 = vmatprep.subr.mxu0 0.0
    %274 = vmatpush1.msra.mxu0 0.0
    %275 = vmatprep.subr.mxu0 0.0
    %276 = vmatpush1.msra.mxu0 0.0
    %277 = vmatprep.subr.mxu0 0.0
    %278 = vmatpush1.msra.mxu0 0.0
    %279 = vmatprep.subr.mxu0 0.0
    %280 = vmatpush1.msra.mxu0 0.0
    %281 = vmatprep.subr.mxu0 0.0
    %282 = vmatpush1.msra.mxu0 0.0
    %283 = vmatprep.subr.mxu0 0.0
    %284 = vmatpush1.msra.mxu0 0.0
    %285 = vmatprep.subr.mxu0 0.0
    %286 = vmatpush1.msra.mxu0 0.0
    %287 = vmatprep.subr.mxu0 0.0
    %288 = vmatpush1.msra.mxu0 0.0
    %289 = vmatprep.subr.mxu0 0.0
    %290 = vmatpush1.msra.mxu0 0.0
    %291 = vmatprep.subr.mxu0 0.0
    %292 = vmatpush1.msra.mxu0 0.0
    %293 = vmatprep.subr.mxu0 0.0
    %294 = vmatpush1.msra.mxu0 0.0
    %295 = vmatprep.subr.mxu0 0.0
    %296 = vmatpush1.msra.mxu0 0.0
    %297 = vmatprep.mubr.f32.mxu0 0.0
    %298 = vmatmul.mubr.f32.gmra.mrb[0].mxu0 %v160
    %v299 = vpop.f32.mrb[0].mxu0
    %v300 = vadd.f32 %v149, %v299
    %v301 = vpop.f32.mrb[0].mxu0
    %v302 = vadd.f32 %v153, %v301
    %303 = vdwg.mxu0
    %v304 = vlaneseq
    %v305 = vshrl.u32 %v304, 7
    %s306 = smul.u32 0, 8
    %v307 = vstv %s306
    %v308 = vadd.s32 %v305, %v307
    %v309 = vlaneseq
    %v310 = vand.u32 %v309, 127
    %v311 = vadd.s32 %v310, 128
    %v312 = vadd.s32 %v310, 256
    %v313 = vadd.s32 %v310, 384
    %s314 = sld [smem:[#allocation3]]
    %v315 = vmul.u32 %v308, 512
    %v316 = vadd.s32 %v315, %v310
    %v317 = vadd.s32 %v315, %v311
    %v318 = vadd.s32 %v315, %v312
    %v319 = vadd.s32 %v315, %v313
    %s320 = smul.u32 %s314, 1663821227
    %v321 = vstv %s320
    %v322 = vadd.s32 %v316, %v321
    %v323 = vadd.s32 %v317, %v321
    %v324 = vadd.s32 %v318, %v321
    %v325 = vadd.s32 %v319, %v321
    %v326 = vshra.s32 %v322, 16
    %v327 = vshra.s32 %v323, 16
    %v328 = vshra.s32 %v324, 16
    %v329 = vshra.s32 %v325, 16
    %v330 = vand.u32 %v326, 65535
    %v331 = vand.u32 %v327, 65535
    %v332 = vand.u32 %v328, 65535
    %v333 = vand.u32 %v329, 65535
    %v334 = vxor.u32 %v322, %v330
    %v335 = vxor.u32 %v323, %v331
    %v336 = vxor.u32 %v324, %v332
    %v337 = vxor.u32 %v325, %v333
    %v338 = vmul.u32 %v334, 2146121005
    %v339 = vmul.u32 %v335, 2146121005
    %v340 = vmul.u32 %v336, 2146121005
    %v341 = vmul.u32 %v337, 2146121005
    %v342 = vshra.s32 %v338, 15
    %v343 = vshra.s32 %v339, 15
    %v344 = vshra.s32 %v340, 15
    %v345 = vshra.s32 %v341, 15
    %v346 = vand.u32 %v342, 131071
    %v347 = vand.u32 %v343, 131071
    %v348 = vand.u32 %v344, 131071
    %v349 = vand.u32 %v345, 131071
    %v350 = vxor.u32 %v338, %v346
    %v351 = vxor.u32 %v339, %v347
    %v352 = vxor.u32 %v340, %v348
    %v353 = vxor.u32 %v341, %v349
    %v354 = vmul.u32 %v350, 2221713035
    %v355 = vmul.u32 %v351, 2221713035
    %v356 = vmul.u32 %v352, 2221713035
    %v357 = vmul.u32 %v353, 2221713035
    %v358 = vshra.s32 %v354, 16
    %v359 = vshra.s32 %v355, 16
    %v360 = vshra.s32 %v356, 16
    %v361 = vshra.s32 %v357, 16
    %v362 = vand.u32 %v358, 65535
    %v363 = vand.u32 %v359, 65535
    %v364 = vand.u32 %v360, 65535
    %v365 = vand.u32 %v361, 65535
    %v366 = vxor.u32 %v354, %v362
    %v367 = vxor.u32 %v355, %v363
    %v368 = vxor.u32 %v356, %v364
    %v369 = vxor.u32 %v357, %v365
    %v370 = vshra.s32 %v366, 9
    %v371 = vshra.s32 %v367, 9
    %v372 = vshra.s32 %v368, 9
    %v373 = vshra.s32 %v369, 9
    %v374 = vand.u32 %v370, 8388607
    %v375 = vand.u32 %v371, 8388607
    %v376 = vand.u32 %v372, 8388607
    %v377 = vand.u32 %v373, 8388607
    %v378 = vcvt.s32.f32 %v374
    %v379 = vcvt.s32.f32 %v375
    %v380 = vcvt.s32.f32 %v376
    %v381 = vcvt.s32.f32 %v377
    %v382 = vadd.f32 %v378, 0.5
    %v383 = vadd.f32 %v379, 0.5
    %v384 = vadd.f32 %v380, 0.5
    %v385 = vadd.f32 %v381, 0.5
    %v386 = vmul.f32 %v382, 1.1920929e-07
    %v387 = vmul.f32 %v383, 1.1920929e-07
    %v388 = vmul.f32 %v384, 1.1920929e-07
    %v389 = vmul.f32 %v385, 1.1920929e-07
    %v390 = vlog2.pop %v386
    %v391 = vmul.f32 %v390, 0.6931472
    %v392 = vlog2.pop %v387
    %v393 = vmul.f32 %v392, 0.6931472
    %v394 = vlog2.pop %v388
    %v395 = vmul.f32 %v394, 0.6931472
    %v396 = vlog2.pop %v389
    %v397 = vmul.f32 %v396, 0.6931472
    %v398 = vsub.f32 0.0, %v391
    %v399 = vsub.f32 0.0, %v393
    %v400 = vsub.f32 0.0, %v395
    %v401 = vsub.f32 0.0, %v397
    %v402 = vlog2.pop %v398
    %v403 = vmul.f32 %v402, 0.6931472
    %v404 = vlog2.pop %v399
    %v405 = vmul.f32 %v404, 0.6931472
    %v406 = vlog2.pop %v400
    %v407 = vmul.f32 %v406, 0.6931472
    %v408 = vlog2.pop %v401
    %v409 = vmul.f32 %v408, 0.6931472
    %v410 = vsub.f32 0.0, %v403
    %v411 = vsub.f32 0.0, %v405
    %v412 = vsub.f32 0.0, %v407
    %v413 = vsub.f32 0.0, %v409
    %v414 = vadd.f32 %v229, %v410
    %v415 = vadd.f32 %v231, %v411
    %v416 = vadd.f32 %v300, %v412
    %v417 = vadd.f32 %v302, %v413
    %vm422 = vcmp.lt.s32.totalorder %v414, 0
    %vm423 = vcmp.lt.s32.totalorder %v415, 0
    %vm424 = vcmp.lt.s32.totalorder %v416, 0
    %vm425 = vcmp.lt.s32.totalorder %v417, 0
    %v426 = vxor.u32 %v414, 2147483647
    %v427 = vxor.u32 %v415, 2147483647
    %v428 = vxor.u32 %v416, 2147483647
    %v429 = vxor.u32 %v417, 2147483647
    %v430 = vsel %vm422, %v426, %v414
    %v431 = vsel %vm423, %v427, %v415
    %v432 = vsel %vm424, %v428, %v416
    %v433 = vsel %vm425, %v429, %v417
    %vm434 = vcmp.ge.s32.totalorder %v310, 0
    %vm435 = vcmp.ge.s32.totalorder %v311, 0
    %vm436 = vcmp.ge.s32.totalorder %v312, 0
    %vm437 = vcmp.ge.s32.totalorder %v313, 0
    %vm438 = vcmp.lt.s32.totalorder %v310, 192
    %vm439 = vcmp.lt.s32.totalorder %v311, 192
    %vm440 = vcmp.lt.s32.totalorder %v312, 192
    %vm441 = vcmp.lt.s32.totalorder %v313, 192
    %vm442 = vmand %vm434, %vm438
    %vm443 = vmand %vm435, %vm439
    %vm444 = vmand %vm436, %vm440
    %vm445 = vmand %vm437, %vm441
    %vm446 = vcmp.ge.s32.totalorder %v310, 192
    %vm447 = vcmp.ge.s32.totalorder %v311, 192
    %vm448 = vcmp.ge.s32.totalorder %v312, 192
    %vm449 = vcmp.ge.s32.totalorder %v313, 192
    %vm450 = vcmp.lt.s32.totalorder %v310, 448
    %vm451 = vcmp.lt.s32.totalorder %v311, 448
    %vm452 = vcmp.lt.s32.totalorder %v312, 448
    %vm453 = vcmp.lt.s32.totalorder %v313, 448
    %vm454 = vmand %vm446, %vm450
    %vm455 = vmand %vm447, %vm451
    %vm456 = vmand %vm448, %vm452
    %vm457 = vmand %vm449, %vm453
    %vm458 = vcmp.ge.s32.totalorder %v310, 448
    %vm459 = vcmp.ge.s32.totalorder %v311, 448
    %vm460 = vcmp.ge.s32.totalorder %v312, 448
    %vm461 = vcmp.ge.s32.totalorder %v313, 448
    %vm462 = vcmp.lt.s32.totalorder %v310, 512
    %vm463 = vcmp.lt.s32.totalorder %v311, 512
    %vm464 = vcmp.lt.s32.totalorder %v312, 512
    %vm465 = vcmp.lt.s32.totalorder %v313, 512
    %vm466 = vmand %vm458, %vm462
    %vm467 = vmand %vm459, %vm463
    %vm468 = vmand %vm460, %vm464
    %vm469 = vmand %vm461, %vm465
    %vm470 = vcmp.ge.s32.totalorder %v430, 0
    %vm471 = vcmp.ge.s32.totalorder %v431, 0
    %vm472 = vcmp.ge.s32.totalorder %v432, 0
    %vm473 = vcmp.ge.s32.totalorder %v433, 0
    %v474 = vsel %vm442, 1, 0
    %v475 = vsel %vm443, 1, 0
    %v476 = vsel %vm444, 1, 0
    %v477 = vsel %vm445, 1, 0
    %vm478 = vcmp.eq.s32.totalorder %v474, 1
    %vm479 = vcmp.eq.s32.totalorder %v475, 1
    %vm480 = vcmp.eq.s32.totalorder %v476, 1
    %vm481 = vcmp.eq.s32.totalorder %v477, 1
    %vm482 = vmand %vm470, %vm478
    %vm483 = vmand %vm471, %vm479
    %vm484 = vmand %vm472, %vm480
    %vm485 = vmand %vm473, %vm481
    %v486 = vsel %vm482, 1.0, 0.0
    %v487 = vsel %vm483, 1.0, 0.0
    %v488 = vsel %vm484, 1.0, 0.0
    %v489 = vsel %vm485, 1.0, 0.0
    %v490 = vadd.f32 %v486, %v487
    %v491 = vadd.f32 %v490, %v488
    %v492 = vadd.f32 %v491, %v489
    %493 = vadd.xlane.f32.xlu0 %v492
    %v494 = vpop.xlane.xlu0 %493
    %vm495 = vcmp.ge.f32.partialorder %v494, 96.0
    %v496 = vsel %vm495, 0, 2147483648
    %v497 = vsel %vm454, 1, 0
    %v498 = vsel %vm455, 1, 0
    %v499 = vsel %vm456, 1, 0
    %v500 = vsel %vm457, 1, 0
    %vm501 = vcmp.eq.s32.totalorder %v497, 1
    %vm502 = vcmp.eq.s32.totalorder %v498, 1
    %vm503 = vcmp.eq.s32.totalorder %v499, 1
    %vm504 = vcmp.eq.s32.totalorder %v500, 1
    %vm505 = vmand %vm470, %vm501
    %vm506 = vmand %vm471, %vm502
    %vm507 = vmand %vm472, %vm503
    %vm508 = vmand %vm473, %vm504
    %v509 = vsel %vm505, 1.0, 0.0
    %v510 = vsel %vm506, 1.0, 0.0
    %v511 = vsel %vm507, 1.0, 0.0
    %v512 = vsel %vm508, 1.0, 0.0
    %v513 = vadd.f32 %v509, %v510
    %v514 = vadd.f32 %v513, %v511
    %v515 = vadd.f32 %v514, %v512
    %516 = vadd.xlane.f32.xlu0 %v515
    %v517 = vpop.xlane.xlu0 %516
    %vm518 = vcmp.ge.f32.partialorder %v517, 128.0
    %v519 = vsel %vm518, 0, 2147483648
    %v520 = vsel %vm466, 1, 0
    %v521 = vsel %vm467, 1, 0
    %v522 = vsel %vm468, 1, 0
    %v523 = vsel %vm469, 1, 0
    %vm524 = vcmp.eq.s32.totalorder %v520, 1
    %vm525 = vcmp.eq.s32.totalorder %v521, 1
    %vm526 = vcmp.eq.s32.totalorder %v522, 1
    %vm527 = vcmp.eq.s32.totalorder %v523, 1
    %vm528 = vmand %vm470, %vm524
    %vm529 = vmand %vm471, %vm525
    %vm530 = vmand %vm472, %vm526
    %vm531 = vmand %vm473, %vm527
    %v532 = vsel %vm528, 1.0, 0.0
    %v533 = vsel %vm529, 1.0, 0.0
    %v534 = vsel %vm530, 1.0, 0.0
    %v535 = vsel %vm531, 1.0, 0.0
    %v536 = vadd.f32 %v532, %v533
    %v537 = vadd.f32 %v536, %v534
    %v538 = vadd.f32 %v537, %v535
    %539 = vadd.xlane.f32.xlu0 %v538
    %v540 = vpop.xlane.xlu0 %539
    %vm541 = vcmp.ge.f32.partialorder %v540, 32.0
    %v542 = vsel %vm541, 0, 2147483648
    %v543 = vor.u32 %v496, 1073741824
    %vm544 = vcmp.ge.s32.totalorder %v430, %v543
    %vm545 = vcmp.ge.s32.totalorder %v431, %v543
    %vm546 = vcmp.ge.s32.totalorder %v432, %v543
    %vm547 = vcmp.ge.s32.totalorder %v433, %v543
    %vm548 = vmand %vm544, %vm478
    %vm549 = vmand %vm545, %vm479
    %vm550 = vmand %vm546, %vm480
    %vm551 = vmand %vm547, %vm481
    %v552 = vsel %vm548, 1.0, 0.0
    %v553 = vsel %vm549, 1.0, 0.0
    %v554 = vsel %vm550, 1.0, 0.0
    %v555 = vsel %vm551, 1.0, 0.0
    %v556 = vadd.f32 %v552, %v553
    %v557 = vadd.f32 %v556, %v554
    %v558 = vadd.f32 %v557, %v555
    %559 = vadd.xlane.f32.xlu0 %v558
    %v560 = vpop.xlane.xlu0 %559
    %vm561 = vcmp.ge.f32.partialorder %v560, 96.0
    %v562 = vsel %vm561, %v543, %v496
    %v563 = vor.u32 %v519, 1073741824
    %vm564 = vcmp.ge.s32.totalorder %v430, %v563
    %vm565 = vcmp.ge.s32.totalorder %v431, %v563
    %vm566 = vcmp.ge.s32.totalorder %v432, %v563
    %vm567 = vcmp.ge.s32.totalorder %v433, %v563
    %vm568 = vmand %vm564, %vm501
    %vm569 = vmand %vm565, %vm502
    %vm570 = vmand %vm566, %vm503
    %vm571 = vmand %vm567, %vm504
    %v572 = vsel %vm568, 1.0, 0.0
    %v573 = vsel %vm569, 1.0, 0.0
    %v574 = vsel %vm570, 1.0, 0.0
    %v575 = vsel %vm571, 1.0, 0.0
    %v576 = vadd.f32 %v572, %v573
    %v577 = vadd.f32 %v576, %v574
    %v578 = vadd.f32 %v577, %v575
    %579 = vadd.xlane.f32.xlu0 %v578
    %v580 = vpop.xlane.xlu0 %579
    %vm581 = vcmp.ge.f32.partialorder %v580, 128.0
    %v582 = vsel %vm581, %v563, %v519
    %v583 = vor.u32 %v542, 1073741824
    %vm584 = vcmp.ge.s32.totalorder %v430, %v583
    %vm585 = vcmp.ge.s32.totalorder %v431, %v583
    %vm586 = vcmp.ge.s32.totalorder %v432, %v583
    %vm587 = vcmp.ge.s32.totalorder %v433, %v583
    %vm588 = vmand %vm584, %vm524
    %vm589 = vmand %vm585, %vm525
    %vm590 = vmand %vm586, %vm526
    %vm591 = vmand %vm587, %vm527
    %v592 = vsel %vm588, 1.0, 0.0
    %v593 = vsel %vm589, 1.0, 0.0
    %v594 = vsel %vm590, 1.0, 0.0
    %v595 = vsel %vm591, 1.0, 0.0
    %v596 = vadd.f32 %v592, %v593
    %v597 = vadd.f32 %v596, %v594
    %v598 = vadd.f32 %v597, %v595
    %599 = vadd.xlane.f32.xlu0 %v598
    %v600 = vpop.xlane.xlu0 %599
    %vm601 = vcmp.ge.f32.partialorder %v600, 32.0
    %v602 = vsel %vm601, %v583, %v542
    %v603 = vor.u32 %v562, 536870912
    %vm604 = vcmp.ge.s32.totalorder %v430, %v603
    %vm605 = vcmp.ge.s32.totalorder %v431, %v603
    %vm606 = vcmp.ge.s32.totalorder %v432, %v603
    %vm607 = vcmp.ge.s32.totalorder %v433, %v603
    %vm608 = vmand %vm604, %vm478
    %vm609 = vmand %vm605, %vm479
    %vm610 = vmand %vm606, %vm480
    %vm611 = vmand %vm607, %vm481
    %v612 = vsel %vm608, 1.0, 0.0
    %v613 = vsel %vm609, 1.0, 0.0
    %v614 = vsel %vm610, 1.0, 0.0
    %v615 = vsel %vm611, 1.0, 0.0
    %v616 = vadd.f32 %v612, %v613
    %v617 = vadd.f32 %v616, %v614
    %v618 = vadd.f32 %v617, %v615
    %619 = vadd.xlane.f32.xlu0 %v618
    %v620 = vpop.xlane.xlu0 %619
    %vm621 = vcmp.ge.f32.partialorder %v620, 96.0
    %v622 = vsel %vm621, %v603, %v562
    %v623 = vor.u32 %v582, 536870912
    %vm624 = vcmp.ge.s32.totalorder %v430, %v623
    %vm625 = vcmp.ge.s32.totalorder %v431, %v623
    %vm626 = vcmp.ge.s32.totalorder %v432, %v623
    %vm627 = vcmp.ge.s32.totalorder %v433, %v623
    %vm628 = vmand %vm624, %vm501
    %vm629 = vmand %vm625, %vm502
    %vm630 = vmand %vm626, %vm503
    %vm631 = vmand %vm627, %vm504
    %v632 = vsel %vm628, 1.0, 0.0
    %v633 = vsel %vm629, 1.0, 0.0
    %v634 = vsel %vm630, 1.0, 0.0
    %v635 = vsel %vm631, 1.0, 0.0
    %v636 = vadd.f32 %v632, %v633
    %v637 = vadd.f32 %v636, %v634
    %v638 = vadd.f32 %v637, %v635
    %639 = vadd.xlane.f32.xlu0 %v638
    %v640 = vpop.xlane.xlu0 %639
    %vm641 = vcmp.ge.f32.partialorder %v640, 128.0
    %v642 = vsel %vm641, %v623, %v582
    %v643 = vor.u32 %v602, 536870912
    %vm644 = vcmp.ge.s32.totalorder %v430, %v643
    %vm645 = vcmp.ge.s32.totalorder %v431, %v643
    %vm646 = vcmp.ge.s32.totalorder %v432, %v643
    %vm647 = vcmp.ge.s32.totalorder %v433, %v643
    %vm648 = vmand %vm644, %vm524
    %vm649 = vmand %vm645, %vm525
    %vm650 = vmand %vm646, %vm526
    %vm651 = vmand %vm647, %vm527
    %v652 = vsel %vm648, 1.0, 0.0
    %v653 = vsel %vm649, 1.0, 0.0
    %v654 = vsel %vm650, 1.0, 0.0
    %v655 = vsel %vm651, 1.0, 0.0
    %v656 = vadd.f32 %v652, %v653
    %v657 = vadd.f32 %v656, %v654
    %v658 = vadd.f32 %v657, %v655
    %659 = vadd.xlane.f32.xlu0 %v658
    %v660 = vpop.xlane.xlu0 %659
    %vm661 = vcmp.ge.f32.partialorder %v660, 32.0
    %v662 = vsel %vm661, %v643, %v602
    %v663 = vor.u32 %v622, 268435456
    %vm664 = vcmp.ge.s32.totalorder %v430, %v663
    %vm665 = vcmp.ge.s32.totalorder %v431, %v663
    %vm666 = vcmp.ge.s32.totalorder %v432, %v663
    %vm667 = vcmp.ge.s32.totalorder %v433, %v663
    %vm668 = vmand %vm664, %vm478
    %vm669 = vmand %vm665, %vm479
    %vm670 = vmand %vm666, %vm480
    %vm671 = vmand %vm667, %vm481
    %v672 = vsel %vm668, 1.0, 0.0
    %v673 = vsel %vm669, 1.0, 0.0
    %v674 = vsel %vm670, 1.0, 0.0
    %v675 = vsel %vm671, 1.0, 0.0
    %v676 = vadd.f32 %v672, %v673
    %v677 = vadd.f32 %v676, %v674
    %v678 = vadd.f32 %v677, %v675
    %679 = vadd.xlane.f32.xlu0 %v678
    %v680 = vpop.xlane.xlu0 %679
    %vm681 = vcmp.ge.f32.partialorder %v680, 96.0
    %v682 = vsel %vm681, %v663, %v622
    %v683 = vor.u32 %v642, 268435456
    %vm684 = vcmp.ge.s32.totalorder %v430, %v683
    %vm685 = vcmp.ge.s32.totalorder %v431, %v683
    %vm686 = vcmp.ge.s32.totalorder %v432, %v683
    %vm687 = vcmp.ge.s32.totalorder %v433, %v683
    %vm688 = vmand %vm684, %vm501
    %vm689 = vmand %vm685, %vm502
    %vm690 = vmand %vm686, %vm503
    %vm691 = vmand %vm687, %vm504
    %v692 = vsel %vm688, 1.0, 0.0
    %v693 = vsel %vm689, 1.0, 0.0
    %v694 = vsel %vm690, 1.0, 0.0
    %v695 = vsel %vm691, 1.0, 0.0
    %v696 = vadd.f32 %v692, %v693
    %v697 = vadd.f32 %v696, %v694
    %v698 = vadd.f32 %v697, %v695
    %699 = vadd.xlane.f32.xlu0 %v698
    %v700 = vpop.xlane.xlu0 %699
    %vm701 = vcmp.ge.f32.partialorder %v700, 128.0
    %v702 = vsel %vm701, %v683, %v642
    %v703 = vor.u32 %v662, 268435456
    %vm704 = vcmp.ge.s32.totalorder %v430, %v703
    %vm705 = vcmp.ge.s32.totalorder %v431, %v703
    %vm706 = vcmp.ge.s32.totalorder %v432, %v703
    %vm707 = vcmp.ge.s32.totalorder %v433, %v703
    %vm708 = vmand %vm704, %vm524
    %vm709 = vmand %vm705, %vm525
    %vm710 = vmand %vm706, %vm526
    %vm711 = vmand %vm707, %vm527
    %v712 = vsel %vm708, 1.0, 0.0
    %v713 = vsel %vm709, 1.0, 0.0
    %v714 = vsel %vm710, 1.0, 0.0
    %v715 = vsel %vm711, 1.0, 0.0
    %v716 = vadd.f32 %v712, %v713
    %v717 = vadd.f32 %v716, %v714
    %v718 = vadd.f32 %v717, %v715
    %719 = vadd.xlane.f32.xlu0 %v718
    %v720 = vpop.xlane.xlu0 %719
    %vm721 = vcmp.ge.f32.partialorder %v720, 32.0
    %v722 = vsel %vm721, %v703, %v662
    %v723 = vor.u32 %v682, 134217728
    %vm724 = vcmp.ge.s32.totalorder %v430, %v723
    %vm725 = vcmp.ge.s32.totalorder %v431, %v723
    %vm726 = vcmp.ge.s32.totalorder %v432, %v723
    %vm727 = vcmp.ge.s32.totalorder %v433, %v723
    %vm728 = vmand %vm724, %vm478
    %vm729 = vmand %vm725, %vm479
    %vm730 = vmand %vm726, %vm480
    %vm731 = vmand %vm727, %vm481
    %v732 = vsel %vm728, 1.0, 0.0
    %v733 = vsel %vm729, 1.0, 0.0
    %v734 = vsel %vm730, 1.0, 0.0
    %v735 = vsel %vm731, 1.0, 0.0
    %v736 = vadd.f32 %v732, %v733
    %v737 = vadd.f32 %v736, %v734
    %v738 = vadd.f32 %v737, %v735
    %739 = vadd.xlane.f32.xlu0 %v738
    %v740 = vpop.xlane.xlu0 %739
    %vm741 = vcmp.ge.f32.partialorder %v740, 96.0
    %v742 = vsel %vm741, %v723, %v682
    %v743 = vor.u32 %v702, 134217728
    %vm744 = vcmp.ge.s32.totalorder %v430, %v743
    %vm745 = vcmp.ge.s32.totalorder %v431, %v743
    %vm746 = vcmp.ge.s32.totalorder %v432, %v743
    %vm747 = vcmp.ge.s32.totalorder %v433, %v743
    %vm748 = vmand %vm744, %vm501
    %vm749 = vmand %vm745, %vm502
    %vm750 = vmand %vm746, %vm503
    %vm751 = vmand %vm747, %vm504
    %v752 = vsel %vm748, 1.0, 0.0
    %v753 = vsel %vm749, 1.0, 0.0
    %v754 = vsel %vm750, 1.0, 0.0
    %v755 = vsel %vm751, 1.0, 0.0
    %v756 = vadd.f32 %v752, %v753
    %v757 = vadd.f32 %v756, %v754
    %v758 = vadd.f32 %v757, %v755
    %759 = vadd.xlane.f32.xlu0 %v758
    %v760 = vpop.xlane.xlu0 %759
    %vm761 = vcmp.ge.f32.partialorder %v760, 128.0
    %v762 = vsel %vm761, %v743, %v702
    %v763 = vor.u32 %v722, 134217728
    %vm764 = vcmp.ge.s32.totalorder %v430, %v763
    %vm765 = vcmp.ge.s32.totalorder %v431, %v763
    %vm766 = vcmp.ge.s32.totalorder %v432, %v763
    %vm767 = vcmp.ge.s32.totalorder %v433, %v763
    %vm768 = vmand %vm764, %vm524
    %vm769 = vmand %vm765, %vm525
    %vm770 = vmand %vm766, %vm526
    %vm771 = vmand %vm767, %vm527
    %v772 = vsel %vm768, 1.0, 0.0
    %v773 = vsel %vm769, 1.0, 0.0
    %v774 = vsel %vm770, 1.0, 0.0
    %v775 = vsel %vm771, 1.0, 0.0
    %v776 = vadd.f32 %v772, %v773
    %v777 = vadd.f32 %v776, %v774
    %v778 = vadd.f32 %v777, %v775
    %779 = vadd.xlane.f32.xlu0 %v778
    %v780 = vpop.xlane.xlu0 %779
    %vm781 = vcmp.ge.f32.partialorder %v780, 32.0
    %v782 = vsel %vm781, %v763, %v722
    %v783 = vor.u32 %v742, 67108864
    %vm784 = vcmp.ge.s32.totalorder %v430, %v783
    %vm785 = vcmp.ge.s32.totalorder %v431, %v783
    %vm786 = vcmp.ge.s32.totalorder %v432, %v783
    %vm787 = vcmp.ge.s32.totalorder %v433, %v783
    %vm788 = vmand %vm784, %vm478
    %vm789 = vmand %vm785, %vm479
    %vm790 = vmand %vm786, %vm480
    %vm791 = vmand %vm787, %vm481
    %v792 = vsel %vm788, 1.0, 0.0
    %v793 = vsel %vm789, 1.0, 0.0
    %v794 = vsel %vm790, 1.0, 0.0
    %v795 = vsel %vm791, 1.0, 0.0
    %v796 = vadd.f32 %v792, %v793
    %v797 = vadd.f32 %v796, %v794
    %v798 = vadd.f32 %v797, %v795
    %799 = vadd.xlane.f32.xlu0 %v798
    %v800 = vpop.xlane.xlu0 %799
    %vm801 = vcmp.ge.f32.partialorder %v800, 96.0
    %v802 = vsel %vm801, %v783, %v742
    %v803 = vor.u32 %v762, 67108864
    %vm804 = vcmp.ge.s32.totalorder %v430, %v803
    %vm805 = vcmp.ge.s32.totalorder %v431, %v803
    %vm806 = vcmp.ge.s32.totalorder %v432, %v803
    %vm807 = vcmp.ge.s32.totalorder %v433, %v803
    %vm808 = vmand %vm804, %vm501
    %vm809 = vmand %vm805, %vm502
    %vm810 = vmand %vm806, %vm503
    %vm811 = vmand %vm807, %vm504
    %v812 = vsel %vm808, 1.0, 0.0
    %v813 = vsel %vm809, 1.0, 0.0
    %v814 = vsel %vm810, 1.0, 0.0
    %v815 = vsel %vm811, 1.0, 0.0
    %v816 = vadd.f32 %v812, %v813
    %v817 = vadd.f32 %v816, %v814
    %v818 = vadd.f32 %v817, %v815
    %819 = vadd.xlane.f32.xlu0 %v818
    %v820 = vpop.xlane.xlu0 %819
    %vm821 = vcmp.ge.f32.partialorder %v820, 128.0
    %v822 = vsel %vm821, %v803, %v762
    %v823 = vor.u32 %v782, 67108864
    %vm824 = vcmp.ge.s32.totalorder %v430, %v823
    %vm825 = vcmp.ge.s32.totalorder %v431, %v823
    %vm826 = vcmp.ge.s32.totalorder %v432, %v823
    %vm827 = vcmp.ge.s32.totalorder %v433, %v823
    %vm828 = vmand %vm824, %vm524
    %vm829 = vmand %vm825, %vm525
    %vm830 = vmand %vm826, %vm526
    %vm831 = vmand %vm827, %vm527
    %v832 = vsel %vm828, 1.0, 0.0
    %v833 = vsel %vm829, 1.0, 0.0
    %v834 = vsel %vm830, 1.0, 0.0
    %v835 = vsel %vm831, 1.0, 0.0
    %v836 = vadd.f32 %v832, %v833
    %v837 = vadd.f32 %v836, %v834
    %v838 = vadd.f32 %v837, %v835
    %839 = vadd.xlane.f32.xlu0 %v838
    %v840 = vpop.xlane.xlu0 %839
    %vm841 = vcmp.ge.f32.partialorder %v840, 32.0
    %v842 = vsel %vm841, %v823, %v782
    %v843 = vor.u32 %v802, 33554432
    %vm844 = vcmp.ge.s32.totalorder %v430, %v843
    %vm845 = vcmp.ge.s32.totalorder %v431, %v843
    %vm846 = vcmp.ge.s32.totalorder %v432, %v843
    %vm847 = vcmp.ge.s32.totalorder %v433, %v843
    %vm848 = vmand %vm844, %vm478
    %vm849 = vmand %vm845, %vm479
    %vm850 = vmand %vm846, %vm480
    %vm851 = vmand %vm847, %vm481
    %v852 = vsel %vm848, 1.0, 0.0
    %v853 = vsel %vm849, 1.0, 0.0
    %v854 = vsel %vm850, 1.0, 0.0
    %v855 = vsel %vm851, 1.0, 0.0
    %v856 = vadd.f32 %v852, %v853
    %v857 = vadd.f32 %v856, %v854
    %v858 = vadd.f32 %v857, %v855
    %859 = vadd.xlane.f32.xlu0 %v858
    %v860 = vpop.xlane.xlu0 %859
    %vm861 = vcmp.ge.f32.partialorder %v860, 96.0
    %v862 = vsel %vm861, %v843, %v802
    %v863 = vor.u32 %v822, 33554432
    %vm864 = vcmp.ge.s32.totalorder %v430, %v863
    %vm865 = vcmp.ge.s32.totalorder %v431, %v863
    %vm866 = vcmp.ge.s32.totalorder %v432, %v863
    %vm867 = vcmp.ge.s32.totalorder %v433, %v863
    %vm868 = vmand %vm864, %vm501
    %vm869 = vmand %vm865, %vm502
    %vm870 = vmand %vm866, %vm503
    %vm871 = vmand %vm867, %vm504
    %v872 = vsel %vm868, 1.0, 0.0
    %v873 = vsel %vm869, 1.0, 0.0
    %v874 = vsel %vm870, 1.0, 0.0
    %v875 = vsel %vm871, 1.0, 0.0
    %v876 = vadd.f32 %v872, %v873
    %v877 = vadd.f32 %v876, %v874
    %v878 = vadd.f32 %v877, %v875
    %879 = vadd.xlane.f32.xlu0 %v878
    %v880 = vpop.xlane.xlu0 %879
    %vm881 = vcmp.ge.f32.partialorder %v880, 128.0
    %v882 = vsel %vm881, %v863, %v822
    %v883 = vor.u32 %v842, 33554432
    %vm884 = vcmp.ge.s32.totalorder %v430, %v883
    %vm885 = vcmp.ge.s32.totalorder %v431, %v883
    %vm886 = vcmp.ge.s32.totalorder %v432, %v883
    %vm887 = vcmp.ge.s32.totalorder %v433, %v883
    %vm888 = vmand %vm884, %vm524
    %vm889 = vmand %vm885, %vm525
    %vm890 = vmand %vm886, %vm526
    %vm891 = vmand %vm887, %vm527
    %v892 = vsel %vm888, 1.0, 0.0
    %v893 = vsel %vm889, 1.0, 0.0
    %v894 = vsel %vm890, 1.0, 0.0
    %v895 = vsel %vm891, 1.0, 0.0
    %v896 = vadd.f32 %v892, %v893
    %v897 = vadd.f32 %v896, %v894
    %v898 = vadd.f32 %v897, %v895
    %899 = vadd.xlane.f32.xlu0 %v898
    %v900 = vpop.xlane.xlu0 %899
    %vm901 = vcmp.ge.f32.partialorder %v900, 32.0
    %v902 = vsel %vm901, %v883, %v842
    %v903 = vor.u32 %v862, 16777216
    %vm904 = vcmp.ge.s32.totalorder %v430, %v903
    %vm905 = vcmp.ge.s32.totalorder %v431, %v903
    %vm906 = vcmp.ge.s32.totalorder %v432, %v903
    %vm907 = vcmp.ge.s32.totalorder %v433, %v903
    %vm908 = vmand %vm904, %vm478
    %vm909 = vmand %vm905, %vm479
    %vm910 = vmand %vm906, %vm480
    %vm911 = vmand %vm907, %vm481
    %v912 = vsel %vm908, 1.0, 0.0
    %v913 = vsel %vm909, 1.0, 0.0
    %v914 = vsel %vm910, 1.0, 0.0
    %v915 = vsel %vm911, 1.0, 0.0
    %v916 = vadd.f32 %v912, %v913
    %v917 = vadd.f32 %v916, %v914
    %v918 = vadd.f32 %v917, %v915
    %919 = vadd.xlane.f32.xlu0 %v918
    %v920 = vpop.xlane.xlu0 %919
    %vm921 = vcmp.ge.f32.partialorder %v920, 96.0
    %v922 = vsel %vm921, %v903, %v862
    %v923 = vor.u32 %v882, 16777216
    %vm924 = vcmp.ge.s32.totalorder %v430, %v923
    %vm925 = vcmp.ge.s32.totalorder %v431, %v923
    %vm926 = vcmp.ge.s32.totalorder %v432, %v923
    %vm927 = vcmp.ge.s32.totalorder %v433, %v923
    %vm928 = vmand %vm924, %vm501
    %vm929 = vmand %vm925, %vm502
    %vm930 = vmand %vm926, %vm503
    %vm931 = vmand %vm927, %vm504
    %v932 = vsel %vm928, 1.0, 0.0
    %v933 = vsel %vm929, 1.0, 0.0
    %v934 = vsel %vm930, 1.0, 0.0
    %v935 = vsel %vm931, 1.0, 0.0
    %v936 = vadd.f32 %v932, %v933
    %v937 = vadd.f32 %v936, %v934
    %v938 = vadd.f32 %v937, %v935
    %939 = vadd.xlane.f32.xlu0 %v938
    %v940 = vpop.xlane.xlu0 %939
    %vm941 = vcmp.ge.f32.partialorder %v940, 128.0
    %v942 = vsel %vm941, %v923, %v882
    %v943 = vor.u32 %v902, 16777216
    %vm944 = vcmp.ge.s32.totalorder %v430, %v943
    %vm945 = vcmp.ge.s32.totalorder %v431, %v943
    %vm946 = vcmp.ge.s32.totalorder %v432, %v943
    %vm947 = vcmp.ge.s32.totalorder %v433, %v943
    %vm948 = vmand %vm944, %vm524
    %vm949 = vmand %vm945, %vm525
    %vm950 = vmand %vm946, %vm526
    %vm951 = vmand %vm947, %vm527
    %v952 = vsel %vm948, 1.0, 0.0
    %v953 = vsel %vm949, 1.0, 0.0
    %v954 = vsel %vm950, 1.0, 0.0
    %v955 = vsel %vm951, 1.0, 0.0
    %v956 = vadd.f32 %v952, %v953
    %v957 = vadd.f32 %v956, %v954
    %v958 = vadd.f32 %v957, %v955
    %959 = vadd.xlane.f32.xlu0 %v958
    %v960 = vpop.xlane.xlu0 %959
    %vm961 = vcmp.ge.f32.partialorder %v960, 32.0
    %v962 = vsel %vm961, %v943, %v902
    %v963 = vor.u32 %v922, 8388608
    %vm964 = vcmp.ge.s32.totalorder %v430, %v963
    %vm965 = vcmp.ge.s32.totalorder %v431, %v963
    %vm966 = vcmp.ge.s32.totalorder %v432, %v963
    %vm967 = vcmp.ge.s32.totalorder %v433, %v963
    %vm968 = vmand %vm964, %vm478
    %vm969 = vmand %vm965, %vm479
    %vm970 = vmand %vm966, %vm480
    %vm971 = vmand %vm967, %vm481
    %v972 = vsel %vm968, 1.0, 0.0
    %v973 = vsel %vm969, 1.0, 0.0
    %v974 = vsel %vm970, 1.0, 0.0
    %v975 = vsel %vm971, 1.0, 0.0
    %v976 = vadd.f32 %v972, %v973
    %v977 = vadd.f32 %v976, %v974
    %v978 = vadd.f32 %v977, %v975
    %979 = vadd.xlane.f32.xlu0 %v978
    %v980 = vpop.xlane.xlu0 %979
    %vm981 = vcmp.ge.f32.partialorder %v980, 96.0
    %v982 = vsel %vm981, %v963, %v922
    %v983 = vor.u32 %v942, 8388608
    %vm984 = vcmp.ge.s32.totalorder %v430, %v983
    %vm985 = vcmp.ge.s32.totalorder %v431, %v983
    %vm986 = vcmp.ge.s32.totalorder %v432, %v983
    %vm987 = vcmp.ge.s32.totalorder %v433, %v983
    %vm988 = vmand %vm984, %vm501
    %vm989 = vmand %vm985, %vm502
    %vm990 = vmand %vm986, %vm503
    %vm991 = vmand %vm987, %vm504
    %v992 = vsel %vm988, 1.0, 0.0
    %v993 = vsel %vm989, 1.0, 0.0
    %v994 = vsel %vm990, 1.0, 0.0
    %v995 = vsel %vm991, 1.0, 0.0
    %v996 = vadd.f32 %v992, %v993
    %v997 = vadd.f32 %v996, %v994
    %v998 = vadd.f32 %v997, %v995
    %999 = vadd.xlane.f32.xlu0 %v998
    %v1000 = vpop.xlane.xlu0 %999
    %vm1001 = vcmp.ge.f32.partialorder %v1000, 128.0
    %v1002 = vsel %vm1001, %v983, %v942
    %v1003 = vor.u32 %v962, 8388608
    %vm1004 = vcmp.ge.s32.totalorder %v430, %v1003
    %vm1005 = vcmp.ge.s32.totalorder %v431, %v1003
    %vm1006 = vcmp.ge.s32.totalorder %v432, %v1003
    %vm1007 = vcmp.ge.s32.totalorder %v433, %v1003
    %vm1008 = vmand %vm1004, %vm524
    %vm1009 = vmand %vm1005, %vm525
    %vm1010 = vmand %vm1006, %vm526
    %vm1011 = vmand %vm1007, %vm527
    %v1012 = vsel %vm1008, 1.0, 0.0
    %v1013 = vsel %vm1009, 1.0, 0.0
    %v1014 = vsel %vm1010, 1.0, 0.0
    %v1015 = vsel %vm1011, 1.0, 0.0
    %v1016 = vadd.f32 %v1012, %v1013
    %v1017 = vadd.f32 %v1016, %v1014
    %v1018 = vadd.f32 %v1017, %v1015
    %1019 = vadd.xlane.f32.xlu0 %v1018
    %v1020 = vpop.xlane.xlu0 %1019
    %vm1021 = vcmp.ge.f32.partialorder %v1020, 32.0
    %v1022 = vsel %vm1021, %v1003, %v962
    %v1023 = vor.u32 %v982, 4194304
    %vm1024 = vcmp.ge.s32.totalorder %v430, %v1023
    %vm1025 = vcmp.ge.s32.totalorder %v431, %v1023
    %vm1026 = vcmp.ge.s32.totalorder %v432, %v1023
    %vm1027 = vcmp.ge.s32.totalorder %v433, %v1023
    %vm1028 = vmand %vm1024, %vm478
    %vm1029 = vmand %vm1025, %vm479
    %vm1030 = vmand %vm1026, %vm480
    %vm1031 = vmand %vm1027, %vm481
    %v1032 = vsel %vm1028, 1.0, 0.0
    %v1033 = vsel %vm1029, 1.0, 0.0
    %v1034 = vsel %vm1030, 1.0, 0.0
    %v1035 = vsel %vm1031, 1.0, 0.0
    %v1036 = vadd.f32 %v1032, %v1033
    %v1037 = vadd.f32 %v1036, %v1034
    %v1038 = vadd.f32 %v1037, %v1035
    %1039 = vadd.xlane.f32.xlu0 %v1038
    %v1040 = vpop.xlane.xlu0 %1039
    %vm1041 = vcmp.ge.f32.partialorder %v1040, 96.0
    %v1042 = vsel %vm1041, %v1023, %v982
    %v1043 = vor.u32 %v1002, 4194304
    %vm1044 = vcmp.ge.s32.totalorder %v430, %v1043
    %vm1045 = vcmp.ge.s32.totalorder %v431, %v1043
    %vm1046 = vcmp.ge.s32.totalorder %v432, %v1043
    %vm1047 = vcmp.ge.s32.totalorder %v433, %v1043
    %vm1048 = vmand %vm1044, %vm501
    %vm1049 = vmand %vm1045, %vm502
    %vm1050 = vmand %vm1046, %vm503
    %vm1051 = vmand %vm1047, %vm504
    %v1052 = vsel %vm1048, 1.0, 0.0
    %v1053 = vsel %vm1049, 1.0, 0.0
    %v1054 = vsel %vm1050, 1.0, 0.0
    %v1055 = vsel %vm1051, 1.0, 0.0
    %v1056 = vadd.f32 %v1052, %v1053
    %v1057 = vadd.f32 %v1056, %v1054
    %v1058 = vadd.f32 %v1057, %v1055
    %1059 = vadd.xlane.f32.xlu0 %v1058
    %v1060 = vpop.xlane.xlu0 %1059
    %vm1061 = vcmp.ge.f32.partialorder %v1060, 128.0
    %v1062 = vsel %vm1061, %v1043, %v1002
    %v1063 = vor.u32 %v1022, 4194304
    %vm1064 = vcmp.ge.s32.totalorder %v430, %v1063
    %vm1065 = vcmp.ge.s32.totalorder %v431, %v1063
    %vm1066 = vcmp.ge.s32.totalorder %v432, %v1063
    %vm1067 = vcmp.ge.s32.totalorder %v433, %v1063
    %vm1068 = vmand %vm1064, %vm524
    %vm1069 = vmand %vm1065, %vm525
    %vm1070 = vmand %vm1066, %vm526
    %vm1071 = vmand %vm1067, %vm527
    %v1072 = vsel %vm1068, 1.0, 0.0
    %v1073 = vsel %vm1069, 1.0, 0.0
    %v1074 = vsel %vm1070, 1.0, 0.0
    %v1075 = vsel %vm1071, 1.0, 0.0
    %v1076 = vadd.f32 %v1072, %v1073
    %v1077 = vadd.f32 %v1076, %v1074
    %v1078 = vadd.f32 %v1077, %v1075
    %1079 = vadd.xlane.f32.xlu0 %v1078
    %v1080 = vpop.xlane.xlu0 %1079
    %vm1081 = vcmp.ge.f32.partialorder %v1080, 32.0
    %v1082 = vsel %vm1081, %v1063, %v1022
    %v1083 = vor.u32 %v1042, 2097152
    %vm1084 = vcmp.ge.s32.totalorder %v430, %v1083
    %vm1085 = vcmp.ge.s32.totalorder %v431, %v1083
    %vm1086 = vcmp.ge.s32.totalorder %v432, %v1083
    %vm1087 = vcmp.ge.s32.totalorder %v433, %v1083
    %vm1088 = vmand %vm1084, %vm478
    %vm1089 = vmand %vm1085, %vm479
    %vm1090 = vmand %vm1086, %vm480
    %vm1091 = vmand %vm1087, %vm481
    %v1092 = vsel %vm1088, 1.0, 0.0
    %v1093 = vsel %vm1089, 1.0, 0.0
    %v1094 = vsel %vm1090, 1.0, 0.0
    %v1095 = vsel %vm1091, 1.0, 0.0
    %v1096 = vadd.f32 %v1092, %v1093
    %v1097 = vadd.f32 %v1096, %v1094
    %v1098 = vadd.f32 %v1097, %v1095
    %1099 = vadd.xlane.f32.xlu0 %v1098
    %v1100 = vpop.xlane.xlu0 %1099
    %vm1101 = vcmp.ge.f32.partialorder %v1100, 96.0
    %v1102 = vsel %vm1101, %v1083, %v1042
    %v1103 = vor.u32 %v1062, 2097152
    %vm1104 = vcmp.ge.s32.totalorder %v430, %v1103
    %vm1105 = vcmp.ge.s32.totalorder %v431, %v1103
    %vm1106 = vcmp.ge.s32.totalorder %v432, %v1103
    %vm1107 = vcmp.ge.s32.totalorder %v433, %v1103
    %vm1108 = vmand %vm1104, %vm501
    %vm1109 = vmand %vm1105, %vm502
    %vm1110 = vmand %vm1106, %vm503
    %vm1111 = vmand %vm1107, %vm504
    %v1112 = vsel %vm1108, 1.0, 0.0
    %v1113 = vsel %vm1109, 1.0, 0.0
    %v1114 = vsel %vm1110, 1.0, 0.0
    %v1115 = vsel %vm1111, 1.0, 0.0
    %v1116 = vadd.f32 %v1112, %v1113
    %v1117 = vadd.f32 %v1116, %v1114
    %v1118 = vadd.f32 %v1117, %v1115
    %1119 = vadd.xlane.f32.xlu0 %v1118
    %v1120 = vpop.xlane.xlu0 %1119
    %vm1121 = vcmp.ge.f32.partialorder %v1120, 128.0
    %v1122 = vsel %vm1121, %v1103, %v1062
    %v1123 = vor.u32 %v1082, 2097152
    %vm1124 = vcmp.ge.s32.totalorder %v430, %v1123
    %vm1125 = vcmp.ge.s32.totalorder %v431, %v1123
    %vm1126 = vcmp.ge.s32.totalorder %v432, %v1123
    %vm1127 = vcmp.ge.s32.totalorder %v433, %v1123
    %vm1128 = vmand %vm1124, %vm524
    %vm1129 = vmand %vm1125, %vm525
    %vm1130 = vmand %vm1126, %vm526
    %vm1131 = vmand %vm1127, %vm527
    %v1132 = vsel %vm1128, 1.0, 0.0
    %v1133 = vsel %vm1129, 1.0, 0.0
    %v1134 = vsel %vm1130, 1.0, 0.0
    %v1135 = vsel %vm1131, 1.0, 0.0
    %v1136 = vadd.f32 %v1132, %v1133
    %v1137 = vadd.f32 %v1136, %v1134
    %v1138 = vadd.f32 %v1137, %v1135
    %1139 = vadd.xlane.f32.xlu0 %v1138
    %v1140 = vpop.xlane.xlu0 %1139
    %vm1141 = vcmp.ge.f32.partialorder %v1140, 32.0
    %v1142 = vsel %vm1141, %v1123, %v1082
    %v1143 = vor.u32 %v1102, 1048576
    %vm1144 = vcmp.ge.s32.totalorder %v430, %v1143
    %vm1145 = vcmp.ge.s32.totalorder %v431, %v1143
    %vm1146 = vcmp.ge.s32.totalorder %v432, %v1143
    %vm1147 = vcmp.ge.s32.totalorder %v433, %v1143
    %vm1148 = vmand %vm1144, %vm478
    %vm1149 = vmand %vm1145, %vm479
    %vm1150 = vmand %vm1146, %vm480
    %vm1151 = vmand %vm1147, %vm481
    %v1152 = vsel %vm1148, 1.0, 0.0
    %v1153 = vsel %vm1149, 1.0, 0.0
    %v1154 = vsel %vm1150, 1.0, 0.0
    %v1155 = vsel %vm1151, 1.0, 0.0
    %v1156 = vadd.f32 %v1152, %v1153
    %v1157 = vadd.f32 %v1156, %v1154
    %v1158 = vadd.f32 %v1157, %v1155
    %1159 = vadd.xlane.f32.xlu0 %v1158
    %v1160 = vpop.xlane.xlu0 %1159
    %vm1161 = vcmp.ge.f32.partialorder %v1160, 96.0
    %v1162 = vsel %vm1161, %v1143, %v1102
    %v1163 = vor.u32 %v1122, 1048576
    %vm1164 = vcmp.ge.s32.totalorder %v430, %v1163
    %vm1165 = vcmp.ge.s32.totalorder %v431, %v1163
    %vm1166 = vcmp.ge.s32.totalorder %v432, %v1163
    %vm1167 = vcmp.ge.s32.totalorder %v433, %v1163
    %vm1168 = vmand %vm1164, %vm501
    %vm1169 = vmand %vm1165, %vm502
    %vm1170 = vmand %vm1166, %vm503
    %vm1171 = vmand %vm1167, %vm504
    %v1172 = vsel %vm1168, 1.0, 0.0
    %v1173 = vsel %vm1169, 1.0, 0.0
    %v1174 = vsel %vm1170, 1.0, 0.0
    %v1175 = vsel %vm1171, 1.0, 0.0
    %v1176 = vadd.f32 %v1172, %v1173
    %v1177 = vadd.f32 %v1176, %v1174
    %v1178 = vadd.f32 %v1177, %v1175
    %1179 = vadd.xlane.f32.xlu0 %v1178
    %v1180 = vpop.xlane.xlu0 %1179
    %vm1181 = vcmp.ge.f32.partialorder %v1180, 128.0
    %v1182 = vsel %vm1181, %v1163, %v1122
    %v1183 = vor.u32 %v1142, 1048576
    %vm1184 = vcmp.ge.s32.totalorder %v430, %v1183
    %vm1185 = vcmp.ge.s32.totalorder %v431, %v1183
    %vm1186 = vcmp.ge.s32.totalorder %v432, %v1183
    %vm1187 = vcmp.ge.s32.totalorder %v433, %v1183
    %vm1188 = vmand %vm1184, %vm524
    %vm1189 = vmand %vm1185, %vm525
    %vm1190 = vmand %vm1186, %vm526
    %vm1191 = vmand %vm1187, %vm527
    %v1192 = vsel %vm1188, 1.0, 0.0
    %v1193 = vsel %vm1189, 1.0, 0.0
    %v1194 = vsel %vm1190, 1.0, 0.0
    %v1195 = vsel %vm1191, 1.0, 0.0
    %v1196 = vadd.f32 %v1192, %v1193
    %v1197 = vadd.f32 %v1196, %v1194
    %v1198 = vadd.f32 %v1197, %v1195
    %1199 = vadd.xlane.f32.xlu0 %v1198
    %v1200 = vpop.xlane.xlu0 %1199
    %vm1201 = vcmp.ge.f32.partialorder %v1200, 32.0
    %v1202 = vsel %vm1201, %v1183, %v1142
    %v1203 = vor.u32 %v1162, 524288
    %vm1204 = vcmp.ge.s32.totalorder %v430, %v1203
    %vm1205 = vcmp.ge.s32.totalorder %v431, %v1203
    %vm1206 = vcmp.ge.s32.totalorder %v432, %v1203
    %vm1207 = vcmp.ge.s32.totalorder %v433, %v1203
    %vm1208 = vmand %vm1204, %vm478
    %vm1209 = vmand %vm1205, %vm479
    %vm1210 = vmand %vm1206, %vm480
    %vm1211 = vmand %vm1207, %vm481
    %v1212 = vsel %vm1208, 1.0, 0.0
    %v1213 = vsel %vm1209, 1.0, 0.0
    %v1214 = vsel %vm1210, 1.0, 0.0
    %v1215 = vsel %vm1211, 1.0, 0.0
    %v1216 = vadd.f32 %v1212, %v1213
    %v1217 = vadd.f32 %v1216, %v1214
    %v1218 = vadd.f32 %v1217, %v1215
    %1219 = vadd.xlane.f32.xlu0 %v1218
    %v1220 = vpop.xlane.xlu0 %1219
    %vm1221 = vcmp.ge.f32.partialorder %v1220, 96.0
    %v1222 = vsel %vm1221, %v1203, %v1162
    %v1223 = vor.u32 %v1182, 524288
    %vm1224 = vcmp.ge.s32.totalorder %v430, %v1223
    %vm1225 = vcmp.ge.s32.totalorder %v431, %v1223
    %vm1226 = vcmp.ge.s32.totalorder %v432, %v1223
    %vm1227 = vcmp.ge.s32.totalorder %v433, %v1223
    %vm1228 = vmand %vm1224, %vm501
    %vm1229 = vmand %vm1225, %vm502
    %vm1230 = vmand %vm1226, %vm503
    %vm1231 = vmand %vm1227, %vm504
    %v1232 = vsel %vm1228, 1.0, 0.0
    %v1233 = vsel %vm1229, 1.0, 0.0
    %v1234 = vsel %vm1230, 1.0, 0.0
    %v1235 = vsel %vm1231, 1.0, 0.0
    %v1236 = vadd.f32 %v1232, %v1233
    %v1237 = vadd.f32 %v1236, %v1234
    %v1238 = vadd.f32 %v1237, %v1235
    %1239 = vadd.xlane.f32.xlu0 %v1238
    %v1240 = vpop.xlane.xlu0 %1239
    %vm1241 = vcmp.ge.f32.partialorder %v1240, 128.0
    %v1242 = vsel %vm1241, %v1223, %v1182
    %v1243 = vor.u32 %v1202, 524288
    %vm1244 = vcmp.ge.s32.totalorder %v430, %v1243
    %vm1245 = vcmp.ge.s32.totalorder %v431, %v1243
    %vm1246 = vcmp.ge.s32.totalorder %v432, %v1243
    %vm1247 = vcmp.ge.s32.totalorder %v433, %v1243
    %vm1248 = vmand %vm1244, %vm524
    %vm1249 = vmand %vm1245, %vm525
    %vm1250 = vmand %vm1246, %vm526
    %vm1251 = vmand %vm1247, %vm527
    %v1252 = vsel %vm1248, 1.0, 0.0
    %v1253 = vsel %vm1249, 1.0, 0.0
    %v1254 = vsel %vm1250, 1.0, 0.0
    %v1255 = vsel %vm1251, 1.0, 0.0
    %v1256 = vadd.f32 %v1252, %v1253
    %v1257 = vadd.f32 %v1256, %v1254
    %v1258 = vadd.f32 %v1257, %v1255
    %1259 = vadd.xlane.f32.xlu0 %v1258
    %v1260 = vpop.xlane.xlu0 %1259
    %vm1261 = vcmp.ge.f32.partialorder %v1260, 32.0
    %v1262 = vsel %vm1261, %v1243, %v1202
    %v1263 = vor.u32 %v1222, 262144
    %vm1264 = vcmp.ge.s32.totalorder %v430, %v1263
    %vm1265 = vcmp.ge.s32.totalorder %v431, %v1263
    %vm1266 = vcmp.ge.s32.totalorder %v432, %v1263
    %vm1267 = vcmp.ge.s32.totalorder %v433, %v1263
    %vm1268 = vmand %vm1264, %vm478
    %vm1269 = vmand %vm1265, %vm479
    %vm1270 = vmand %vm1266, %vm480
    %vm1271 = vmand %vm1267, %vm481
    %v1272 = vsel %vm1268, 1.0, 0.0
    %v1273 = vsel %vm1269, 1.0, 0.0
    %v1274 = vsel %vm1270, 1.0, 0.0
    %v1275 = vsel %vm1271, 1.0, 0.0
    %v1276 = vadd.f32 %v1272, %v1273
    %v1277 = vadd.f32 %v1276, %v1274
    %v1278 = vadd.f32 %v1277, %v1275
    %1279 = vadd.xlane.f32.xlu0 %v1278
    %v1280 = vpop.xlane.xlu0 %1279
    %vm1281 = vcmp.ge.f32.partialorder %v1280, 96.0
    %v1282 = vsel %vm1281, %v1263, %v1222
    %v1283 = vor.u32 %v1242, 262144
    %vm1284 = vcmp.ge.s32.totalorder %v430, %v1283
    %vm1285 = vcmp.ge.s32.totalorder %v431, %v1283
    %vm1286 = vcmp.ge.s32.totalorder %v432, %v1283
    %vm1287 = vcmp.ge.s32.totalorder %v433, %v1283
    %vm1288 = vmand %vm1284, %vm501
    %vm1289 = vmand %vm1285, %vm502
    %vm1290 = vmand %vm1286, %vm503
    %vm1291 = vmand %vm1287, %vm504
    %v1292 = vsel %vm1288, 1.0, 0.0
    %v1293 = vsel %vm1289, 1.0, 0.0
    %v1294 = vsel %vm1290, 1.0, 0.0
    %v1295 = vsel %vm1291, 1.0, 0.0
    %v1296 = vadd.f32 %v1292, %v1293
    %v1297 = vadd.f32 %v1296, %v1294
    %v1298 = vadd.f32 %v1297, %v1295
    %1299 = vadd.xlane.f32.xlu0 %v1298
    %v1300 = vpop.xlane.xlu0 %1299
    %vm1301 = vcmp.ge.f32.partialorder %v1300, 128.0
    %v1302 = vsel %vm1301, %v1283, %v1242
    %v1303 = vor.u32 %v1262, 262144
    %vm1304 = vcmp.ge.s32.totalorder %v430, %v1303
    %vm1305 = vcmp.ge.s32.totalorder %v431, %v1303
    %vm1306 = vcmp.ge.s32.totalorder %v432, %v1303
    %vm1307 = vcmp.ge.s32.totalorder %v433, %v1303
    %vm1308 = vmand %vm1304, %vm524
    %vm1309 = vmand %vm1305, %vm525
    %vm1310 = vmand %vm1306, %vm526
    %vm1311 = vmand %vm1307, %vm527
    %v1312 = vsel %vm1308, 1.0, 0.0
    %v1313 = vsel %vm1309, 1.0, 0.0
    %v1314 = vsel %vm1310, 1.0, 0.0
    %v1315 = vsel %vm1311, 1.0, 0.0
    %v1316 = vadd.f32 %v1312, %v1313
    %v1317 = vadd.f32 %v1316, %v1314
    %v1318 = vadd.f32 %v1317, %v1315
    %1319 = vadd.xlane.f32.xlu0 %v1318
    %v1320 = vpop.xlane.xlu0 %1319
    %vm1321 = vcmp.ge.f32.partialorder %v1320, 32.0
    %v1322 = vsel %vm1321, %v1303, %v1262
    %v1323 = vor.u32 %v1282, 131072
    %vm1324 = vcmp.ge.s32.totalorder %v430, %v1323
    %vm1325 = vcmp.ge.s32.totalorder %v431, %v1323
    %vm1326 = vcmp.ge.s32.totalorder %v432, %v1323
    %vm1327 = vcmp.ge.s32.totalorder %v433, %v1323
    %vm1328 = vmand %vm1324, %vm478
    %vm1329 = vmand %vm1325, %vm479
    %vm1330 = vmand %vm1326, %vm480
    %vm1331 = vmand %vm1327, %vm481
    %v1332 = vsel %vm1328, 1.0, 0.0
    %v1333 = vsel %vm1329, 1.0, 0.0
    %v1334 = vsel %vm1330, 1.0, 0.0
    %v1335 = vsel %vm1331, 1.0, 0.0
    %v1336 = vadd.f32 %v1332, %v1333
    %v1337 = vadd.f32 %v1336, %v1334
    %v1338 = vadd.f32 %v1337, %v1335
    %1339 = vadd.xlane.f32.xlu0 %v1338
    %v1340 = vpop.xlane.xlu0 %1339
    %vm1341 = vcmp.ge.f32.partialorder %v1340, 96.0
    %v1342 = vsel %vm1341, %v1323, %v1282
    %v1343 = vor.u32 %v1302, 131072
    %vm1344 = vcmp.ge.s32.totalorder %v430, %v1343
    %vm1345 = vcmp.ge.s32.totalorder %v431, %v1343
    %vm1346 = vcmp.ge.s32.totalorder %v432, %v1343
    %vm1347 = vcmp.ge.s32.totalorder %v433, %v1343
    %vm1348 = vmand %vm1344, %vm501
    %vm1349 = vmand %vm1345, %vm502
    %vm1350 = vmand %vm1346, %vm503
    %vm1351 = vmand %vm1347, %vm504
    %v1352 = vsel %vm1348, 1.0, 0.0
    %v1353 = vsel %vm1349, 1.0, 0.0
    %v1354 = vsel %vm1350, 1.0, 0.0
    %v1355 = vsel %vm1351, 1.0, 0.0
    %v1356 = vadd.f32 %v1352, %v1353
    %v1357 = vadd.f32 %v1356, %v1354
    %v1358 = vadd.f32 %v1357, %v1355
    %1359 = vadd.xlane.f32.xlu0 %v1358
    %v1360 = vpop.xlane.xlu0 %1359
    %vm1361 = vcmp.ge.f32.partialorder %v1360, 128.0
    %v1362 = vsel %vm1361, %v1343, %v1302
    %v1363 = vor.u32 %v1322, 131072
    %vm1364 = vcmp.ge.s32.totalorder %v430, %v1363
    %vm1365 = vcmp.ge.s32.totalorder %v431, %v1363
    %vm1366 = vcmp.ge.s32.totalorder %v432, %v1363
    %vm1367 = vcmp.ge.s32.totalorder %v433, %v1363
    %vm1368 = vmand %vm1364, %vm524
    %vm1369 = vmand %vm1365, %vm525
    %vm1370 = vmand %vm1366, %vm526
    %vm1371 = vmand %vm1367, %vm527
    %v1372 = vsel %vm1368, 1.0, 0.0
    %v1373 = vsel %vm1369, 1.0, 0.0
    %v1374 = vsel %vm1370, 1.0, 0.0
    %v1375 = vsel %vm1371, 1.0, 0.0
    %v1376 = vadd.f32 %v1372, %v1373
    %v1377 = vadd.f32 %v1376, %v1374
    %v1378 = vadd.f32 %v1377, %v1375
    %1379 = vadd.xlane.f32.xlu0 %v1378
    %v1380 = vpop.xlane.xlu0 %1379
    %vm1381 = vcmp.ge.f32.partialorder %v1380, 32.0
    %v1382 = vsel %vm1381, %v1363, %v1322
    %v1383 = vor.u32 %v1342, 65536
    %vm1384 = vcmp.ge.s32.totalorder %v430, %v1383
    %vm1385 = vcmp.ge.s32.totalorder %v431, %v1383
    %vm1386 = vcmp.ge.s32.totalorder %v432, %v1383
    %vm1387 = vcmp.ge.s32.totalorder %v433, %v1383
    %vm1388 = vmand %vm1384, %vm478
    %vm1389 = vmand %vm1385, %vm479
    %vm1390 = vmand %vm1386, %vm480
    %vm1391 = vmand %vm1387, %vm481
    %v1392 = vsel %vm1388, 1.0, 0.0
    %v1393 = vsel %vm1389, 1.0, 0.0
    %v1394 = vsel %vm1390, 1.0, 0.0
    %v1395 = vsel %vm1391, 1.0, 0.0
    %v1396 = vadd.f32 %v1392, %v1393
    %v1397 = vadd.f32 %v1396, %v1394
    %v1398 = vadd.f32 %v1397, %v1395
    %1399 = vadd.xlane.f32.xlu0 %v1398
    %v1400 = vpop.xlane.xlu0 %1399
    %vm1401 = vcmp.ge.f32.partialorder %v1400, 96.0
    %v1402 = vsel %vm1401, %v1383, %v1342
    %v1403 = vor.u32 %v1362, 65536
    %vm1404 = vcmp.ge.s32.totalorder %v430, %v1403
    %vm1405 = vcmp.ge.s32.totalorder %v431, %v1403
    %vm1406 = vcmp.ge.s32.totalorder %v432, %v1403
    %vm1407 = vcmp.ge.s32.totalorder %v433, %v1403
    %vm1408 = vmand %vm1404, %vm501
    %vm1409 = vmand %vm1405, %vm502
    %vm1410 = vmand %vm1406, %vm503
    %vm1411 = vmand %vm1407, %vm504
    %v1412 = vsel %vm1408, 1.0, 0.0
    %v1413 = vsel %vm1409, 1.0, 0.0
    %v1414 = vsel %vm1410, 1.0, 0.0
    %v1415 = vsel %vm1411, 1.0, 0.0
    %v1416 = vadd.f32 %v1412, %v1413
    %v1417 = vadd.f32 %v1416, %v1414
    %v1418 = vadd.f32 %v1417, %v1415
    %1419 = vadd.xlane.f32.xlu0 %v1418
    %v1420 = vpop.xlane.xlu0 %1419
    %vm1421 = vcmp.ge.f32.partialorder %v1420, 128.0
    %v1422 = vsel %vm1421, %v1403, %v1362
    %v1423 = vor.u32 %v1382, 65536
    %vm1424 = vcmp.ge.s32.totalorder %v430, %v1423
    %vm1425 = vcmp.ge.s32.totalorder %v431, %v1423
    %vm1426 = vcmp.ge.s32.totalorder %v432, %v1423
    %vm1427 = vcmp.ge.s32.totalorder %v433, %v1423
    %vm1428 = vmand %vm1424, %vm524
    %vm1429 = vmand %vm1425, %vm525
    %vm1430 = vmand %vm1426, %vm526
    %vm1431 = vmand %vm1427, %vm527
    %v1432 = vsel %vm1428, 1.0, 0.0
    %v1433 = vsel %vm1429, 1.0, 0.0
    %v1434 = vsel %vm1430, 1.0, 0.0
    %v1435 = vsel %vm1431, 1.0, 0.0
    %v1436 = vadd.f32 %v1432, %v1433
    %v1437 = vadd.f32 %v1436, %v1434
    %v1438 = vadd.f32 %v1437, %v1435
    %1439 = vadd.xlane.f32.xlu0 %v1438
    %v1440 = vpop.xlane.xlu0 %1439
    %vm1441 = vcmp.ge.f32.partialorder %v1440, 32.0
    %v1442 = vsel %vm1441, %v1423, %v1382
    %v1443 = vor.u32 %v1402, 32768
    %vm1444 = vcmp.ge.s32.totalorder %v430, %v1443
    %vm1445 = vcmp.ge.s32.totalorder %v431, %v1443
    %vm1446 = vcmp.ge.s32.totalorder %v432, %v1443
    %vm1447 = vcmp.ge.s32.totalorder %v433, %v1443
    %vm1448 = vmand %vm1444, %vm478
    %vm1449 = vmand %vm1445, %vm479
    %vm1450 = vmand %vm1446, %vm480
    %vm1451 = vmand %vm1447, %vm481
    %v1452 = vsel %vm1448, 1.0, 0.0
    %v1453 = vsel %vm1449, 1.0, 0.0
    %v1454 = vsel %vm1450, 1.0, 0.0
    %v1455 = vsel %vm1451, 1.0, 0.0
    %v1456 = vadd.f32 %v1452, %v1453
    %v1457 = vadd.f32 %v1456, %v1454
    %v1458 = vadd.f32 %v1457, %v1455
    %1459 = vadd.xlane.f32.xlu0 %v1458
    %v1460 = vpop.xlane.xlu0 %1459
    %vm1461 = vcmp.ge.f32.partialorder %v1460, 96.0
    %v1462 = vsel %vm1461, %v1443, %v1402
    %v1463 = vor.u32 %v1422, 32768
    %vm1464 = vcmp.ge.s32.totalorder %v430, %v1463
    %vm1465 = vcmp.ge.s32.totalorder %v431, %v1463
    %vm1466 = vcmp.ge.s32.totalorder %v432, %v1463
    %vm1467 = vcmp.ge.s32.totalorder %v433, %v1463
    %vm1468 = vmand %vm1464, %vm501
    %vm1469 = vmand %vm1465, %vm502
    %vm1470 = vmand %vm1466, %vm503
    %vm1471 = vmand %vm1467, %vm504
    %v1472 = vsel %vm1468, 1.0, 0.0
    %v1473 = vsel %vm1469, 1.0, 0.0
    %v1474 = vsel %vm1470, 1.0, 0.0
    %v1475 = vsel %vm1471, 1.0, 0.0
    %v1476 = vadd.f32 %v1472, %v1473
    %v1477 = vadd.f32 %v1476, %v1474
    %v1478 = vadd.f32 %v1477, %v1475
    %1479 = vadd.xlane.f32.xlu0 %v1478
    %v1480 = vpop.xlane.xlu0 %1479
    %vm1481 = vcmp.ge.f32.partialorder %v1480, 128.0
    %v1482 = vsel %vm1481, %v1463, %v1422
    %v1483 = vor.u32 %v1442, 32768
    %vm1484 = vcmp.ge.s32.totalorder %v430, %v1483
    %vm1485 = vcmp.ge.s32.totalorder %v431, %v1483
    %vm1486 = vcmp.ge.s32.totalorder %v432, %v1483
    %vm1487 = vcmp.ge.s32.totalorder %v433, %v1483
    %vm1488 = vmand %vm1484, %vm524
    %vm1489 = vmand %vm1485, %vm525
    %vm1490 = vmand %vm1486, %vm526
    %vm1491 = vmand %vm1487, %vm527
    %v1492 = vsel %vm1488, 1.0, 0.0
    %v1493 = vsel %vm1489, 1.0, 0.0
    %v1494 = vsel %vm1490, 1.0, 0.0
    %v1495 = vsel %vm1491, 1.0, 0.0
    %v1496 = vadd.f32 %v1492, %v1493
    %v1497 = vadd.f32 %v1496, %v1494
    %v1498 = vadd.f32 %v1497, %v1495
    %1499 = vadd.xlane.f32.xlu0 %v1498
    %v1500 = vpop.xlane.xlu0 %1499
    %vm1501 = vcmp.ge.f32.partialorder %v1500, 32.0
    %v1502 = vsel %vm1501, %v1483, %v1442
    %v1503 = vor.u32 %v1462, 16384
    %vm1504 = vcmp.ge.s32.totalorder %v430, %v1503
    %vm1505 = vcmp.ge.s32.totalorder %v431, %v1503
    %vm1506 = vcmp.ge.s32.totalorder %v432, %v1503
    %vm1507 = vcmp.ge.s32.totalorder %v433, %v1503
    %vm1508 = vmand %vm1504, %vm478
    %vm1509 = vmand %vm1505, %vm479
    %vm1510 = vmand %vm1506, %vm480
    %vm1511 = vmand %vm1507, %vm481
    %v1512 = vsel %vm1508, 1.0, 0.0
    %v1513 = vsel %vm1509, 1.0, 0.0
    %v1514 = vsel %vm1510, 1.0, 0.0
    %v1515 = vsel %vm1511, 1.0, 0.0
    %v1516 = vadd.f32 %v1512, %v1513
    %v1517 = vadd.f32 %v1516, %v1514
    %v1518 = vadd.f32 %v1517, %v1515
    %1519 = vadd.xlane.f32.xlu0 %v1518
    %v1520 = vpop.xlane.xlu0 %1519
    %vm1521 = vcmp.ge.f32.partialorder %v1520, 96.0
    %v1522 = vsel %vm1521, %v1503, %v1462
    %v1523 = vor.u32 %v1482, 16384
    %vm1524 = vcmp.ge.s32.totalorder %v430, %v1523
    %vm1525 = vcmp.ge.s32.totalorder %v431, %v1523
    %vm1526 = vcmp.ge.s32.totalorder %v432, %v1523
    %vm1527 = vcmp.ge.s32.totalorder %v433, %v1523
    %vm1528 = vmand %vm1524, %vm501
    %vm1529 = vmand %vm1525, %vm502
    %vm1530 = vmand %vm1526, %vm503
    %vm1531 = vmand %vm1527, %vm504
    %v1532 = vsel %vm1528, 1.0, 0.0
    %v1533 = vsel %vm1529, 1.0, 0.0
    %v1534 = vsel %vm1530, 1.0, 0.0
    %v1535 = vsel %vm1531, 1.0, 0.0
    %v1536 = vadd.f32 %v1532, %v1533
    %v1537 = vadd.f32 %v1536, %v1534
    %v1538 = vadd.f32 %v1537, %v1535
    %1539 = vadd.xlane.f32.xlu0 %v1538
    %v1540 = vpop.xlane.xlu0 %1539
    %vm1541 = vcmp.ge.f32.partialorder %v1540, 128.0
    %v1542 = vsel %vm1541, %v1523, %v1482
    %v1543 = vor.u32 %v1502, 16384
    %vm1544 = vcmp.ge.s32.totalorder %v430, %v1543
    %vm1545 = vcmp.ge.s32.totalorder %v431, %v1543
    %vm1546 = vcmp.ge.s32.totalorder %v432, %v1543
    %vm1547 = vcmp.ge.s32.totalorder %v433, %v1543
    %vm1548 = vmand %vm1544, %vm524
    %vm1549 = vmand %vm1545, %vm525
    %vm1550 = vmand %vm1546, %vm526
    %vm1551 = vmand %vm1547, %vm527
    %v1552 = vsel %vm1548, 1.0, 0.0
    %v1553 = vsel %vm1549, 1.0, 0.0
    %v1554 = vsel %vm1550, 1.0, 0.0
    %v1555 = vsel %vm1551, 1.0, 0.0
    %v1556 = vadd.f32 %v1552, %v1553
    %v1557 = vadd.f32 %v1556, %v1554
    %v1558 = vadd.f32 %v1557, %v1555
    %1559 = vadd.xlane.f32.xlu0 %v1558
    %v1560 = vpop.xlane.xlu0 %1559
    %vm1561 = vcmp.ge.f32.partialorder %v1560, 32.0
    %v1562 = vsel %vm1561, %v1543, %v1502
    %v1563 = vor.u32 %v1522, 8192
    %vm1564 = vcmp.ge.s32.totalorder %v430, %v1563
    %vm1565 = vcmp.ge.s32.totalorder %v431, %v1563
    %vm1566 = vcmp.ge.s32.totalorder %v432, %v1563
    %vm1567 = vcmp.ge.s32.totalorder %v433, %v1563
    %vm1568 = vmand %vm1564, %vm478
    %vm1569 = vmand %vm1565, %vm479
    %vm1570 = vmand %vm1566, %vm480
    %vm1571 = vmand %vm1567, %vm481
    %v1572 = vsel %vm1568, 1.0, 0.0
    %v1573 = vsel %vm1569, 1.0, 0.0
    %v1574 = vsel %vm1570, 1.0, 0.0
    %v1575 = vsel %vm1571, 1.0, 0.0
    %v1576 = vadd.f32 %v1572, %v1573
    %v1577 = vadd.f32 %v1576, %v1574
    %v1578 = vadd.f32 %v1577, %v1575
    %1579 = vadd.xlane.f32.xlu0 %v1578
    %v1580 = vpop.xlane.xlu0 %1579
    %vm1581 = vcmp.ge.f32.partialorder %v1580, 96.0
    %v1582 = vsel %vm1581, %v1563, %v1522
    %v1583 = vor.u32 %v1542, 8192
    %vm1584 = vcmp.ge.s32.totalorder %v430, %v1583
    %vm1585 = vcmp.ge.s32.totalorder %v431, %v1583
    %vm1586 = vcmp.ge.s32.totalorder %v432, %v1583
    %vm1587 = vcmp.ge.s32.totalorder %v433, %v1583
    %vm1588 = vmand %vm1584, %vm501
    %vm1589 = vmand %vm1585, %vm502
    %vm1590 = vmand %vm1586, %vm503
    %vm1591 = vmand %vm1587, %vm504
    %v1592 = vsel %vm1588, 1.0, 0.0
    %v1593 = vsel %vm1589, 1.0, 0.0
    %v1594 = vsel %vm1590, 1.0, 0.0
    %v1595 = vsel %vm1591, 1.0, 0.0
    %v1596 = vadd.f32 %v1592, %v1593
    %v1597 = vadd.f32 %v1596, %v1594
    %v1598 = vadd.f32 %v1597, %v1595
    %1599 = vadd.xlane.f32.xlu0 %v1598
    %v1600 = vpop.xlane.xlu0 %1599
    %vm1601 = vcmp.ge.f32.partialorder %v1600, 128.0
    %v1602 = vsel %vm1601, %v1583, %v1542
    %v1603 = vor.u32 %v1562, 8192
    %vm1604 = vcmp.ge.s32.totalorder %v430, %v1603
    %vm1605 = vcmp.ge.s32.totalorder %v431, %v1603
    %vm1606 = vcmp.ge.s32.totalorder %v432, %v1603
    %vm1607 = vcmp.ge.s32.totalorder %v433, %v1603
    %vm1608 = vmand %vm1604, %vm524
    %vm1609 = vmand %vm1605, %vm525
    %vm1610 = vmand %vm1606, %vm526
    %vm1611 = vmand %vm1607, %vm527
    %v1612 = vsel %vm1608, 1.0, 0.0
    %v1613 = vsel %vm1609, 1.0, 0.0
    %v1614 = vsel %vm1610, 1.0, 0.0
    %v1615 = vsel %vm1611, 1.0, 0.0
    %v1616 = vadd.f32 %v1612, %v1613
    %v1617 = vadd.f32 %v1616, %v1614
    %v1618 = vadd.f32 %v1617, %v1615
    %1619 = vadd.xlane.f32.xlu0 %v1618
    %v1620 = vpop.xlane.xlu0 %1619
    %vm1621 = vcmp.ge.f32.partialorder %v1620, 32.0
    %v1622 = vsel %vm1621, %v1603, %v1562
    %v1623 = vor.u32 %v1582, 4096
    %vm1624 = vcmp.ge.s32.totalorder %v430, %v1623
    %vm1625 = vcmp.ge.s32.totalorder %v431, %v1623
    %vm1626 = vcmp.ge.s32.totalorder %v432, %v1623
    %vm1627 = vcmp.ge.s32.totalorder %v433, %v1623
    %vm1628 = vmand %vm1624, %vm478
    %vm1629 = vmand %vm1625, %vm479
    %vm1630 = vmand %vm1626, %vm480
    %vm1631 = vmand %vm1627, %vm481
    %v1632 = vsel %vm1628, 1.0, 0.0
    %v1633 = vsel %vm1629, 1.0, 0.0
    %v1634 = vsel %vm1630, 1.0, 0.0
    %v1635 = vsel %vm1631, 1.0, 0.0
    %v1636 = vadd.f32 %v1632, %v1633
    %v1637 = vadd.f32 %v1636, %v1634
    %v1638 = vadd.f32 %v1637, %v1635
    %1639 = vadd.xlane.f32.xlu0 %v1638
    %v1640 = vpop.xlane.xlu0 %1639
    %vm1641 = vcmp.ge.f32.partialorder %v1640, 96.0
    %v1642 = vsel %vm1641, %v1623, %v1582
    %v1643 = vor.u32 %v1602, 4096
    %vm1644 = vcmp.ge.s32.totalorder %v430, %v1643
    %vm1645 = vcmp.ge.s32.totalorder %v431, %v1643
    %vm1646 = vcmp.ge.s32.totalorder %v432, %v1643
    %vm1647 = vcmp.ge.s32.totalorder %v433, %v1643
    %vm1648 = vmand %vm1644, %vm501
    %vm1649 = vmand %vm1645, %vm502
    %vm1650 = vmand %vm1646, %vm503
    %vm1651 = vmand %vm1647, %vm504
    %v1652 = vsel %vm1648, 1.0, 0.0
    %v1653 = vsel %vm1649, 1.0, 0.0
    %v1654 = vsel %vm1650, 1.0, 0.0
    %v1655 = vsel %vm1651, 1.0, 0.0
    %v1656 = vadd.f32 %v1652, %v1653
    %v1657 = vadd.f32 %v1656, %v1654
    %v1658 = vadd.f32 %v1657, %v1655
    %1659 = vadd.xlane.f32.xlu0 %v1658
    %v1660 = vpop.xlane.xlu0 %1659
    %vm1661 = vcmp.ge.f32.partialorder %v1660, 128.0
    %v1662 = vsel %vm1661, %v1643, %v1602
    %v1663 = vor.u32 %v1622, 4096
    %vm1664 = vcmp.ge.s32.totalorder %v430, %v1663
    %vm1665 = vcmp.ge.s32.totalorder %v431, %v1663
    %vm1666 = vcmp.ge.s32.totalorder %v432, %v1663
    %vm1667 = vcmp.ge.s32.totalorder %v433, %v1663
    %vm1668 = vmand %vm1664, %vm524
    %vm1669 = vmand %vm1665, %vm525
    %vm1670 = vmand %vm1666, %vm526
    %vm1671 = vmand %vm1667, %vm527
    %v1672 = vsel %vm1668, 1.0, 0.0
    %v1673 = vsel %vm1669, 1.0, 0.0
    %v1674 = vsel %vm1670, 1.0, 0.0
    %v1675 = vsel %vm1671, 1.0, 0.0
    %v1676 = vadd.f32 %v1672, %v1673
    %v1677 = vadd.f32 %v1676, %v1674
    %v1678 = vadd.f32 %v1677, %v1675
    %1679 = vadd.xlane.f32.xlu0 %v1678
    %v1680 = vpop.xlane.xlu0 %1679
    %vm1681 = vcmp.ge.f32.partialorder %v1680, 32.0
    %v1682 = vsel %vm1681, %v1663, %v1622
    %v1683 = vor.u32 %v1642, 2048
    %vm1684 = vcmp.ge.s32.totalorder %v430, %v1683
    %vm1685 = vcmp.ge.s32.totalorder %v431, %v1683
    %vm1686 = vcmp.ge.s32.totalorder %v432, %v1683
    %vm1687 = vcmp.ge.s32.totalorder %v433, %v1683
    %vm1688 = vmand %vm1684, %vm478
    %vm1689 = vmand %vm1685, %vm479
    %vm1690 = vmand %vm1686, %vm480
    %vm1691 = vmand %vm1687, %vm481
    %v1692 = vsel %vm1688, 1.0, 0.0
    %v1693 = vsel %vm1689, 1.0, 0.0
    %v1694 = vsel %vm1690, 1.0, 0.0
    %v1695 = vsel %vm1691, 1.0, 0.0
    %v1696 = vadd.f32 %v1692, %v1693
    %v1697 = vadd.f32 %v1696, %v1694
    %v1698 = vadd.f32 %v1697, %v1695
    %1699 = vadd.xlane.f32.xlu0 %v1698
    %v1700 = vpop.xlane.xlu0 %1699
    %vm1701 = vcmp.ge.f32.partialorder %v1700, 96.0
    %v1702 = vsel %vm1701, %v1683, %v1642
    %v1703 = vor.u32 %v1662, 2048
    %vm1704 = vcmp.ge.s32.totalorder %v430, %v1703
    %vm1705 = vcmp.ge.s32.totalorder %v431, %v1703
    %vm1706 = vcmp.ge.s32.totalorder %v432, %v1703
    %vm1707 = vcmp.ge.s32.totalorder %v433, %v1703
    %vm1708 = vmand %vm1704, %vm501
    %vm1709 = vmand %vm1705, %vm502
    %vm1710 = vmand %vm1706, %vm503
    %vm1711 = vmand %vm1707, %vm504
    %v1712 = vsel %vm1708, 1.0, 0.0
    %v1713 = vsel %vm1709, 1.0, 0.0
    %v1714 = vsel %vm1710, 1.0, 0.0
    %v1715 = vsel %vm1711, 1.0, 0.0
    %v1716 = vadd.f32 %v1712, %v1713
    %v1717 = vadd.f32 %v1716, %v1714
    %v1718 = vadd.f32 %v1717, %v1715
    %1719 = vadd.xlane.f32.xlu0 %v1718
    %v1720 = vpop.xlane.xlu0 %1719
    %vm1721 = vcmp.ge.f32.partialorder %v1720, 128.0
    %v1722 = vsel %vm1721, %v1703, %v1662
    %v1723 = vor.u32 %v1682, 2048
    %vm1724 = vcmp.ge.s32.totalorder %v430, %v1723
    %vm1725 = vcmp.ge.s32.totalorder %v431, %v1723
    %vm1726 = vcmp.ge.s32.totalorder %v432, %v1723
    %vm1727 = vcmp.ge.s32.totalorder %v433, %v1723
    %vm1728 = vmand %vm1724, %vm524
    %vm1729 = vmand %vm1725, %vm525
    %vm1730 = vmand %vm1726, %vm526
    %vm1731 = vmand %vm1727, %vm527
    %v1732 = vsel %vm1728, 1.0, 0.0
    %v1733 = vsel %vm1729, 1.0, 0.0
    %v1734 = vsel %vm1730, 1.0, 0.0
    %v1735 = vsel %vm1731, 1.0, 0.0
    %v1736 = vadd.f32 %v1732, %v1733
    %v1737 = vadd.f32 %v1736, %v1734
    %v1738 = vadd.f32 %v1737, %v1735
    %1739 = vadd.xlane.f32.xlu0 %v1738
    %v1740 = vpop.xlane.xlu0 %1739
    %vm1741 = vcmp.ge.f32.partialorder %v1740, 32.0
    %v1742 = vsel %vm1741, %v1723, %v1682
    %v1743 = vor.u32 %v1702, 1024
    %vm1744 = vcmp.ge.s32.totalorder %v430, %v1743
    %vm1745 = vcmp.ge.s32.totalorder %v431, %v1743
    %vm1746 = vcmp.ge.s32.totalorder %v432, %v1743
    %vm1747 = vcmp.ge.s32.totalorder %v433, %v1743
    %vm1748 = vmand %vm1744, %vm478
    %vm1749 = vmand %vm1745, %vm479
    %vm1750 = vmand %vm1746, %vm480
    %vm1751 = vmand %vm1747, %vm481
    %v1752 = vsel %vm1748, 1.0, 0.0
    %v1753 = vsel %vm1749, 1.0, 0.0
    %v1754 = vsel %vm1750, 1.0, 0.0
    %v1755 = vsel %vm1751, 1.0, 0.0
    %v1756 = vadd.f32 %v1752, %v1753
    %v1757 = vadd.f32 %v1756, %v1754
    %v1758 = vadd.f32 %v1757, %v1755
    %1759 = vadd.xlane.f32.xlu0 %v1758
    %v1760 = vpop.xlane.xlu0 %1759
    %vm1761 = vcmp.ge.f32.partialorder %v1760, 96.0
    %v1762 = vsel %vm1761, %v1743, %v1702
    %v1763 = vor.u32 %v1722, 1024
    %vm1764 = vcmp.ge.s32.totalorder %v430, %v1763
    %vm1765 = vcmp.ge.s32.totalorder %v431, %v1763
    %vm1766 = vcmp.ge.s32.totalorder %v432, %v1763
    %vm1767 = vcmp.ge.s32.totalorder %v433, %v1763
    %vm1768 = vmand %vm1764, %vm501
    %vm1769 = vmand %vm1765, %vm502
    %vm1770 = vmand %vm1766, %vm503
    %vm1771 = vmand %vm1767, %vm504
    %v1772 = vsel %vm1768, 1.0, 0.0
    %v1773 = vsel %vm1769, 1.0, 0.0
    %v1774 = vsel %vm1770, 1.0, 0.0
    %v1775 = vsel %vm1771, 1.0, 0.0
    %v1776 = vadd.f32 %v1772, %v1773
    %v1777 = vadd.f32 %v1776, %v1774
    %v1778 = vadd.f32 %v1777, %v1775
    %1779 = vadd.xlane.f32.xlu0 %v1778
    %v1780 = vpop.xlane.xlu0 %1779
    %vm1781 = vcmp.ge.f32.partialorder %v1780, 128.0
    %v1782 = vsel %vm1781, %v1763, %v1722
    %v1783 = vor.u32 %v1742, 1024
    %vm1784 = vcmp.ge.s32.totalorder %v430, %v1783
    %vm1785 = vcmp.ge.s32.totalorder %v431, %v1783
    %vm1786 = vcmp.ge.s32.totalorder %v432, %v1783
    %vm1787 = vcmp.ge.s32.totalorder %v433, %v1783
    %vm1788 = vmand %vm1784, %vm524
    %vm1789 = vmand %vm1785, %vm525
    %vm1790 = vmand %vm1786, %vm526
    %vm1791 = vmand %vm1787, %vm527
    %v1792 = vsel %vm1788, 1.0, 0.0
    %v1793 = vsel %vm1789, 1.0, 0.0
    %v1794 = vsel %vm1790, 1.0, 0.0
    %v1795 = vsel %vm1791, 1.0, 0.0
    %v1796 = vadd.f32 %v1792, %v1793
    %v1797 = vadd.f32 %v1796, %v1794
    %v1798 = vadd.f32 %v1797, %v1795
    %1799 = vadd.xlane.f32.xlu0 %v1798
    %v1800 = vpop.xlane.xlu0 %1799
    %vm1801 = vcmp.ge.f32.partialorder %v1800, 32.0
    %v1802 = vsel %vm1801, %v1783, %v1742
    %v1803 = vor.u32 %v1762, 512
    %vm1804 = vcmp.ge.s32.totalorder %v430, %v1803
    %vm1805 = vcmp.ge.s32.totalorder %v431, %v1803
    %vm1806 = vcmp.ge.s32.totalorder %v432, %v1803
    %vm1807 = vcmp.ge.s32.totalorder %v433, %v1803
    %vm1808 = vmand %vm1804, %vm478
    %vm1809 = vmand %vm1805, %vm479
    %vm1810 = vmand %vm1806, %vm480
    %vm1811 = vmand %vm1807, %vm481
    %v1812 = vsel %vm1808, 1.0, 0.0
    %v1813 = vsel %vm1809, 1.0, 0.0
    %v1814 = vsel %vm1810, 1.0, 0.0
    %v1815 = vsel %vm1811, 1.0, 0.0
    %v1816 = vadd.f32 %v1812, %v1813
    %v1817 = vadd.f32 %v1816, %v1814
    %v1818 = vadd.f32 %v1817, %v1815
    %1819 = vadd.xlane.f32.xlu0 %v1818
    %v1820 = vpop.xlane.xlu0 %1819
    %vm1821 = vcmp.ge.f32.partialorder %v1820, 96.0
    %v1822 = vsel %vm1821, %v1803, %v1762
    %v1823 = vor.u32 %v1782, 512
    %vm1824 = vcmp.ge.s32.totalorder %v430, %v1823
    %vm1825 = vcmp.ge.s32.totalorder %v431, %v1823
    %vm1826 = vcmp.ge.s32.totalorder %v432, %v1823
    %vm1827 = vcmp.ge.s32.totalorder %v433, %v1823
    %vm1828 = vmand %vm1824, %vm501
    %vm1829 = vmand %vm1825, %vm502
    %vm1830 = vmand %vm1826, %vm503
    %vm1831 = vmand %vm1827, %vm504
    %v1832 = vsel %vm1828, 1.0, 0.0
    %v1833 = vsel %vm1829, 1.0, 0.0
    %v1834 = vsel %vm1830, 1.0, 0.0
    %v1835 = vsel %vm1831, 1.0, 0.0
    %v1836 = vadd.f32 %v1832, %v1833
    %v1837 = vadd.f32 %v1836, %v1834
    %v1838 = vadd.f32 %v1837, %v1835
    %1839 = vadd.xlane.f32.xlu0 %v1838
    %v1840 = vpop.xlane.xlu0 %1839
    %vm1841 = vcmp.ge.f32.partialorder %v1840, 128.0
    %v1842 = vsel %vm1841, %v1823, %v1782
    %v1843 = vor.u32 %v1802, 512
    %vm1844 = vcmp.ge.s32.totalorder %v430, %v1843
    %vm1845 = vcmp.ge.s32.totalorder %v431, %v1843
    %vm1846 = vcmp.ge.s32.totalorder %v432, %v1843
    %vm1847 = vcmp.ge.s32.totalorder %v433, %v1843
    %vm1848 = vmand %vm1844, %vm524
    %vm1849 = vmand %vm1845, %vm525
    %vm1850 = vmand %vm1846, %vm526
    %vm1851 = vmand %vm1847, %vm527
    %v1852 = vsel %vm1848, 1.0, 0.0
    %v1853 = vsel %vm1849, 1.0, 0.0
    %v1854 = vsel %vm1850, 1.0, 0.0
    %v1855 = vsel %vm1851, 1.0, 0.0
    %v1856 = vadd.f32 %v1852, %v1853
    %v1857 = vadd.f32 %v1856, %v1854
    %v1858 = vadd.f32 %v1857, %v1855
    %1859 = vadd.xlane.f32.xlu0 %v1858
    %v1860 = vpop.xlane.xlu0 %1859
    %vm1861 = vcmp.ge.f32.partialorder %v1860, 32.0
    %v1862 = vsel %vm1861, %v1843, %v1802
    %v1863 = vor.u32 %v1822, 256
    %vm1864 = vcmp.ge.s32.totalorder %v430, %v1863
    %vm1865 = vcmp.ge.s32.totalorder %v431, %v1863
    %vm1866 = vcmp.ge.s32.totalorder %v432, %v1863
    %vm1867 = vcmp.ge.s32.totalorder %v433, %v1863
    %vm1868 = vmand %vm1864, %vm478
    %vm1869 = vmand %vm1865, %vm479
    %vm1870 = vmand %vm1866, %vm480
    %vm1871 = vmand %vm1867, %vm481
    %v1872 = vsel %vm1868, 1.0, 0.0
    %v1873 = vsel %vm1869, 1.0, 0.0
    %v1874 = vsel %vm1870, 1.0, 0.0
    %v1875 = vsel %vm1871, 1.0, 0.0
    %v1876 = vadd.f32 %v1872, %v1873
    %v1877 = vadd.f32 %v1876, %v1874
    %v1878 = vadd.f32 %v1877, %v1875
    %1879 = vadd.xlane.f32.xlu0 %v1878
    %v1880 = vpop.xlane.xlu0 %1879
    %vm1881 = vcmp.ge.f32.partialorder %v1880, 96.0
    %v1882 = vsel %vm1881, %v1863, %v1822
    %v1883 = vor.u32 %v1842, 256
    %vm1884 = vcmp.ge.s32.totalorder %v430, %v1883
    %vm1885 = vcmp.ge.s32.totalorder %v431, %v1883
    %vm1886 = vcmp.ge.s32.totalorder %v432, %v1883
    %vm1887 = vcmp.ge.s32.totalorder %v433, %v1883
    %vm1888 = vmand %vm1884, %vm501
    %vm1889 = vmand %vm1885, %vm502
    %vm1890 = vmand %vm1886, %vm503
    %vm1891 = vmand %vm1887, %vm504
    %v1892 = vsel %vm1888, 1.0, 0.0
    %v1893 = vsel %vm1889, 1.0, 0.0
    %v1894 = vsel %vm1890, 1.0, 0.0
    %v1895 = vsel %vm1891, 1.0, 0.0
    %v1896 = vadd.f32 %v1892, %v1893
    %v1897 = vadd.f32 %v1896, %v1894
    %v1898 = vadd.f32 %v1897, %v1895
    %1899 = vadd.xlane.f32.xlu0 %v1898
    %v1900 = vpop.xlane.xlu0 %1899
    %vm1901 = vcmp.ge.f32.partialorder %v1900, 128.0
    %v1902 = vsel %vm1901, %v1883, %v1842
    %v1903 = vor.u32 %v1862, 256
    %vm1904 = vcmp.ge.s32.totalorder %v430, %v1903
    %vm1905 = vcmp.ge.s32.totalorder %v431, %v1903
    %vm1906 = vcmp.ge.s32.totalorder %v432, %v1903
    %vm1907 = vcmp.ge.s32.totalorder %v433, %v1903
    %vm1908 = vmand %vm1904, %vm524
    %vm1909 = vmand %vm1905, %vm525
    %vm1910 = vmand %vm1906, %vm526
    %vm1911 = vmand %vm1907, %vm527
    %v1912 = vsel %vm1908, 1.0, 0.0
    %v1913 = vsel %vm1909, 1.0, 0.0
    %v1914 = vsel %vm1910, 1.0, 0.0
    %v1915 = vsel %vm1911, 1.0, 0.0
    %v1916 = vadd.f32 %v1912, %v1913
    %v1917 = vadd.f32 %v1916, %v1914
    %v1918 = vadd.f32 %v1917, %v1915
    %1919 = vadd.xlane.f32.xlu0 %v1918
    %v1920 = vpop.xlane.xlu0 %1919
    %vm1921 = vcmp.ge.f32.partialorder %v1920, 32.0
    %v1922 = vsel %vm1921, %v1903, %v1862
    %v1923 = vor.u32 %v1882, 128
    %vm1924 = vcmp.ge.s32.totalorder %v430, %v1923
    %vm1925 = vcmp.ge.s32.totalorder %v431, %v1923
    %vm1926 = vcmp.ge.s32.totalorder %v432, %v1923
    %vm1927 = vcmp.ge.s32.totalorder %v433, %v1923
    %vm1928 = vmand %vm1924, %vm478
    %vm1929 = vmand %vm1925, %vm479
    %vm1930 = vmand %vm1926, %vm480
    %vm1931 = vmand %vm1927, %vm481
    %v1932 = vsel %vm1928, 1.0, 0.0
    %v1933 = vsel %vm1929, 1.0, 0.0
    %v1934 = vsel %vm1930, 1.0, 0.0
    %v1935 = vsel %vm1931, 1.0, 0.0
    %v1936 = vadd.f32 %v1932, %v1933
    %v1937 = vadd.f32 %v1936, %v1934
    %v1938 = vadd.f32 %v1937, %v1935
    %1939 = vadd.xlane.f32.xlu0 %v1938
    %v1940 = vpop.xlane.xlu0 %1939
    %vm1941 = vcmp.ge.f32.partialorder %v1940, 96.0
    %v1942 = vsel %vm1941, %v1923, %v1882
    %v1943 = vor.u32 %v1902, 128
    %vm1944 = vcmp.ge.s32.totalorder %v430, %v1943
    %vm1945 = vcmp.ge.s32.totalorder %v431, %v1943
    %vm1946 = vcmp.ge.s32.totalorder %v432, %v1943
    %vm1947 = vcmp.ge.s32.totalorder %v433, %v1943
    %vm1948 = vmand %vm1944, %vm501
    %vm1949 = vmand %vm1945, %vm502
    %vm1950 = vmand %vm1946, %vm503
    %vm1951 = vmand %vm1947, %vm504
    %v1952 = vsel %vm1948, 1.0, 0.0
    %v1953 = vsel %vm1949, 1.0, 0.0
    %v1954 = vsel %vm1950, 1.0, 0.0
    %v1955 = vsel %vm1951, 1.0, 0.0
    %v1956 = vadd.f32 %v1952, %v1953
    %v1957 = vadd.f32 %v1956, %v1954
    %v1958 = vadd.f32 %v1957, %v1955
    %1959 = vadd.xlane.f32.xlu0 %v1958
    %v1960 = vpop.xlane.xlu0 %1959
    %vm1961 = vcmp.ge.f32.partialorder %v1960, 128.0
    %v1962 = vsel %vm1961, %v1943, %v1902
    %v1963 = vor.u32 %v1922, 128
    %vm1964 = vcmp.ge.s32.totalorder %v430, %v1963
    %vm1965 = vcmp.ge.s32.totalorder %v431, %v1963
    %vm1966 = vcmp.ge.s32.totalorder %v432, %v1963
    %vm1967 = vcmp.ge.s32.totalorder %v433, %v1963
    %vm1968 = vmand %vm1964, %vm524
    %vm1969 = vmand %vm1965, %vm525
    %vm1970 = vmand %vm1966, %vm526
    %vm1971 = vmand %vm1967, %vm527
    %v1972 = vsel %vm1968, 1.0, 0.0
    %v1973 = vsel %vm1969, 1.0, 0.0
    %v1974 = vsel %vm1970, 1.0, 0.0
    %v1975 = vsel %vm1971, 1.0, 0.0
    %v1976 = vadd.f32 %v1972, %v1973
    %v1977 = vadd.f32 %v1976, %v1974
    %v1978 = vadd.f32 %v1977, %v1975
    %1979 = vadd.xlane.f32.xlu0 %v1978
    %v1980 = vpop.xlane.xlu0 %1979
    %vm1981 = vcmp.ge.f32.partialorder %v1980, 32.0
    %v1982 = vsel %vm1981, %v1963, %v1922
    %v1983 = vor.u32 %v1942, 64
    %vm1984 = vcmp.ge.s32.totalorder %v430, %v1983
    %vm1985 = vcmp.ge.s32.totalorder %v431, %v1983
    %vm1986 = vcmp.ge.s32.totalorder %v432, %v1983
    %vm1987 = vcmp.ge.s32.totalorder %v433, %v1983
    %vm1988 = vmand %vm1984, %vm478
    %vm1989 = vmand %vm1985, %vm479
    %vm1990 = vmand %vm1986, %vm480
    %vm1991 = vmand %vm1987, %vm481
    %v1992 = vsel %vm1988, 1.0, 0.0
    %v1993 = vsel %vm1989, 1.0, 0.0
    %v1994 = vsel %vm1990, 1.0, 0.0
    %v1995 = vsel %vm1991, 1.0, 0.0
    %v1996 = vadd.f32 %v1992, %v1993
    %v1997 = vadd.f32 %v1996, %v1994
    %v1998 = vadd.f32 %v1997, %v1995
    %1999 = vadd.xlane.f32.xlu0 %v1998
    %v2000 = vpop.xlane.xlu0 %1999
    %vm2001 = vcmp.ge.f32.partialorder %v2000, 96.0
    %v2002 = vsel %vm2001, %v1983, %v1942
    %v2003 = vor.u32 %v1962, 64
    %vm2004 = vcmp.ge.s32.totalorder %v430, %v2003
    %vm2005 = vcmp.ge.s32.totalorder %v431, %v2003
    %vm2006 = vcmp.ge.s32.totalorder %v432, %v2003
    %vm2007 = vcmp.ge.s32.totalorder %v433, %v2003
    %vm2008 = vmand %vm2004, %vm501
    %vm2009 = vmand %vm2005, %vm502
    %vm2010 = vmand %vm2006, %vm503
    %vm2011 = vmand %vm2007, %vm504
    %v2012 = vsel %vm2008, 1.0, 0.0
    %v2013 = vsel %vm2009, 1.0, 0.0
    %v2014 = vsel %vm2010, 1.0, 0.0
    %v2015 = vsel %vm2011, 1.0, 0.0
    %v2016 = vadd.f32 %v2012, %v2013
    %v2017 = vadd.f32 %v2016, %v2014
    %v2018 = vadd.f32 %v2017, %v2015
    %2019 = vadd.xlane.f32.xlu0 %v2018
    %v2020 = vpop.xlane.xlu0 %2019
    %vm2021 = vcmp.ge.f32.partialorder %v2020, 128.0
    %v2022 = vsel %vm2021, %v2003, %v1962
    %v2023 = vor.u32 %v1982, 64
    %vm2024 = vcmp.ge.s32.totalorder %v430, %v2023
    %vm2025 = vcmp.ge.s32.totalorder %v431, %v2023
    %vm2026 = vcmp.ge.s32.totalorder %v432, %v2023
    %vm2027 = vcmp.ge.s32.totalorder %v433, %v2023
    %vm2028 = vmand %vm2024, %vm524
    %vm2029 = vmand %vm2025, %vm525
    %vm2030 = vmand %vm2026, %vm526
    %vm2031 = vmand %vm2027, %vm527
    %v2032 = vsel %vm2028, 1.0, 0.0
    %v2033 = vsel %vm2029, 1.0, 0.0
    %v2034 = vsel %vm2030, 1.0, 0.0
    %v2035 = vsel %vm2031, 1.0, 0.0
    %v2036 = vadd.f32 %v2032, %v2033
    %v2037 = vadd.f32 %v2036, %v2034
    %v2038 = vadd.f32 %v2037, %v2035
    %2039 = vadd.xlane.f32.xlu0 %v2038
    %v2040 = vpop.xlane.xlu0 %2039
    %vm2041 = vcmp.ge.f32.partialorder %v2040, 32.0
    %v2042 = vsel %vm2041, %v2023, %v1982
    %v2043 = vor.u32 %v2002, 32
    %vm2044 = vcmp.ge.s32.totalorder %v430, %v2043
    %vm2045 = vcmp.ge.s32.totalorder %v431, %v2043
    %vm2046 = vcmp.ge.s32.totalorder %v432, %v2043
    %vm2047 = vcmp.ge.s32.totalorder %v433, %v2043
    %vm2048 = vmand %vm2044, %vm478
    %vm2049 = vmand %vm2045, %vm479
    %vm2050 = vmand %vm2046, %vm480
    %vm2051 = vmand %vm2047, %vm481
    %v2052 = vsel %vm2048, 1.0, 0.0
    %v2053 = vsel %vm2049, 1.0, 0.0
    %v2054 = vsel %vm2050, 1.0, 0.0
    %v2055 = vsel %vm2051, 1.0, 0.0
    %v2056 = vadd.f32 %v2052, %v2053
    %v2057 = vadd.f32 %v2056, %v2054
    %v2058 = vadd.f32 %v2057, %v2055
    %2059 = vadd.xlane.f32.xlu0 %v2058
    %v2060 = vpop.xlane.xlu0 %2059
    %vm2061 = vcmp.ge.f32.partialorder %v2060, 96.0
    %v2062 = vsel %vm2061, %v2043, %v2002
    %v2063 = vor.u32 %v2022, 32
    %vm2064 = vcmp.ge.s32.totalorder %v430, %v2063
    %vm2065 = vcmp.ge.s32.totalorder %v431, %v2063
    %vm2066 = vcmp.ge.s32.totalorder %v432, %v2063
    %vm2067 = vcmp.ge.s32.totalorder %v433, %v2063
    %vm2068 = vmand %vm2064, %vm501
    %vm2069 = vmand %vm2065, %vm502
    %vm2070 = vmand %vm2066, %vm503
    %vm2071 = vmand %vm2067, %vm504
    %v2072 = vsel %vm2068, 1.0, 0.0
    %v2073 = vsel %vm2069, 1.0, 0.0
    %v2074 = vsel %vm2070, 1.0, 0.0
    %v2075 = vsel %vm2071, 1.0, 0.0
    %v2076 = vadd.f32 %v2072, %v2073
    %v2077 = vadd.f32 %v2076, %v2074
    %v2078 = vadd.f32 %v2077, %v2075
    %2079 = vadd.xlane.f32.xlu0 %v2078
    %v2080 = vpop.xlane.xlu0 %2079
    %vm2081 = vcmp.ge.f32.partialorder %v2080, 128.0
    %v2082 = vsel %vm2081, %v2063, %v2022
    %v2083 = vor.u32 %v2042, 32
    %vm2084 = vcmp.ge.s32.totalorder %v430, %v2083
    %vm2085 = vcmp.ge.s32.totalorder %v431, %v2083
    %vm2086 = vcmp.ge.s32.totalorder %v432, %v2083
    %vm2087 = vcmp.ge.s32.totalorder %v433, %v2083
    %vm2088 = vmand %vm2084, %vm524
    %vm2089 = vmand %vm2085, %vm525
    %vm2090 = vmand %vm2086, %vm526
    %vm2091 = vmand %vm2087, %vm527
    %v2092 = vsel %vm2088, 1.0, 0.0
    %v2093 = vsel %vm2089, 1.0, 0.0
    %v2094 = vsel %vm2090, 1.0, 0.0
    %v2095 = vsel %vm2091, 1.0, 0.0
    %v2096 = vadd.f32 %v2092, %v2093
    %v2097 = vadd.f32 %v2096, %v2094
    %v2098 = vadd.f32 %v2097, %v2095
    %2099 = vadd.xlane.f32.xlu0 %v2098
    %v2100 = vpop.xlane.xlu0 %2099
    %vm2101 = vcmp.ge.f32.partialorder %v2100, 32.0
    %v2102 = vsel %vm2101, %v2083, %v2042
    %v2103 = vor.u32 %v2062, 16
    %vm2104 = vcmp.ge.s32.totalorder %v430, %v2103
    %vm2105 = vcmp.ge.s32.totalorder %v431, %v2103
    %vm2106 = vcmp.ge.s32.totalorder %v432, %v2103
    %vm2107 = vcmp.ge.s32.totalorder %v433, %v2103
    %vm2108 = vmand %vm2104, %vm478
    %vm2109 = vmand %vm2105, %vm479
    %vm2110 = vmand %vm2106, %vm480
    %vm2111 = vmand %vm2107, %vm481
    %v2112 = vsel %vm2108, 1.0, 0.0
    %v2113 = vsel %vm2109, 1.0, 0.0
    %v2114 = vsel %vm2110, 1.0, 0.0
    %v2115 = vsel %vm2111, 1.0, 0.0
    %v2116 = vadd.f32 %v2112, %v2113
    %v2117 = vadd.f32 %v2116, %v2114
    %v2118 = vadd.f32 %v2117, %v2115
    %2119 = vadd.xlane.f32.xlu0 %v2118
    %v2120 = vpop.xlane.xlu0 %2119
    %vm2121 = vcmp.ge.f32.partialorder %v2120, 96.0
    %v2122 = vsel %vm2121, %v2103, %v2062
    %v2123 = vor.u32 %v2082, 16
    %vm2124 = vcmp.ge.s32.totalorder %v430, %v2123
    %vm2125 = vcmp.ge.s32.totalorder %v431, %v2123
    %vm2126 = vcmp.ge.s32.totalorder %v432, %v2123
    %vm2127 = vcmp.ge.s32.totalorder %v433, %v2123
    %vm2128 = vmand %vm2124, %vm501
    %vm2129 = vmand %vm2125, %vm502
    %vm2130 = vmand %vm2126, %vm503
    %vm2131 = vmand %vm2127, %vm504
    %v2132 = vsel %vm2128, 1.0, 0.0
    %v2133 = vsel %vm2129, 1.0, 0.0
    %v2134 = vsel %vm2130, 1.0, 0.0
    %v2135 = vsel %vm2131, 1.0, 0.0
    %v2136 = vadd.f32 %v2132, %v2133
    %v2137 = vadd.f32 %v2136, %v2134
    %v2138 = vadd.f32 %v2137, %v2135
    %2139 = vadd.xlane.f32.xlu0 %v2138
    %v2140 = vpop.xlane.xlu0 %2139
    %vm2141 = vcmp.ge.f32.partialorder %v2140, 128.0
    %v2142 = vsel %vm2141, %v2123, %v2082
    %v2143 = vor.u32 %v2102, 16
    %vm2144 = vcmp.ge.s32.totalorder %v430, %v2143
    %vm2145 = vcmp.ge.s32.totalorder %v431, %v2143
    %vm2146 = vcmp.ge.s32.totalorder %v432, %v2143
    %vm2147 = vcmp.ge.s32.totalorder %v433, %v2143
    %vm2148 = vmand %vm2144, %vm524
    %vm2149 = vmand %vm2145, %vm525
    %vm2150 = vmand %vm2146, %vm526
    %vm2151 = vmand %vm2147, %vm527
    %v2152 = vsel %vm2148, 1.0, 0.0
    %v2153 = vsel %vm2149, 1.0, 0.0
    %v2154 = vsel %vm2150, 1.0, 0.0
    %v2155 = vsel %vm2151, 1.0, 0.0
    %v2156 = vadd.f32 %v2152, %v2153
    %v2157 = vadd.f32 %v2156, %v2154
    %v2158 = vadd.f32 %v2157, %v2155
    %2159 = vadd.xlane.f32.xlu0 %v2158
    %v2160 = vpop.xlane.xlu0 %2159
    %vm2161 = vcmp.ge.f32.partialorder %v2160, 32.0
    %v2162 = vsel %vm2161, %v2143, %v2102
    %v2163 = vor.u32 %v2122, 8
    %vm2164 = vcmp.ge.s32.totalorder %v430, %v2163
    %vm2165 = vcmp.ge.s32.totalorder %v431, %v2163
    %vm2166 = vcmp.ge.s32.totalorder %v432, %v2163
    %vm2167 = vcmp.ge.s32.totalorder %v433, %v2163
    %vm2168 = vmand %vm2164, %vm478
    %vm2169 = vmand %vm2165, %vm479
    %vm2170 = vmand %vm2166, %vm480
    %vm2171 = vmand %vm2167, %vm481
    %v2172 = vsel %vm2168, 1.0, 0.0
    %v2173 = vsel %vm2169, 1.0, 0.0
    %v2174 = vsel %vm2170, 1.0, 0.0
    %v2175 = vsel %vm2171, 1.0, 0.0
    %v2176 = vadd.f32 %v2172, %v2173
    %v2177 = vadd.f32 %v2176, %v2174
    %v2178 = vadd.f32 %v2177, %v2175
    %2179 = vadd.xlane.f32.xlu0 %v2178
    %v2180 = vpop.xlane.xlu0 %2179
    %vm2181 = vcmp.ge.f32.partialorder %v2180, 96.0
    %v2182 = vsel %vm2181, %v2163, %v2122
    %v2183 = vor.u32 %v2142, 8
    %vm2184 = vcmp.ge.s32.totalorder %v430, %v2183
    %vm2185 = vcmp.ge.s32.totalorder %v431, %v2183
    %vm2186 = vcmp.ge.s32.totalorder %v432, %v2183
    %vm2187 = vcmp.ge.s32.totalorder %v433, %v2183
    %vm2188 = vmand %vm2184, %vm501
    %vm2189 = vmand %vm2185, %vm502
    %vm2190 = vmand %vm2186, %vm503
    %vm2191 = vmand %vm2187, %vm504
    %v2192 = vsel %vm2188, 1.0, 0.0
    %v2193 = vsel %vm2189, 1.0, 0.0
    %v2194 = vsel %vm2190, 1.0, 0.0
    %v2195 = vsel %vm2191, 1.0, 0.0
    %v2196 = vadd.f32 %v2192, %v2193
    %v2197 = vadd.f32 %v2196, %v2194
    %v2198 = vadd.f32 %v2197, %v2195
    %2199 = vadd.xlane.f32.xlu0 %v2198
    %v2200 = vpop.xlane.xlu0 %2199
    %vm2201 = vcmp.ge.f32.partialorder %v2200, 128.0
    %v2202 = vsel %vm2201, %v2183, %v2142
    %v2203 = vor.u32 %v2162, 8
    %vm2204 = vcmp.ge.s32.totalorder %v430, %v2203
    %vm2205 = vcmp.ge.s32.totalorder %v431, %v2203
    %vm2206 = vcmp.ge.s32.totalorder %v432, %v2203
    %vm2207 = vcmp.ge.s32.totalorder %v433, %v2203
    %vm2208 = vmand %vm2204, %vm524
    %vm2209 = vmand %vm2205, %vm525
    %vm2210 = vmand %vm2206, %vm526
    %vm2211 = vmand %vm2207, %vm527
    %v2212 = vsel %vm2208, 1.0, 0.0
    %v2213 = vsel %vm2209, 1.0, 0.0
    %v2214 = vsel %vm2210, 1.0, 0.0
    %v2215 = vsel %vm2211, 1.0, 0.0
    %v2216 = vadd.f32 %v2212, %v2213
    %v2217 = vadd.f32 %v2216, %v2214
    %v2218 = vadd.f32 %v2217, %v2215
    %2219 = vadd.xlane.f32.xlu0 %v2218
    %v2220 = vpop.xlane.xlu0 %2219
    %vm2221 = vcmp.ge.f32.partialorder %v2220, 32.0
    %v2222 = vsel %vm2221, %v2203, %v2162
    %v2223 = vor.u32 %v2182, 4
    %vm2224 = vcmp.ge.s32.totalorder %v430, %v2223
    %vm2225 = vcmp.ge.s32.totalorder %v431, %v2223
    %vm2226 = vcmp.ge.s32.totalorder %v432, %v2223
    %vm2227 = vcmp.ge.s32.totalorder %v433, %v2223
    %vm2228 = vmand %vm2224, %vm478
    %vm2229 = vmand %vm2225, %vm479
    %vm2230 = vmand %vm2226, %vm480
    %vm2231 = vmand %vm2227, %vm481
    %v2232 = vsel %vm2228, 1.0, 0.0
    %v2233 = vsel %vm2229, 1.0, 0.0
    %v2234 = vsel %vm2230, 1.0, 0.0
    %v2235 = vsel %vm2231, 1.0, 0.0
    %v2236 = vadd.f32 %v2232, %v2233
    %v2237 = vadd.f32 %v2236, %v2234
    %v2238 = vadd.f32 %v2237, %v2235
    %2239 = vadd.xlane.f32.xlu0 %v2238
    %v2240 = vpop.xlane.xlu0 %2239
    %vm2241 = vcmp.ge.f32.partialorder %v2240, 96.0
    %v2242 = vsel %vm2241, %v2223, %v2182
    %v2243 = vor.u32 %v2202, 4
    %vm2244 = vcmp.ge.s32.totalorder %v430, %v2243
    %vm2245 = vcmp.ge.s32.totalorder %v431, %v2243
    %vm2246 = vcmp.ge.s32.totalorder %v432, %v2243
    %vm2247 = vcmp.ge.s32.totalorder %v433, %v2243
    %vm2248 = vmand %vm2244, %vm501
    %vm2249 = vmand %vm2245, %vm502
    %vm2250 = vmand %vm2246, %vm503
    %vm2251 = vmand %vm2247, %vm504
    %v2252 = vsel %vm2248, 1.0, 0.0
    %v2253 = vsel %vm2249, 1.0, 0.0
    %v2254 = vsel %vm2250, 1.0, 0.0
    %v2255 = vsel %vm2251, 1.0, 0.0
    %v2256 = vadd.f32 %v2252, %v2253
    %v2257 = vadd.f32 %v2256, %v2254
    %v2258 = vadd.f32 %v2257, %v2255
    %2259 = vadd.xlane.f32.xlu0 %v2258
    %v2260 = vpop.xlane.xlu0 %2259
    %vm2261 = vcmp.ge.f32.partialorder %v2260, 128.0
    %v2262 = vsel %vm2261, %v2243, %v2202
    %v2263 = vor.u32 %v2222, 4
    %vm2264 = vcmp.ge.s32.totalorder %v430, %v2263
    %vm2265 = vcmp.ge.s32.totalorder %v431, %v2263
    %vm2266 = vcmp.ge.s32.totalorder %v432, %v2263
    %vm2267 = vcmp.ge.s32.totalorder %v433, %v2263
    %vm2268 = vmand %vm2264, %vm524
    %vm2269 = vmand %vm2265, %vm525
    %vm2270 = vmand %vm2266, %vm526
    %vm2271 = vmand %vm2267, %vm527
    %v2272 = vsel %vm2268, 1.0, 0.0
    %v2273 = vsel %vm2269, 1.0, 0.0
    %v2274 = vsel %vm2270, 1.0, 0.0
    %v2275 = vsel %vm2271, 1.0, 0.0
    %v2276 = vadd.f32 %v2272, %v2273
    %v2277 = vadd.f32 %v2276, %v2274
    %v2278 = vadd.f32 %v2277, %v2275
    %2279 = vadd.xlane.f32.xlu0 %v2278
    %v2280 = vpop.xlane.xlu0 %2279
    %vm2281 = vcmp.ge.f32.partialorder %v2280, 32.0
    %v2282 = vsel %vm2281, %v2263, %v2222
    %v2283 = vor.u32 %v2242, 2
    %vm2284 = vcmp.ge.s32.totalorder %v430, %v2283
    %vm2285 = vcmp.ge.s32.totalorder %v431, %v2283
    %vm2286 = vcmp.ge.s32.totalorder %v432, %v2283
    %vm2287 = vcmp.ge.s32.totalorder %v433, %v2283
    %vm2288 = vmand %vm2284, %vm478
    %vm2289 = vmand %vm2285, %vm479
    %vm2290 = vmand %vm2286, %vm480
    %vm2291 = vmand %vm2287, %vm481
    %v2292 = vsel %vm2288, 1.0, 0.0
    %v2293 = vsel %vm2289, 1.0, 0.0
    %v2294 = vsel %vm2290, 1.0, 0.0
    %v2295 = vsel %vm2291, 1.0, 0.0
    %v2296 = vadd.f32 %v2292, %v2293
    %v2297 = vadd.f32 %v2296, %v2294
    %v2298 = vadd.f32 %v2297, %v2295
    %2299 = vadd.xlane.f32.xlu0 %v2298
    %v2300 = vpop.xlane.xlu0 %2299
    %vm2301 = vcmp.ge.f32.partialorder %v2300, 96.0
    %v2302 = vsel %vm2301, %v2283, %v2242
    %v2303 = vor.u32 %v2262, 2
    %vm2304 = vcmp.ge.s32.totalorder %v430, %v2303
    %vm2305 = vcmp.ge.s32.totalorder %v431, %v2303
    %vm2306 = vcmp.ge.s32.totalorder %v432, %v2303
    %vm2307 = vcmp.ge.s32.totalorder %v433, %v2303
    %vm2308 = vmand %vm2304, %vm501
    %vm2309 = vmand %vm2305, %vm502
    %vm2310 = vmand %vm2306, %vm503
    %vm2311 = vmand %vm2307, %vm504
    %v2312 = vsel %vm2308, 1.0, 0.0
    %v2313 = vsel %vm2309, 1.0, 0.0
    %v2314 = vsel %vm2310, 1.0, 0.0
    %v2315 = vsel %vm2311, 1.0, 0.0
    %v2316 = vadd.f32 %v2312, %v2313
    %v2317 = vadd.f32 %v2316, %v2314
    %v2318 = vadd.f32 %v2317, %v2315
    %2319 = vadd.xlane.f32.xlu0 %v2318
    %v2320 = vpop.xlane.xlu0 %2319
    %vm2321 = vcmp.ge.f32.partialorder %v2320, 128.0
    %v2322 = vsel %vm2321, %v2303, %v2262
    %v2323 = vor.u32 %v2282, 2
    %vm2324 = vcmp.ge.s32.totalorder %v430, %v2323
    %vm2325 = vcmp.ge.s32.totalorder %v431, %v2323
    %vm2326 = vcmp.ge.s32.totalorder %v432, %v2323
    %vm2327 = vcmp.ge.s32.totalorder %v433, %v2323
    %vm2328 = vmand %vm2324, %vm524
    %vm2329 = vmand %vm2325, %vm525
    %vm2330 = vmand %vm2326, %vm526
    %vm2331 = vmand %vm2327, %vm527
    %v2332 = vsel %vm2328, 1.0, 0.0
    %v2333 = vsel %vm2329, 1.0, 0.0
    %v2334 = vsel %vm2330, 1.0, 0.0
    %v2335 = vsel %vm2331, 1.0, 0.0
    %v2336 = vadd.f32 %v2332, %v2333
    %v2337 = vadd.f32 %v2336, %v2334
    %v2338 = vadd.f32 %v2337, %v2335
    %2339 = vadd.xlane.f32.xlu0 %v2338
    %v2340 = vpop.xlane.xlu0 %2339
    %vm2341 = vcmp.ge.f32.partialorder %v2340, 32.0
    %v2342 = vsel %vm2341, %v2323, %v2282
    %v2343 = vor.u32 %v2302, 1
    %vm2344 = vcmp.ge.s32.totalorder %v430, %v2343
    %vm2345 = vcmp.ge.s32.totalorder %v431, %v2343
    %vm2346 = vcmp.ge.s32.totalorder %v432, %v2343
    %vm2347 = vcmp.ge.s32.totalorder %v433, %v2343
    %vm2348 = vmand %vm2344, %vm478
    %vm2349 = vmand %vm2345, %vm479
    %vm2350 = vmand %vm2346, %vm480
    %vm2351 = vmand %vm2347, %vm481
    %v2352 = vsel %vm2348, 1.0, 0.0
    %v2353 = vsel %vm2349, 1.0, 0.0
    %v2354 = vsel %vm2350, 1.0, 0.0
    %v2355 = vsel %vm2351, 1.0, 0.0
    %v2356 = vadd.f32 %v2352, %v2353
    %v2357 = vadd.f32 %v2356, %v2354
    %v2358 = vadd.f32 %v2357, %v2355
    %2359 = vadd.xlane.f32.xlu0 %v2358
    %v2360 = vpop.xlane.xlu0 %2359
    %vm2361 = vcmp.ge.f32.partialorder %v2360, 96.0
    %v2362 = vsel %vm2361, %v2343, %v2302
    %v2363 = vor.u32 %v2322, 1
    %vm2364 = vcmp.ge.s32.totalorder %v430, %v2363
    %vm2365 = vcmp.ge.s32.totalorder %v431, %v2363
    %vm2366 = vcmp.ge.s32.totalorder %v432, %v2363
    %vm2367 = vcmp.ge.s32.totalorder %v433, %v2363
    %vm2368 = vmand %vm2364, %vm501
    %vm2369 = vmand %vm2365, %vm502
    %vm2370 = vmand %vm2366, %vm503
    %vm2371 = vmand %vm2367, %vm504
    %v2372 = vsel %vm2368, 1.0, 0.0
    %v2373 = vsel %vm2369, 1.0, 0.0
    %v2374 = vsel %vm2370, 1.0, 0.0
    %v2375 = vsel %vm2371, 1.0, 0.0
    %v2376 = vadd.f32 %v2372, %v2373
    %v2377 = vadd.f32 %v2376, %v2374
    %v2378 = vadd.f32 %v2377, %v2375
    %2379 = vadd.xlane.f32.xlu0 %v2378
    %v2380 = vpop.xlane.xlu0 %2379
    %vm2381 = vcmp.ge.f32.partialorder %v2380, 128.0
    %v2382 = vsel %vm2381, %v2363, %v2322
    %v2383 = vor.u32 %v2342, 1
    %vm2384 = vcmp.ge.s32.totalorder %v430, %v2383
    %vm2385 = vcmp.ge.s32.totalorder %v431, %v2383
    %vm2386 = vcmp.ge.s32.totalorder %v432, %v2383
    %vm2387 = vcmp.ge.s32.totalorder %v433, %v2383
    %vm2388 = vmand %vm2384, %vm524
    %vm2389 = vmand %vm2385, %vm525
    %vm2390 = vmand %vm2386, %vm526
    %vm2391 = vmand %vm2387, %vm527
    %v2392 = vsel %vm2388, 1.0, 0.0
    %v2393 = vsel %vm2389, 1.0, 0.0
    %v2394 = vsel %vm2390, 1.0, 0.0
    %v2395 = vsel %vm2391, 1.0, 0.0
    %v2396 = vadd.f32 %v2392, %v2393
    %v2397 = vadd.f32 %v2396, %v2394
    %v2398 = vadd.f32 %v2397, %v2395
    %2399 = vadd.xlane.f32.xlu0 %v2398
    %v2400 = vpop.xlane.xlu0 %2399
    %vm2401 = vcmp.ge.f32.partialorder %v2400, 32.0
    %v2402 = vsel %vm2401, %v2383, %v2342
    %v2403 = vsel %vm446, 1, 0
    %v2404 = vsel %vm447, 1, 0
    %v2405 = vsel %vm448, 1, 0
    %v2406 = vsel %vm449, 1, 0
    %vm2407 = vcmp.eq.s32.totalorder %v2403, 1
    %vm2408 = vcmp.eq.s32.totalorder %v2404, 1
    %vm2409 = vcmp.eq.s32.totalorder %v2405, 1
    %vm2410 = vcmp.eq.s32.totalorder %v2406, 1
    %v2411 = vsel %vm2407, %v2382, %v2362
    %v2412 = vsel %vm2408, %v2382, %v2362
    %v2413 = vsel %vm2409, %v2382, %v2362
    %v2414 = vsel %vm2410, %v2382, %v2362
    %v2415 = vsel %vm458, 1, 0
    %v2416 = vsel %vm459, 1, 0
    %v2417 = vsel %vm460, 1, 0
    %v2418 = vsel %vm461, 1, 0
    %vm2419 = vcmp.eq.s32.totalorder %v2415, 1
    %vm2420 = vcmp.eq.s32.totalorder %v2416, 1
    %vm2421 = vcmp.eq.s32.totalorder %v2417, 1
    %vm2422 = vcmp.eq.s32.totalorder %v2418, 1
    %v2423 = vsel %vm2419, %v2402, %v2411
    %v2424 = vsel %vm2420, %v2402, %v2412
    %v2425 = vsel %vm2421, %v2402, %v2413
    %v2426 = vsel %vm2422, %v2402, %v2414
    %vm2427 = vcmp.ge.s32.totalorder %v430, %v2423
    %vm2428 = vcmp.ge.s32.totalorder %v431, %v2424
    %vm2429 = vcmp.ge.s32.totalorder %v432, %v2425
    %vm2430 = vcmp.ge.s32.totalorder %v433, %v2426
    %v2431 = vsel %vm2427, 1.0, 0.0
    %v2432 = vsel %vm2428, 1.0, 0.0
    %v2433 = vsel %vm2429, 1.0, 0.0
    %v2434 = vsel %vm2430, 1.0, 0.0
    %2435 = vst [vmem:[%s6] sm:$0xff] %v2431
    %2436 = vst [vmem:[%s6 + $0x8] sm:$0xff] %v2432
    %2437 = vst [vmem:[%s6 + $0x10] sm:$0xff] %v2433
    %2438 = vst [vmem:[%s6 + $0x18] sm:$0xff] %v2434
    // Predicated region
    $region26: #{_impl.1} parent=1 // pred_check
      _
    $region27: #{_impl.1} parent=1 // pred_check_branch
      %2440 = sbr.rel (0) target = $region29
    $region28: #{_impl.1} parent=1 // pred_region
      _
    $region29: #{_impl.1} parent=1 // pred_fallthru
      _
    // Predicated region
    $region30: #{_impl.1} parent=1 // pred_check
      _
    $region31: #{_impl.1} parent=1 // pred_check_branch
      %2442 = sbr.rel (0) target = $region33
    $region32: #{_impl.1} parent=1 // pred_region
      _
    $region33: #{_impl.1} parent=1 // pred_fallthru
      _
    %2443 = vsyncpa [#allocation5], 1

</llo_original>
